<compile_context>
chip_gen: v6e
topology: v6e:2x2x1
jax: 0.10.0
libtpu: 0.0.40
codegen_flags: <defaults>
</compile_context>

<pallas_src>
import functools

import jax
import jax.numpy as jnp
from jax import lax
from jax.experimental import pallas as pl
from jax.experimental.pallas import tpu as pltpu


# ----------------------------------------------------------------------------
# Single fused kernel (channels-major): QKV(+feats) matmul + MHSA + epilogue
# ----------------------------------------------------------------------------
def _base_oc_kernel(x_ref, wall_ref, wpct_ref, b_ref, o_ref, *, heads, hd):
    C = heads * hd
    xT = x_ref[0].astype(jnp.bfloat16)                          # (C, N) bf16

    # one fused x-side matmul: rows = [q(scaled) ; k ; v ; bn-folded feats path]
    big = jnp.dot(wall_ref[...], xT,
                  preferred_element_type=jnp.float32)            # (4C, N) f32
    qkvT = big[:3 * C, :].astype(jnp.bfloat16)                   # single bf16 cast
    acc = big[3 * C:, :]                                         # (C, N) f32 = x-path

    wpct = wpct_ref[...]                                         # (C, C) bf16

    for h in range(heads):                                       # static unroll
        qT = qkvT[h * hd:(h + 1) * hd, :]                        # (hd, N); scale folded
        kT = qkvT[C + h * hd:C + (h + 1) * hd, :]
        vT = qkvT[2 * C + h * hd:2 * C + (h + 1) * hd, :]

        # scores[i, j] = q_i . k_j  (contract the head dim of both operands)
        s = lax.dot_general(qT, kT, (((0,), (0,)), ((), ())),
                            preferred_element_type=jnp.float32)  # (N, N) f32
        s = s - jnp.max(s, axis=-1, keepdims=True)
        p = jnp.exp(s)
        p = p * pl.reciprocal(jnp.sum(p, axis=-1, keepdims=True),
                              approx=False)                      # exact softmax

        # head output, transposed: (hd, N) = v^T @ p^T
        pv = lax.dot_general(vT, p.astype(jnp.bfloat16),
                             (((1,), (1,)), ((), ())),
                             preferred_element_type=jnp.float32)  # (hd, N) f32

        # no head concat: push straight through folded proj∘conv∘BN weight slice
        acc = acc + jnp.dot(wpct[:, h * hd:(h + 1) * hd],
                            pv.astype(jnp.bfloat16),
                            preferred_element_type=jnp.float32)   # (C, N) f32

    o_ref[0] = (acc + b_ref[...]).astype(o_ref.dtype)            # NCHW-native store


# ----------------------------------------------------------------------------
# Parameter init (deterministic, synthetic — mirrors the module's shapes)
# ----------------------------------------------------------------------------
def init_params(key, dim, num_heads):
    keys = jax.random.split(key, 4)
    p = {}
    p["num_heads"] = num_heads
    # Attention: q Linear(dim, dim, bias=False); kv Linear(dim, 2*dim, bias=False)
    p["wq_t"] = jax.random.normal(keys[0], (dim, dim), jnp.float32) * 0.02
    p["wkv_t"] = jax.random.normal(keys[1], (dim, 2 * dim), jnp.float32) * 0.02
    # proj Linear(dim, dim) with bias (bias init 0 per _init_weights)
    p["wproj_t"] = jax.random.normal(keys[2], (dim, dim), jnp.float32) * 0.02
    p["bproj"] = jnp.zeros((1, dim), jnp.float32)
    # conv_bn_dropout: Conv2d(2*dim, dim, 1) weight (dim, 2*dim), bias (dim,)
    conv_w = jax.random.normal(keys[3], (dim, 2 * dim), jnp.float32) * (
        (2.0 / dim) ** 0.5)
    p["wc_t"] = conv_w[:, :dim].T       # acts on context channels (cat order)
    p["wf_t"] = conv_w[:, dim:].T       # acts on original feature channels
    p["conv_b"] = jnp.zeros((1, dim), jnp.float32)
    # BatchNorm2d(dim), eval mode: gamma=1, beta=0, running stats 0/1, eps=1e-5
    gamma = jnp.ones((dim,), jnp.float32)
    beta = jnp.zeros((dim,), jnp.float32)
    running_mean = jnp.zeros((dim,), jnp.float32)
    running_var = jnp.ones((dim,), jnp.float32)
    eps = 1e-5
    bn_scale = gamma / jnp.sqrt(running_var + eps)
    bn_shift = beta - running_mean * bn_scale
    p["bn_scale"] = bn_scale[None, :]
    p["bn_shift"] = bn_shift[None, :]
    return p


# ----------------------------------------------------------------------------
# BaseOC_Module forward (NCHW in -> NCHW out, no wrapper transposes)
# ----------------------------------------------------------------------------
def base_oc_forward(params, feats_nchw):
    B, C, H, W = feats_nchw.shape
    heads = params["num_heads"]
    hd = C // heads
    scale = hd ** (-0.5)
    N = H * W

    # ---- offline algebraic folding (tiny CxC matmuls, done once at trace) ----
    bn_scale, bn_shift = params["bn_scale"], params["bn_shift"]          # (1, C)
    wq_scaled = params["wq_t"] * scale                                   # fold attn scale
    wqkv = jnp.concatenate([wq_scaled, params["wkv_t"]], axis=1)         # (C, 3C)
    wf = params["wf_t"] * bn_scale                                       # (C, C)
    w_all_t = jnp.concatenate([wqkv, wf], axis=1).T                      # (4C, C)
    wpc_t = ((params["wproj_t"] @ params["wc_t"]) * bn_scale).T          # (C, C)
    bias_col = ((params["bproj"] @ params["wc_t"] + params["conv_b"]) * bn_scale
                + bn_shift).T                                            # (C, 1)

    # NCHW -> (B, C, N): pure reshape, zero HBM traffic (and same on the way out)
    x_cn = feats_nchw.reshape(B, C, N)

    kern = functools.partial(_base_oc_kernel, heads=heads, hd=hd)
    out = pl.pallas_call(
        kern,
        out_shape=jax.ShapeDtypeStruct((B, C, N), jnp.float32),
        grid_spec=pltpu.PrefetchScalarGridSpec(
            num_scalar_prefetch=0,
            grid=(B,),
            in_specs=[
                pl.BlockSpec((1, C, N), lambda b: (b, 0, 0)),     # x (f32; cast in-kernel)
                pl.BlockSpec((4 * C, C), lambda b: (0, 0)),       # W_all^T  (qkv + feats)
                pl.BlockSpec((C, C), lambda b: (0, 0)),           # Wpc^T (folded ctx path)
                pl.BlockSpec((C, 1), lambda b: (0, 0)),           # bias (folded)
            ],
            out_specs=pl.BlockSpec((1, C, N), lambda b: (b, 0, 0)),
        ),
        compiler_params=pltpu.CompilerParams(
            dimension_semantics=("parallel",)),
    )(x_cn,
      w_all_t.astype(jnp.bfloat16),
      wpc_t.astype(jnp.bfloat16),
      bias_col.astype(jnp.float32))

    return out.reshape(B, C, H, W)


# ----------------------------------------------------------------------------
# Pure-JAX f32 reference (exact module semantics, no folding, no bf16)
# ----------------------------------------------------------------------------
def base_oc_reference(params, feats_nchw):
    B, C, H, W = feats_nchw.shape
    heads = params["num_heads"]
    hd = C // heads
    scale = hd ** (-0.5)
    N = H * W
    x = jnp.transpose(feats_nchw, (0, 2, 3, 1)).reshape(B, N, C)
    q = x @ params["wq_t"]
    kv = x @ params["wkv_t"]
    q = q.reshape(B, N, heads, hd).transpose(0, 2, 1, 3)
    kv = kv.reshape(B, N, 2, heads, hd).transpose(2, 0, 3, 1, 4)
    k, v = kv[0], kv[1]
    attn = jnp.einsum("bhqd,bhkd->bhqk", q, k) * scale
    attn = jax.nn.softmax(attn, axis=-1)
    o = jnp.einsum("bhqk,bhkd->bhqd", attn, v)
    o = o.transpose(0, 2, 1, 3).reshape(B, N, C)
    ctx = o @ params["wproj_t"] + params["bproj"]
    y = ctx @ params["wc_t"] + x @ params["wf_t"] + params["conv_b"]
    y = y * params["bn_scale"] + params["bn_shift"]
    return y.reshape(B, H, W, C).transpose(0, 3, 1, 2)


if __name__ == "__main__":
    key = jax.random.PRNGKey(0)
    k_param, k_input = jax.random.split(key)

    B, C, H, W = 2, 32, 8, 8          # in_channels = out_channels = 32
    num_heads = 8                      # dim % num_heads == 0

    params = init_params(k_param, C, num_heads)
    feats = jax.random.normal(k_input, (B, C, H, W), jnp.float32)  # NCHW input

    forward = jax.jit(lambda f: base_oc_forward(params, f))
    out = jax.block_until_ready(forward(feats))

    ref = base_oc_reference(params, feats)
    assert out.shape == (B, C, H, W)
    # bf16 matmul inputs -> relaxed tolerance vs f32 reference
    assert jnp.allclose(out, ref, atol=5e-2, rtol=5e-2), "mismatch vs reference"

    print("KERNEL_OK")
</pallas_src>

<mosaic_0001>
module attributes {stable_mosaic.version = 11 : i64} {
  func.func @_base_oc_kernel(%arg0: i32, %arg1: memref<1x32x64xf32, #tpu.memory_space<vmem>>, %arg2: memref<128x32xbf16, #tpu.memory_space<vmem>>, %arg3: memref<32x32xbf16, #tpu.memory_space<vmem>>, %arg4: memref<32x1xf32, #tpu.memory_space<vmem>>, %arg5: memref<1x32x64xf32, #tpu.memory_space<vmem>>) attributes {dimension_semantics = [#tpu.dimension_semantics<parallel>], iteration_bounds = array<i64: 2>, scalar_prefetch = 0 : i64, scratch_operands = 0 : i64, tpu.core_type = #tpu.core_type<tc>, window_params = [{transform_indices = @transform_0, window_bounds = array<i64: 1, 32, 64>}, {pipeline_mode = #tpu.pipeline_mode<synchronous>, transform_indices = @transform_1, window_bounds = array<i64: 128, 32>}, {pipeline_mode = #tpu.pipeline_mode<synchronous>, transform_indices = @transform_2, window_bounds = array<i64: 32, 32>}, {pipeline_mode = #tpu.pipeline_mode<synchronous>, transform_indices = @transform_3, window_bounds = array<i64: 32, 1>}, {transform_indices = @transform_4, window_bounds = array<i64: 1, 32, 64>}]} {
    %c0 = arith.constant 0 : index
    %c0_0 = arith.constant 0 : index
    %c0_1 = arith.constant 0 : index
    %0 = vector.load %arg1[%c0, %c0_0, %c0_1] : memref<1x32x64xf32, #tpu.memory_space<vmem>>, vector<1x32x64xf32>
    %1 = vector.shape_cast %0 : vector<1x32x64xf32> to vector<32x64xf32>
    %2 = arith.truncf %1 : vector<32x64xf32> to vector<32x64xbf16>
    %c0_2 = arith.constant 0 : index
    %c0_3 = arith.constant 0 : index
    %3 = vector.load %arg2[%c0_2, %c0_3] : memref<128x32xbf16, #tpu.memory_space<vmem>>, vector<128x32xbf16>
    %cst = arith.constant dense<0.000000e+00> : vector<128x64xf32>
    %4 = tpu.matmul %3, %2, %cst {dimension_numbers = #tpu.dot_dimension_numbers<[1], [0], [0], [1], [0, 0, 1, 1], [], []>} : vector<128x32xbf16>, vector<32x64xbf16>, vector<128x64xf32> -> vector<128x64xf32>
    %5 = vector.extract_strided_slice %4 {offsets = [0, 0], sizes = [96, 64], strides = [1, 1]} : vector<128x64xf32> to vector<96x64xf32>
    %6 = arith.truncf %5 : vector<96x64xf32> to vector<96x64xbf16>
    %7 = vector.extract_strided_slice %4 {offsets = [96, 0], sizes = [32, 64], strides = [1, 1]} : vector<128x64xf32> to vector<32x64xf32>
    %c0_4 = arith.constant 0 : index
    %c0_5 = arith.constant 0 : index
    %8 = vector.load %arg3[%c0_4, %c0_5] : memref<32x32xbf16, #tpu.memory_space<vmem>>, vector<32x32xbf16>
    %9 = vector.extract_strided_slice %6 {offsets = [0, 0], sizes = [4, 64], strides = [1, 1]} : vector<96x64xbf16> to vector<4x64xbf16>
    %10 = vector.extract_strided_slice %6 {offsets = [32, 0], sizes = [4, 64], strides = [1, 1]} : vector<96x64xbf16> to vector<4x64xbf16>
    %11 = vector.extract_strided_slice %6 {offsets = [64, 0], sizes = [4, 64], strides = [1, 1]} : vector<96x64xbf16> to vector<4x64xbf16>
    %cst_6 = arith.constant dense<0.000000e+00> : vector<64x64xf32>
    %12 = tpu.matmul %9, %10, %cst_6 {dimension_numbers = #tpu.dot_dimension_numbers<[0], [0], [1], [1], [0, 1, 1, 1], [], []>} : vector<4x64xbf16>, vector<4x64xbf16>, vector<64x64xf32> -> vector<64x64xf32>
    %cst_7 = arith.constant dense<0xFF800000> : vector<64xf32>
    %13 = vector.multi_reduction <maximumf>, %12, %cst_7 [1] : vector<64x64xf32> to vector<64xf32>
    %14 = vector.shape_cast %13 : vector<64xf32> to vector<64x1xf32>
    %15 = vector.broadcast %14 : vector<64x1xf32> to vector<64x64xf32>
    %16 = arith.subf %12, %15 : vector<64x64xf32>
    %17 = math.exp %16 : vector<64x64xf32>
    %cst_8 = arith.constant dense<0.000000e+00> : vector<64xf32>
    %18 = vector.multi_reduction <add>, %17, %cst_8 [1] : vector<64x64xf32> to vector<64xf32>
    %19 = vector.shape_cast %18 : vector<64xf32> to vector<64x1xf32>
    %20 = tpu.reciprocal %19 : vector<64x1xf32> -> vector<64x1xf32>
    %21 = vector.broadcast %20 : vector<64x1xf32> to vector<64x64xf32>
    %22 = arith.mulf %17, %21 : vector<64x64xf32>
    %23 = arith.truncf %22 : vector<64x64xf32> to vector<64x64xbf16>
    %cst_9 = arith.constant dense<0.000000e+00> : vector<4x64xf32>
    %24 = tpu.matmul %11, %23, %cst_9 {dimension_numbers = #tpu.dot_dimension_numbers<[1], [1], [0], [0], [0, 0, 1, 0], [], []>} : vector<4x64xbf16>, vector<64x64xbf16>, vector<4x64xf32> -> vector<4x64xf32>
    %25 = vector.extract_strided_slice %8 {offsets = [0, 0], sizes = [32, 4], strides = [1, 1]} : vector<32x32xbf16> to vector<32x4xbf16>
    %26 = arith.truncf %24 : vector<4x64xf32> to vector<4x64xbf16>
    %cst_10 = arith.constant dense<0.000000e+00> : vector<32x64xf32>
    %27 = tpu.matmul %25, %26, %cst_10 {dimension_numbers = #tpu.dot_dimension_numbers<[1], [0], [0], [1], [0, 0, 1, 1], [], []>} : vector<32x4xbf16>, vector<4x64xbf16>, vector<32x64xf32> -> vector<32x64xf32>
    %28 = arith.addf %7, %27 : vector<32x64xf32>
    %29 = vector.extract_strided_slice %6 {offsets = [4, 0], sizes = [4, 64], strides = [1, 1]} : vector<96x64xbf16> to vector<4x64xbf16>
    %30 = vector.extract_strided_slice %6 {offsets = [36, 0], sizes = [4, 64], strides = [1, 1]} : vector<96x64xbf16> to vector<4x64xbf16>
    %31 = vector.extract_strided_slice %6 {offsets = [68, 0], sizes = [4, 64], strides = [1, 1]} : vector<96x64xbf16> to vector<4x64xbf16>
    %cst_11 = arith.constant dense<0.000000e+00> : vector<64x64xf32>
    %32 = tpu.matmul %29, %30, %cst_11 {dimension_numbers = #tpu.dot_dimension_numbers<[0], [0], [1], [1], [0, 1, 1, 1], [], []>} : vector<4x64xbf16>, vector<4x64xbf16>, vector<64x64xf32> -> vector<64x64xf32>
    %cst_12 = arith.constant dense<0xFF800000> : vector<64xf32>
    %33 = vector.multi_reduction <maximumf>, %32, %cst_12 [1] : vector<64x64xf32> to vector<64xf32>
    %34 = vector.shape_cast %33 : vector<64xf32> to vector<64x1xf32>
    %35 = vector.broadcast %34 : vector<64x1xf32> to vector<64x64xf32>
    %36 = arith.subf %32, %35 : vector<64x64xf32>
    %37 = math.exp %36 : vector<64x64xf32>
    %cst_13 = arith.constant dense<0.000000e+00> : vector<64xf32>
    %38 = vector.multi_reduction <add>, %37, %cst_13 [1] : vector<64x64xf32> to vector<64xf32>
    %39 = vector.shape_cast %38 : vector<64xf32> to vector<64x1xf32>
    %40 = tpu.reciprocal %39 : vector<64x1xf32> -> vector<64x1xf32>
    %41 = vector.broadcast %40 : vector<64x1xf32> to vector<64x64xf32>
    %42 = arith.mulf %37, %41 : vector<64x64xf32>
    %43 = arith.truncf %42 : vector<64x64xf32> to vector<64x64xbf16>
    %cst_14 = arith.constant dense<0.000000e+00> : vector<4x64xf32>
    %44 = tpu.matmul %31, %43, %cst_14 {dimension_numbers = #tpu.dot_dimension_numbers<[1], [1], [0], [0], [0, 0, 1, 0], [], []>} : vector<4x64xbf16>, vector<64x64xbf16>, vector<4x64xf32> -> vector<4x64xf32>
    %45 = vector.extract_strided_slice %8 {offsets = [0, 4], sizes = [32, 4], strides = [1, 1]} : vector<32x32xbf16> to vector<32x4xbf16>
    %46 = arith.truncf %44 : vector<4x64xf32> to vector<4x64xbf16>
    %cst_15 = arith.constant dense<0.000000e+00> : vector<32x64xf32>
    %47 = tpu.matmul %45, %46, %cst_15 {dimension_numbers = #tpu.dot_dimension_numbers<[1], [0], [0], [1], [0, 0, 1, 1], [], []>} : vector<32x4xbf16>, vector<4x64xbf16>, vector<32x64xf32> -> vector<32x64xf32>
    %48 = arith.addf %28, %47 : vector<32x64xf32>
    %49 = vector.extract_strided_slice %6 {offsets = [8, 0], sizes = [4, 64], strides = [1, 1]} : vector<96x64xbf16> to vector<4x64xbf16>
    %50 = vector.extract_strided_slice %6 {offsets = [40, 0], sizes = [4, 64], strides = [1, 1]} : vector<96x64xbf16> to vector<4x64xbf16>
    %51 = vector.extract_strided_slice %6 {offsets = [72, 0], sizes = [4, 64], strides = [1, 1]} : vector<96x64xbf16> to vector<4x64xbf16>
    %cst_16 = arith.constant dense<0.000000e+00> : vector<64x64xf32>
    %52 = tpu.matmul %49, %50, %cst_16 {dimension_numbers = #tpu.dot_dimension_numbers<[0], [0], [1], [1], [0, 1, 1, 1], [], []>} : vector<4x64xbf16>, vector<4x64xbf16>, vector<64x64xf32> -> vector<64x64xf32>
    %cst_17 = arith.constant dense<0xFF800000> : vector<64xf32>
    %53 = vector.multi_reduction <maximumf>, %52, %cst_17 [1] : vector<64x64xf32> to vector<64xf32>
    %54 = vector.shape_cast %53 : vector<64xf32> to vector<64x1xf32>
    %55 = vector.broadcast %54 : vector<64x1xf32> to vector<64x64xf32>
    %56 = arith.subf %52, %55 : vector<64x64xf32>
    %57 = math.exp %56 : vector<64x64xf32>
    %cst_18 = arith.constant dense<0.000000e+00> : vector<64xf32>
    %58 = vector.multi_reduction <add>, %57, %cst_18 [1] : vector<64x64xf32> to vector<64xf32>
    %59 = vector.shape_cast %58 : vector<64xf32> to vector<64x1xf32>
    %60 = tpu.reciprocal %59 : vector<64x1xf32> -> vector<64x1xf32>
    %61 = vector.broadcast %60 : vector<64x1xf32> to vector<64x64xf32>
    %62 = arith.mulf %57, %61 : vector<64x64xf32>
    %63 = arith.truncf %62 : vector<64x64xf32> to vector<64x64xbf16>
    %cst_19 = arith.constant dense<0.000000e+00> : vector<4x64xf32>
    %64 = tpu.matmul %51, %63, %cst_19 {dimension_numbers = #tpu.dot_dimension_numbers<[1], [1], [0], [0], [0, 0, 1, 0], [], []>} : vector<4x64xbf16>, vector<64x64xbf16>, vector<4x64xf32> -> vector<4x64xf32>
    %65 = vector.extract_strided_slice %8 {offsets = [0, 8], sizes = [32, 4], strides = [1, 1]} : vector<32x32xbf16> to vector<32x4xbf16>
    %66 = arith.truncf %64 : vector<4x64xf32> to vector<4x64xbf16>
    %cst_20 = arith.constant dense<0.000000e+00> : vector<32x64xf32>
    %67 = tpu.matmul %65, %66, %cst_20 {dimension_numbers = #tpu.dot_dimension_numbers<[1], [0], [0], [1], [0, 0, 1, 1], [], []>} : vector<32x4xbf16>, vector<4x64xbf16>, vector<32x64xf32> -> vector<32x64xf32>
    %68 = arith.addf %48, %67 : vector<32x64xf32>
    %69 = vector.extract_strided_slice %6 {offsets = [12, 0], sizes = [4, 64], strides = [1, 1]} : vector<96x64xbf16> to vector<4x64xbf16>
    %70 = vector.extract_strided_slice %6 {offsets = [44, 0], sizes = [4, 64], strides = [1, 1]} : vector<96x64xbf16> to vector<4x64xbf16>
    %71 = vector.extract_strided_slice %6 {offsets = [76, 0], sizes = [4, 64], strides = [1, 1]} : vector<96x64xbf16> to vector<4x64xbf16>
    %cst_21 = arith.constant dense<0.000000e+00> : vector<64x64xf32>
    %72 = tpu.matmul %69, %70, %cst_21 {dimension_numbers = #tpu.dot_dimension_numbers<[0], [0], [1], [1], [0, 1, 1, 1], [], []>} : vector<4x64xbf16>, vector<4x64xbf16>, vector<64x64xf32> -> vector<64x64xf32>
    %cst_22 = arith.constant dense<0xFF800000> : vector<64xf32>
    %73 = vector.multi_reduction <maximumf>, %72, %cst_22 [1] : vector<64x64xf32> to vector<64xf32>
    %74 = vector.shape_cast %73 : vector<64xf32> to vector<64x1xf32>
    %75 = vector.broadcast %74 : vector<64x1xf32> to vector<64x64xf32>
    %76 = arith.subf %72, %75 : vector<64x64xf32>
    %77 = math.exp %76 : vector<64x64xf32>
    %cst_23 = arith.constant dense<0.000000e+00> : vector<64xf32>
    %78 = vector.multi_reduction <add>, %77, %cst_23 [1] : vector<64x64xf32> to vector<64xf32>
    %79 = vector.shape_cast %78 : vector<64xf32> to vector<64x1xf32>
    %80 = tpu.reciprocal %79 : vector<64x1xf32> -> vector<64x1xf32>
    %81 = vector.broadcast %80 : vector<64x1xf32> to vector<64x64xf32>
    %82 = arith.mulf %77, %81 : vector<64x64xf32>
    %83 = arith.truncf %82 : vector<64x64xf32> to vector<64x64xbf16>
    %cst_24 = arith.constant dense<0.000000e+00> : vector<4x64xf32>
    %84 = tpu.matmul %71, %83, %cst_24 {dimension_numbers = #tpu.dot_dimension_numbers<[1], [1], [0], [0], [0, 0, 1, 0], [], []>} : vector<4x64xbf16>, vector<64x64xbf16>, vector<4x64xf32> -> vector<4x64xf32>
    %85 = vector.extract_strided_slice %8 {offsets = [0, 12], sizes = [32, 4], strides = [1, 1]} : vector<32x32xbf16> to vector<32x4xbf16>
    %86 = arith.truncf %84 : vector<4x64xf32> to vector<4x64xbf16>
    %cst_25 = arith.constant dense<0.000000e+00> : vector<32x64xf32>
    %87 = tpu.matmul %85, %86, %cst_25 {dimension_numbers = #tpu.dot_dimension_numbers<[1], [0], [0], [1], [0, 0, 1, 1], [], []>} : vector<32x4xbf16>, vector<4x64xbf16>, vector<32x64xf32> -> vector<32x64xf32>
    %88 = arith.addf %68, %87 : vector<32x64xf32>
    %89 = vector.extract_strided_slice %6 {offsets = [16, 0], sizes = [4, 64], strides = [1, 1]} : vector<96x64xbf16> to vector<4x64xbf16>
    %90 = vector.extract_strided_slice %6 {offsets = [48, 0], sizes = [4, 64], strides = [1, 1]} : vector<96x64xbf16> to vector<4x64xbf16>
    %91 = vector.extract_strided_slice %6 {offsets = [80, 0], sizes = [4, 64], strides = [1, 1]} : vector<96x64xbf16> to vector<4x64xbf16>
    %cst_26 = arith.constant dense<0.000000e+00> : vector<64x64xf32>
    %92 = tpu.matmul %89, %90, %cst_26 {dimension_numbers = #tpu.dot_dimension_numbers<[0], [0], [1], [1], [0, 1, 1, 1], [], []>} : vector<4x64xbf16>, vector<4x64xbf16>, vector<64x64xf32> -> vector<64x64xf32>
    %cst_27 = arith.constant dense<0xFF800000> : vector<64xf32>
    %93 = vector.multi_reduction <maximumf>, %92, %cst_27 [1] : vector<64x64xf32> to vector<64xf32>
    %94 = vector.shape_cast %93 : vector<64xf32> to vector<64x1xf32>
    %95 = vector.broadcast %94 : vector<64x1xf32> to vector<64x64xf32>
    %96 = arith.subf %92, %95 : vector<64x64xf32>
    %97 = math.exp %96 : vector<64x64xf32>
    %cst_28 = arith.constant dense<0.000000e+00> : vector<64xf32>
    %98 = vector.multi_reduction <add>, %97, %cst_28 [1] : vector<64x64xf32> to vector<64xf32>
    %99 = vector.shape_cast %98 : vector<64xf32> to vector<64x1xf32>
    %100 = tpu.reciprocal %99 : vector<64x1xf32> -> vector<64x1xf32>
    %101 = vector.broadcast %100 : vector<64x1xf32> to vector<64x64xf32>
    %102 = arith.mulf %97, %101 : vector<64x64xf32>
    %103 = arith.truncf %102 : vector<64x64xf32> to vector<64x64xbf16>
    %cst_29 = arith.constant dense<0.000000e+00> : vector<4x64xf32>
    %104 = tpu.matmul %91, %103, %cst_29 {dimension_numbers = #tpu.dot_dimension_numbers<[1], [1], [0], [0], [0, 0, 1, 0], [], []>} : vector<4x64xbf16>, vector<64x64xbf16>, vector<4x64xf32> -> vector<4x64xf32>
    %105 = vector.extract_strided_slice %8 {offsets = [0, 16], sizes = [32, 4], strides = [1, 1]} : vector<32x32xbf16> to vector<32x4xbf16>
    %106 = arith.truncf %104 : vector<4x64xf32> to vector<4x64xbf16>
    %cst_30 = arith.constant dense<0.000000e+00> : vector<32x64xf32>
    %107 = tpu.matmul %105, %106, %cst_30 {dimension_numbers = #tpu.dot_dimension_numbers<[1], [0], [0], [1], [0, 0, 1, 1], [], []>} : vector<32x4xbf16>, vector<4x64xbf16>, vector<32x64xf32> -> vector<32x64xf32>
    %108 = arith.addf %88, %107 : vector<32x64xf32>
    %109 = vector.extract_strided_slice %6 {offsets = [20, 0], sizes = [4, 64], strides = [1, 1]} : vector<96x64xbf16> to vector<4x64xbf16>
    %110 = vector.extract_strided_slice %6 {offsets = [52, 0], sizes = [4, 64], strides = [1, 1]} : vector<96x64xbf16> to vector<4x64xbf16>
    %111 = vector.extract_strided_slice %6 {offsets = [84, 0], sizes = [4, 64], strides = [1, 1]} : vector<96x64xbf16> to vector<4x64xbf16>
    %cst_31 = arith.constant dense<0.000000e+00> : vector<64x64xf32>
    %112 = tpu.matmul %109, %110, %cst_31 {dimension_numbers = #tpu.dot_dimension_numbers<[0], [0], [1], [1], [0, 1, 1, 1], [], []>} : vector<4x64xbf16>, vector<4x64xbf16>, vector<64x64xf32> -> vector<64x64xf32>
    %cst_32 = arith.constant dense<0xFF800000> : vector<64xf32>
    %113 = vector.multi_reduction <maximumf>, %112, %cst_32 [1] : vector<64x64xf32> to vector<64xf32>
    %114 = vector.shape_cast %113 : vector<64xf32> to vector<64x1xf32>
    %115 = vector.broadcast %114 : vector<64x1xf32> to vector<64x64xf32>
    %116 = arith.subf %112, %115 : vector<64x64xf32>
    %117 = math.exp %116 : vector<64x64xf32>
    %cst_33 = arith.constant dense<0.000000e+00> : vector<64xf32>
    %118 = vector.multi_reduction <add>, %117, %cst_33 [1] : vector<64x64xf32> to vector<64xf32>
    %119 = vector.shape_cast %118 : vector<64xf32> to vector<64x1xf32>
    %120 = tpu.reciprocal %119 : vector<64x1xf32> -> vector<64x1xf32>
    %121 = vector.broadcast %120 : vector<64x1xf32> to vector<64x64xf32>
    %122 = arith.mulf %117, %121 : vector<64x64xf32>
    %123 = arith.truncf %122 : vector<64x64xf32> to vector<64x64xbf16>
    %cst_34 = arith.constant dense<0.000000e+00> : vector<4x64xf32>
    %124 = tpu.matmul %111, %123, %cst_34 {dimension_numbers = #tpu.dot_dimension_numbers<[1], [1], [0], [0], [0, 0, 1, 0], [], []>} : vector<4x64xbf16>, vector<64x64xbf16>, vector<4x64xf32> -> vector<4x64xf32>
    %125 = vector.extract_strided_slice %8 {offsets = [0, 20], sizes = [32, 4], strides = [1, 1]} : vector<32x32xbf16> to vector<32x4xbf16>
    %126 = arith.truncf %124 : vector<4x64xf32> to vector<4x64xbf16>
    %cst_35 = arith.constant dense<0.000000e+00> : vector<32x64xf32>
    %127 = tpu.matmul %125, %126, %cst_35 {dimension_numbers = #tpu.dot_dimension_numbers<[1], [0], [0], [1], [0, 0, 1, 1], [], []>} : vector<32x4xbf16>, vector<4x64xbf16>, vector<32x64xf32> -> vector<32x64xf32>
    %128 = arith.addf %108, %127 : vector<32x64xf32>
    %129 = vector.extract_strided_slice %6 {offsets = [24, 0], sizes = [4, 64], strides = [1, 1]} : vector<96x64xbf16> to vector<4x64xbf16>
    %130 = vector.extract_strided_slice %6 {offsets = [56, 0], sizes = [4, 64], strides = [1, 1]} : vector<96x64xbf16> to vector<4x64xbf16>
    %131 = vector.extract_strided_slice %6 {offsets = [88, 0], sizes = [4, 64], strides = [1, 1]} : vector<96x64xbf16> to vector<4x64xbf16>
    %cst_36 = arith.constant dense<0.000000e+00> : vector<64x64xf32>
    %132 = tpu.matmul %129, %130, %cst_36 {dimension_numbers = #tpu.dot_dimension_numbers<[0], [0], [1], [1], [0, 1, 1, 1], [], []>} : vector<4x64xbf16>, vector<4x64xbf16>, vector<64x64xf32> -> vector<64x64xf32>
    %cst_37 = arith.constant dense<0xFF800000> : vector<64xf32>
    %133 = vector.multi_reduction <maximumf>, %132, %cst_37 [1] : vector<64x64xf32> to vector<64xf32>
    %134 = vector.shape_cast %133 : vector<64xf32> to vector<64x1xf32>
    %135 = vector.broadcast %134 : vector<64x1xf32> to vector<64x64xf32>
    %136 = arith.subf %132, %135 : vector<64x64xf32>
    %137 = math.exp %136 : vector<64x64xf32>
    %cst_38 = arith.constant dense<0.000000e+00> : vector<64xf32>
    %138 = vector.multi_reduction <add>, %137, %cst_38 [1] : vector<64x64xf32> to vector<64xf32>
    %139 = vector.shape_cast %138 : vector<64xf32> to vector<64x1xf32>
    %140 = tpu.reciprocal %139 : vector<64x1xf32> -> vector<64x1xf32>
    %141 = vector.broadcast %140 : vector<64x1xf32> to vector<64x64xf32>
    %142 = arith.mulf %137, %141 : vector<64x64xf32>
    %143 = arith.truncf %142 : vector<64x64xf32> to vector<64x64xbf16>
    %cst_39 = arith.constant dense<0.000000e+00> : vector<4x64xf32>
    %144 = tpu.matmul %131, %143, %cst_39 {dimension_numbers = #tpu.dot_dimension_numbers<[1], [1], [0], [0], [0, 0, 1, 0], [], []>} : vector<4x64xbf16>, vector<64x64xbf16>, vector<4x64xf32> -> vector<4x64xf32>
    %145 = vector.extract_strided_slice %8 {offsets = [0, 24], sizes = [32, 4], strides = [1, 1]} : vector<32x32xbf16> to vector<32x4xbf16>
    %146 = arith.truncf %144 : vector<4x64xf32> to vector<4x64xbf16>
    %cst_40 = arith.constant dense<0.000000e+00> : vector<32x64xf32>
    %147 = tpu.matmul %145, %146, %cst_40 {dimension_numbers = #tpu.dot_dimension_numbers<[1], [0], [0], [1], [0, 0, 1, 1], [], []>} : vector<32x4xbf16>, vector<4x64xbf16>, vector<32x64xf32> -> vector<32x64xf32>
    %148 = arith.addf %128, %147 : vector<32x64xf32>
    %149 = vector.extract_strided_slice %6 {offsets = [28, 0], sizes = [4, 64], strides = [1, 1]} : vector<96x64xbf16> to vector<4x64xbf16>
    %150 = vector.extract_strided_slice %6 {offsets = [60, 0], sizes = [4, 64], strides = [1, 1]} : vector<96x64xbf16> to vector<4x64xbf16>
    %151 = vector.extract_strided_slice %6 {offsets = [92, 0], sizes = [4, 64], strides = [1, 1]} : vector<96x64xbf16> to vector<4x64xbf16>
    %cst_41 = arith.constant dense<0.000000e+00> : vector<64x64xf32>
    %152 = tpu.matmul %149, %150, %cst_41 {dimension_numbers = #tpu.dot_dimension_numbers<[0], [0], [1], [1], [0, 1, 1, 1], [], []>} : vector<4x64xbf16>, vector<4x64xbf16>, vector<64x64xf32> -> vector<64x64xf32>
    %cst_42 = arith.constant dense<0xFF800000> : vector<64xf32>
    %153 = vector.multi_reduction <maximumf>, %152, %cst_42 [1] : vector<64x64xf32> to vector<64xf32>
    %154 = vector.shape_cast %153 : vector<64xf32> to vector<64x1xf32>
    %155 = vector.broadcast %154 : vector<64x1xf32> to vector<64x64xf32>
    %156 = arith.subf %152, %155 : vector<64x64xf32>
    %157 = math.exp %156 : vector<64x64xf32>
    %cst_43 = arith.constant dense<0.000000e+00> : vector<64xf32>
    %158 = vector.multi_reduction <add>, %157, %cst_43 [1] : vector<64x64xf32> to vector<64xf32>
    %159 = vector.shape_cast %158 : vector<64xf32> to vector<64x1xf32>
    %160 = tpu.reciprocal %159 : vector<64x1xf32> -> vector<64x1xf32>
    %161 = vector.broadcast %160 : vector<64x1xf32> to vector<64x64xf32>
    %162 = arith.mulf %157, %161 : vector<64x64xf32>
    %163 = arith.truncf %162 : vector<64x64xf32> to vector<64x64xbf16>
    %cst_44 = arith.constant dense<0.000000e+00> : vector<4x64xf32>
    %164 = tpu.matmul %151, %163, %cst_44 {dimension_numbers = #tpu.dot_dimension_numbers<[1], [1], [0], [0], [0, 0, 1, 0], [], []>} : vector<4x64xbf16>, vector<64x64xbf16>, vector<4x64xf32> -> vector<4x64xf32>
    %165 = vector.extract_strided_slice %8 {offsets = [0, 28], sizes = [32, 4], strides = [1, 1]} : vector<32x32xbf16> to vector<32x4xbf16>
    %166 = arith.truncf %164 : vector<4x64xf32> to vector<4x64xbf16>
    %cst_45 = arith.constant dense<0.000000e+00> : vector<32x64xf32>
    %167 = tpu.matmul %165, %166, %cst_45 {dimension_numbers = #tpu.dot_dimension_numbers<[1], [0], [0], [1], [0, 0, 1, 1], [], []>} : vector<32x4xbf16>, vector<4x64xbf16>, vector<32x64xf32> -> vector<32x64xf32>
    %168 = arith.addf %148, %167 : vector<32x64xf32>
    %c0_46 = arith.constant 0 : index
    %c0_47 = arith.constant 0 : index
    %169 = vector.load %arg4[%c0_46, %c0_47] : memref<32x1xf32, #tpu.memory_space<vmem>>, vector<32x1xf32>
    %170 = vector.broadcast %169 : vector<32x1xf32> to vector<32x64xf32>
    %171 = arith.addf %168, %170 : vector<32x64xf32>
    %c0_48 = arith.constant 0 : index
    %c0_49 = arith.constant 0 : index
    %c0_50 = arith.constant 0 : index
    %172 = vector.load %arg5[%c0_48, %c0_49, %c0_50] : memref<1x32x64xf32, #tpu.memory_space<vmem>>, vector<1x32x64xf32>
    %173 = vector.shape_cast %172 : vector<1x32x64xf32> to vector<32x64xf32>
    %174 = vector.shape_cast %171 : vector<32x64xf32> to vector<1x32x64xf32>
    tpu.vector_store %arg5[%c0_48, %c0_49, %c0_50], %174 {strides = array<i32>} : memref<1x32x64xf32, #tpu.memory_space<vmem>>, vector<1x32x64xf32>,
    return
  }
  func.func @transform_0(%arg0: i32) -> (i32, i32, i32) {
    %c0_i32 = arith.constant 0 : i32
    %c0_i32_0 = arith.constant 0 : i32
    %c0_i32_1 = arith.constant 0 : i32
    return %arg0, %c0_i32, %c0_i32_0 : i32, i32, i32
  }
  func.func @transform_1(%arg0: i32) -> (i32, i32) {
    %c0_i32 = arith.constant 0 : i32
    %c0_i32_0 = arith.constant 0 : i32
    %c0_i32_1 = arith.constant 0 : i32
    return %c0_i32, %c0_i32_0 : i32, i32
  }
  func.func @transform_2(%arg0: i32) -> (i32, i32) {
    %c0_i32 = arith.constant 0 : i32
    %c0_i32_0 = arith.constant 0 : i32
    %c0_i32_1 = arith.constant 0 : i32
    return %c0_i32, %c0_i32_0 : i32, i32
  }
  func.func @transform_3(%arg0: i32) -> (i32, i32) {
    %c0_i32 = arith.constant 0 : i32
    %c0_i32_0 = arith.constant 0 : i32
    %c0_i32_1 = arith.constant 0 : i32
    return %c0_i32, %c0_i32_0 : i32, i32
  }
  func.func @transform_4(%arg0: i32) -> (i32, i32, i32) {
    %c0_i32 = arith.constant 0 : i32
    %c0_i32_0 = arith.constant 0 : i32
    %c0_i32_1 = arith.constant 0 : i32
    return %arg0, %c0_i32, %c0_i32_0 : i32, i32, i32
  }
}

</mosaic_0001>

<llo_original>
// kernel: _lambda_.1
$region0: #{_lambda_.1}
  #allocation0 [shape = 'u32[]', space=smem, size = 0x4, offset = 0x4, fixed_abs, tag = 'smem constant byte address 0x4 - core index']
  #allocation1 [shape = 'u32[144,128]{1,0:T(1,128)}', space=vmem, size = 0x12000, scoped, tag = 'internal scratch']
  %s0 = inlined_call_operand.vmem [shape: f32[2,32,64], index: 0, kind: input, shape index: {}]
  %s1 = inlined_call_operand.vmem [shape: bf16[128,32], index: 1, kind: input, shape index: {}]
  %s2 = inlined_call_operand.vmem [shape: bf16[32,32], index: 2, kind: input, shape index: {}]
  %s3 = inlined_call_operand.vmem [shape: f32[32,1], index: 3, kind: input, shape index: {}]
  %s4 = inlined_call_operand.vmem [shape: f32[2,32,64], index: 4, kind: output, shape index: {}]
  %s5 = sld [smem:[#allocation0]]
  $region49: #{_lambda_.1} parent=0
    _
  %s7 = ssub.s32 1, %s5
  %s8 = scalar_select 0, %s7, %s5
  loop: start=0, step=1, limit=4
  $region2: #{_lambda_.1} parent=0 // loop_pre_header
    _
  $region3: #{_lambda_.1} parent=0 // loop_header
    %s10 = sphi 0, %s14
    %p11 = scmp.ge.s32.totalorder %s10, 4
    %s20 = sphi 0, %s22
    %s23 = sphi 0, %s20
    %s24 = sphi 0, %s23
    %s40 = sphi 0, %s24
    %s44 = sphi 0, %s44
    %s46 = sphi 0, %s44
    %s47 = sphi 0, %s46
    %s61 = sphi 0, %s47
    %s65 = sphi 0, %s65
    %s67 = sphi 0, %s65
    %s68 = sphi 0, %s67
    %s82 = sphi 0, %s68
    %s86 = sphi 0, %s86
    %s88 = sphi 0, %s86
    %s89 = sphi 0, %s88
    %s103 = sphi 0, %s89
    %s109 = sphi 0, %s111
    %s112 = sphi 0, %s109
    %s113 = sphi 0, %s112
    %s129 = sphi 0, %s113
  $region4: #{_lambda_.1} parent=0 // loop_header_branch
    %13 = sbr.rel (%p11) target = $region8
  $region5: #{_lambda_.1} parent=0 // loop_body
    %s15 = ssub.s32 %s10, 1
    %s16 = ssub.s32 %s10, 2
    %s17 = sadd.s32 %s10, 1
    %s18 = ssub.s32 %s10, %s17
    %p19 = scmp.eq.s32.totalorder %s18, 0
    %s21 = sadd.s32 %s20, 1
    %s22 = scalar_select %p19, %s20, %s21
    %p25 = pneg %p19
    %p26 = scmp.eq.s32.totalorder %s10, 1
    %p27 = por %p25, %p26
    %p28 = scmp.ne.s32.totalorder %s20, %s23
    %p29 = scmp.eq.s32.totalorder %s10, 0
    %p30 = por %p28, %p29
    %p31 = scmp.ne.s32.totalorder %s20, %s23
    %p32 = scmp.eq.s32.totalorder %s15, 1
    %p33 = por %p31, %p32
    %p34 = scmp.ne.s32.totalorder %s23, %s24
    %p35 = scmp.eq.s32.totalorder %s15, 0
    %p36 = por %p34, %p35
    %p37 = scmp.ne.s32.totalorder %s23, %s24
    %p38 = scmp.eq.s32.totalorder %s16, 1
    %p39 = por %p37, %p38
    %p41 = scmp.ne.s32.totalorder %s24, %s40
    %p42 = scmp.eq.s32.totalorder %s16, 0
    %p43 = por %p41, %p42
    %s45 = sadd.s32 %s44, 1
    %p48 = scmp.eq.s32.totalorder %s10, 1
    %p49 = scmp.ne.s32.totalorder %s44, %s46
    %p50 = scmp.eq.s32.totalorder %s10, 0
    %p51 = por %p49, %p50
    %p52 = scmp.ne.s32.totalorder %s44, %s46
    %p53 = scmp.eq.s32.totalorder %s15, 1
    %p54 = por %p52, %p53
    %p55 = scmp.ne.s32.totalorder %s46, %s47
    %p56 = scmp.eq.s32.totalorder %s15, 0
    %p57 = por %p55, %p56
    %p58 = scmp.ne.s32.totalorder %s46, %s47
    %p59 = scmp.eq.s32.totalorder %s16, 1
    %p60 = por %p58, %p59
    %p62 = scmp.ne.s32.totalorder %s47, %s61
    %p63 = scmp.eq.s32.totalorder %s16, 0
    %p64 = por %p62, %p63
    %s66 = sadd.s32 %s65, 1
    %p69 = scmp.eq.s32.totalorder %s10, 1
    %p70 = scmp.ne.s32.totalorder %s65, %s67
    %p71 = scmp.eq.s32.totalorder %s10, 0
    %p72 = por %p70, %p71
    %p73 = scmp.ne.s32.totalorder %s65, %s67
    %p74 = scmp.eq.s32.totalorder %s15, 1
    %p75 = por %p73, %p74
    %p76 = scmp.ne.s32.totalorder %s67, %s68
    %p77 = scmp.eq.s32.totalorder %s15, 0
    %p78 = por %p76, %p77
    %p79 = scmp.ne.s32.totalorder %s67, %s68
    %p80 = scmp.eq.s32.totalorder %s16, 1
    %p81 = por %p79, %p80
    %p83 = scmp.ne.s32.totalorder %s68, %s82
    %p84 = scmp.eq.s32.totalorder %s16, 0
    %p85 = por %p83, %p84
    %s87 = sadd.s32 %s86, 1
    %p90 = scmp.eq.s32.totalorder %s10, 1
    %p91 = scmp.ne.s32.totalorder %s86, %s88
    %p92 = scmp.eq.s32.totalorder %s10, 0
    %p93 = por %p91, %p92
    %p94 = scmp.ne.s32.totalorder %s86, %s88
    %p95 = scmp.eq.s32.totalorder %s15, 1
    %p96 = por %p94, %p95
    %p97 = scmp.ne.s32.totalorder %s88, %s89
    %p98 = scmp.eq.s32.totalorder %s15, 0
    %p99 = por %p97, %p98
    %p100 = scmp.ne.s32.totalorder %s88, %s89
    %p101 = scmp.eq.s32.totalorder %s16, 1
    %p102 = por %p100, %p101
    %p104 = scmp.ne.s32.totalorder %s89, %s103
    %p105 = scmp.eq.s32.totalorder %s16, 0
    %p106 = por %p104, %p105
    %s107 = ssub.s32 %s10, %s17
    %p108 = scmp.eq.s32.totalorder %s107, 0
    %s110 = sadd.s32 %s109, 1
    %s111 = scalar_select %p108, %s109, %s110
    %p114 = pneg %p108
    %p115 = scmp.eq.s32.totalorder %s10, 1
    %p116 = por %p114, %p115
    %p117 = scmp.ne.s32.totalorder %s109, %s112
    %p118 = scmp.eq.s32.totalorder %s10, 0
    %p119 = por %p117, %p118
    %p120 = scmp.ne.s32.totalorder %s109, %s112
    %p121 = scmp.eq.s32.totalorder %s15, 1
    %p122 = por %p120, %p121
    %p123 = scmp.ne.s32.totalorder %s112, %s113
    %p124 = scmp.eq.s32.totalorder %s15, 0
    %p125 = por %p123, %p124
    %p126 = scmp.ne.s32.totalorder %s112, %s113
    %p127 = scmp.eq.s32.totalorder %s16, 1
    %p128 = por %p126, %p127
    %p130 = scmp.ne.s32.totalorder %s113, %s129
    %p131 = scmp.eq.s32.totalorder %s16, 0
    %p132 = por %p130, %p131
    %p133 = scmp.le.s32.totalorder 1, %s10
    %p134 = scmp.lt.s32.totalorder %s10, 3
    %p135 = pnand %p133, %p134
    %p136 = pneg %p135
    // Predicated region
    $region9: #{_lambda_.1} parent=5 // pred_check
      _
    $region10: #{_lambda_.1} parent=5 // pred_check_branch
      %138 = sbr.rel (%p135) target = $region12
    $region11: #{_lambda_.1} parent=5 // pred_region
      %s139 = ssub.s32 %s10, 1
      // Predicated region
      $region13: #{_lambda_.1} parent=11 // pred_check
        %p140 = pneg %p57
      $region14: #{_lambda_.1} parent=11 // pred_check_branch
        %142 = sbr.rel (%p140) target = $region16
      $region15: #{_lambda_.1} parent=11 // pred_region
        _
      $region16: #{_lambda_.1} parent=11 // pred_fallthru
        _
      // Predicated region
      $region17: #{_lambda_.1} parent=11 // pred_check
        %p143 = pneg %p78
      $region18: #{_lambda_.1} parent=11 // pred_check_branch
        %145 = sbr.rel (%p143) target = $region20
      $region19: #{_lambda_.1} parent=11 // pred_region
        _
      $region20: #{_lambda_.1} parent=11 // pred_fallthru
        _
      // Predicated region
      $region21: #{_lambda_.1} parent=11 // pred_check
        %p146 = pneg %p99
      $region22: #{_lambda_.1} parent=11 // pred_check_branch
        %148 = sbr.rel (%p146) target = $region24
      $region23: #{_lambda_.1} parent=11 // pred_region
        _
      $region24: #{_lambda_.1} parent=11 // pred_fallthru
        _
    $region12: #{_lambda_.1} parent=5 // pred_fallthru
      _
    %p149 = scmp.lt.s32.totalorder %s10, 2
    // Predicated region
    $region25: #{_lambda_.1} parent=5 // pred_check
      %p150 = pneg %p149
    $region26: #{_lambda_.1} parent=5 // pred_check_branch
      %152 = sbr.rel (%p150) target = $region28
    $region27: #{_lambda_.1} parent=5 // pred_region
      // Predicated region
      $region29: #{_lambda_.1} parent=27 // pred_check
        %p153 = pneg %p30
      $region30: #{_lambda_.1} parent=27 // pred_check_branch
        %155 = sbr.rel (%p153) target = $region32
      $region31: #{_lambda_.1} parent=27 // pred_region
        %p156 = scmp.lt.s32.totalorder %s10, 1
        %s157 = scalar_select %p156, %s10, 1
        %s158 = smul.addr %s157, 4
        %s159 = smul.addr %s158, 8
        %s160 = scalar_lea.vmem %s0, %s159
      $region32: #{_lambda_.1} parent=27 // pred_fallthru
        _
    $region28: #{_lambda_.1} parent=5 // pred_fallthru
      _
    %p161 = scmp.le.s32.totalorder 1, %s10
    %p162 = scmp.lt.s32.totalorder %s10, 3
    %p163 = pnand %p161, %p162
    %p164 = pneg %p163
    // Predicated region
    $region33: #{_lambda_.1} parent=5 // pred_check
      _
    $region34: #{_lambda_.1} parent=5 // pred_check_branch
      %166 = sbr.rel (%p163) target = $region36
    $region35: #{_lambda_.1} parent=5 // pred_region
      %s167 = ssub.s32 %s10, 1
      %p168 = scmp.lt.s32.totalorder %s15, 1
      %s169 = scalar_select %p168, %s15, 1
      %s170 = smul.addr %s169, 4
      %s171 = smul.addr %s170, 8
      %s172 = scalar_lea.vmem %s0, %s171
      %p173 = pneg %p36
      %p174 = pneg %p33
      %p175 = pneg %p57
      %p176 = pneg %p54
      %p177 = pneg %p78
      %p178 = pneg %p75
      %p179 = pneg %p99
      %p180 = pneg %p96
      %p181 = pneg %p125
      %p182 = pneg %p122
      %p183 = scmp.lt.s32.totalorder %s15, 1
      %s184 = scalar_select %p183, %s15, 1
      %s185 = smul.addr %s184, 4
      %s186 = smul.addr %s185, 8
      %s187 = scalar_lea.vmem %s4, %s186
      %p188 = scmp.lt.s32.totalorder %s15, 1
      %s189 = scalar_select %p188, %s15, 1
      %s190 = smul.addr %s189, 4
      %s191 = smul.addr %s190, 8
      %s192 = scalar_lea.vmem %s0, %s191
      %p193 = scmp.lt.s32.totalorder %s15, 1
      %s194 = scalar_select %p193, %s15, 1
      %s195 = smul.addr %s194, 4
      %s196 = smul.addr %s195, 8
      %s197 = scalar_lea.vmem %s4, %s196
      %v199 = vld [vmem:[%s192] sm:$0xff]
      %v200 = vld [vmem:[%s192 + $0x8] sm:$0xff]
      %v201 = vld [vmem:[%s192 + $0x10] sm:$0xff]
      %v202 = vld [vmem:[%s192 + $0x18] sm:$0xff]
      %v203 = vpack.c.bf16 %v200, %v199
      %v204 = vpack.c.bf16 %v202, %v201
      %v205 = vld [vmem:[%s1] sm:$0xf]
      %v206 = vld [vmem:[%s1 + $0x4] sm:$0xf]
      %v207 = vld [vmem:[%s1 + $0x8] sm:$0xf]
      %v208 = vld [vmem:[%s1 + $0xc] sm:$0xf]
      %v209 = vld [vmem:[%s1 + $0x10] sm:$0xf]
      %v210 = vld [vmem:[%s1 + $0x14] sm:$0xf]
      %v211 = vld [vmem:[%s1 + $0x18] sm:$0xf]
      %v212 = vld [vmem:[%s1 + $0x1c] sm:$0xf]
      %v213 = vld [vmem:[%s1 + $0x20] sm:$0xf]
      %v214 = vld [vmem:[%s1 + $0x24] sm:$0xf]
      %v215 = vld [vmem:[%s1 + $0x28] sm:$0xf]
      %v216 = vld [vmem:[%s1 + $0x2c] sm:$0xf]
      %v217 = vld [vmem:[%s1 + $0x30] sm:$0xf]
      %v218 = vld [vmem:[%s1 + $0x34] sm:$0xf]
      %v219 = vld [vmem:[%s1 + $0x38] sm:$0xf]
      %v220 = vld [vmem:[%s1 + $0x3c] sm:$0xf]
      %v237 = vunpack.c.l.b16 %v205
      %v238 = vunpack.c.l.b16 %v206
      %v239 = vunpack.c.l.b16 %v207
      %v240 = vunpack.c.l.b16 %v208
      %v241 = vunpack.c.l.b16 %v209
      %v242 = vunpack.c.l.b16 %v210
      %v243 = vunpack.c.l.b16 %v211
      %v244 = vunpack.c.l.b16 %v212
      %v245 = vunpack.c.l.b16 %v213
      %v246 = vunpack.c.l.b16 %v214
      %v247 = vunpack.c.l.b16 %v215
      %v248 = vunpack.c.l.b16 %v216
      %v249 = vunpack.c.l.b16 %v217
      %v250 = vunpack.c.l.b16 %v218
      %v251 = vunpack.c.l.b16 %v219
      %v252 = vunpack.c.l.b16 %v220
      %v253 = vpack.c.b16 %v238, %v237
      %v254 = vpack.c.b16 %v240, %v239
      %v255 = vpack.c.b16 %v242, %v241
      %v256 = vpack.c.b16 %v244, %v243
      %v257 = vpack.c.b16 %v246, %v245
      %v258 = vpack.c.b16 %v248, %v247
      %v259 = vpack.c.b16 %v250, %v249
      %v260 = vpack.c.b16 %v252, %v251
      %vm261 = vcmask 261120
      %v263 = vsel %vm261, %v253, 0
      %v266 = vsel %vm261, %v254, 0
      %v269 = vsel %vm261, %v255, 0
      %v272 = vsel %vm261, %v256, 0
      %v275 = vsel %vm261, %v257, 0
      %v278 = vsel %vm261, %v258, 0
      %v281 = vsel %vm261, %v259, 0
      %v284 = vsel %vm261, %v260, 0
      %286 = vmatprep.subr.bf16.mxu0 0
      %287 = vmatpush1.bf16.msra.mxu0 0
      %288 = vmatprep.subr.bf16.mxu0 0
      %289 = vmatpush1.bf16.msra.mxu0 0
      %290 = vmatprep.subr.bf16.mxu0 0
      %291 = vmatpush1.bf16.msra.mxu0 0
      %292 = vmatprep.subr.bf16.mxu0 0
      %293 = vmatpush1.bf16.msra.mxu0 0
      %294 = vmatprep.subr.bf16.mxu0 0
      %295 = vmatpush1.bf16.msra.mxu0 0
      %296 = vmatprep.subr.bf16.mxu0 0
      %297 = vmatpush1.bf16.msra.mxu0 0
      %298 = vmatprep.subr.bf16.mxu0 0
      %299 = vmatpush1.bf16.msra.mxu0 %v204
      %300 = vmatprep.subr.bf16.mxu0 0
      %301 = vmatpush1.bf16.msra.mxu0 %v203
      %302 = vmatprep.subr.bf16.mxu0 0
      %303 = vmatpush2.bf16.msra.mxu0 0
      %304 = vmatprep.subr.bf16.mxu0 0
      %305 = vmatpush2.bf16.msra.mxu0 0
      %306 = vmatprep.subr.bf16.mxu0 0
      %307 = vmatpush2.bf16.msra.mxu0 0
      %308 = vmatprep.subr.bf16.mxu0 0
      %309 = vmatpush2.bf16.msra.mxu0 0
      %310 = vmatprep.subr.bf16.mxu0 0
      %311 = vmatpush2.bf16.msra.mxu0 0
      %312 = vmatprep.subr.bf16.mxu0 0
      %313 = vmatpush2.bf16.msra.mxu0 0
      %314 = vmatprep.subr.bf16.mxu0 0
      %315 = vmatpush2.bf16.msra.mxu0 0
      %316 = vmatprep.subr.bf16.mxu0 0
      %317 = vmatpush2.bf16.msra.mxu0 0
      %318 = vmatprep.mubr.bf16.mxu0 0
      %319 = vmatmul.mubr.bf16.gmra.mxu0 %v263
      %v320 = vpop.f32.mrf.mxu0
      %v321 = vadd.f32 0.0, %v320
      %v322 = vpop.f32.mrf.mxu0
      %v323 = vpop.f32.mrf.mxu0
      %v324 = vadd.f32 0.0, %v323
      %v325 = vpop.f32.mrf.mxu0
      %326 = vmatprep.mubr.bf16.mxu0 0
      %327 = vmatmul.mubr.bf16.gmra.mxu0 %v266
      %v328 = vpop.f32.mrf.mxu0
      %v329 = vadd.f32 0.0, %v328
      %v330 = vpop.f32.mrf.mxu0
      %v331 = vpop.f32.mrf.mxu0
      %v332 = vadd.f32 0.0, %v331
      %v333 = vpop.f32.mrf.mxu0
      %334 = vmatprep.mubr.bf16.mxu0 0
      %335 = vmatmul.mubr.bf16.gmra.mxu0 %v269
      %v336 = vpop.f32.mrf.mxu0
      %v337 = vadd.f32 0.0, %v336
      %v338 = vpop.f32.mrf.mxu0
      %v339 = vpop.f32.mrf.mxu0
      %v340 = vadd.f32 0.0, %v339
      %v341 = vpop.f32.mrf.mxu0
      %342 = vmatprep.mubr.bf16.mxu0 0
      %343 = vmatmul.mubr.bf16.gmra.mxu0 %v272
      %v344 = vpop.f32.mrf.mxu0
      %v345 = vadd.f32 0.0, %v344
      %v346 = vpop.f32.mrf.mxu0
      %v347 = vpop.f32.mrf.mxu0
      %v348 = vadd.f32 0.0, %v347
      %v349 = vpop.f32.mrf.mxu0
      %350 = vmatprep.mubr.bf16.mxu0 0
      %351 = vmatmul.mubr.bf16.gmra.mxu0 %v275
      %v352 = vpop.f32.mrf.mxu0
      %v353 = vadd.f32 0.0, %v352
      %v354 = vpop.f32.mrf.mxu0
      %v355 = vpop.f32.mrf.mxu0
      %v356 = vadd.f32 0.0, %v355
      %v357 = vpop.f32.mrf.mxu0
      %358 = vmatprep.mubr.bf16.mxu0 0
      %359 = vmatmul.mubr.bf16.gmra.mxu0 %v278
      %v360 = vpop.f32.mrf.mxu0
      %v361 = vadd.f32 0.0, %v360
      %v362 = vpop.f32.mrf.mxu0
      %v363 = vpop.f32.mrf.mxu0
      %v364 = vadd.f32 0.0, %v363
      %v365 = vpop.f32.mrf.mxu0
      %366 = vmatprep.mubr.bf16.mxu0 0
      %367 = vmatmul.mubr.bf16.gmra.mxu0 %v281
      %v368 = vpop.f32.mrf.mxu0
      %v369 = vadd.f32 0.0, %v368
      %v370 = vpop.f32.mrf.mxu0
      %v371 = vpop.f32.mrf.mxu0
      %v372 = vadd.f32 0.0, %v371
      %v373 = vpop.f32.mrf.mxu0
      %374 = vmatprep.mubr.bf16.mxu0 0
      %375 = vmatmul.mubr.bf16.gmra.mxu0 %v284
      %v376 = vpop.f32.mrf.mxu0
      %v377 = vadd.f32 0.0, %v376
      %v378 = vpop.f32.mrf.mxu0
      %v379 = vpop.f32.mrf.mxu0
      %v380 = vadd.f32 0.0, %v379
      %v381 = vpop.f32.mrf.mxu0
      %382 = vdwg.mxu0
      %v383 = vpack.c.bf16 %v324, %v321
      %v384 = vpack.c.bf16 %v332, %v329
      %v385 = vpack.c.bf16 %v340, %v337
      %v386 = vpack.c.bf16 %v348, %v345
      %v387 = vpack.c.bf16 %v356, %v353
      %v388 = vpack.c.bf16 %v364, %v361
      %v389 = vld [vmem:[%s2] sm:$0xf]
      %v390 = vld [vmem:[%s2 + $0x4] sm:$0xf]
      %v391 = vld [vmem:[%s2 + $0x8] sm:$0xf]
      %v392 = vld [vmem:[%s2 + $0xc] sm:$0xf]
      %393 = vxpose.xlu0.c.b16.start [1/8] %v383, 128
      %394 = vxpose.xlu0.c.b16.cont [2/8] 0, 128
      %395 = vxpose.xlu0.c.b16.cont [3/8] 0, 128
      %396 = vxpose.xlu0.c.b16.cont [4/8] 0, 128
      %397 = vxpose.xlu0.c.b16.cont [5/8] 0, 128
      %398 = vxpose.xlu0.c.b16.cont [6/8] 0, 128
      %399 = vxpose.xlu0.c.b16.cont [7/8] 0, 128
      %400 = vxpose.xlu0.c.b16.end [8/8] 0, 128
      %v401 = vpop.trf.xlu0
      %v402 = vpop.trf.xlu0
      %v403 = vpop.trf.xlu0
      %v404 = vpop.trf.xlu0
      %v405 = vpop.trf.xlu0
      %v406 = vpop.trf.xlu0
      %v407 = vpop.trf.xlu0
      %v408 = vpop.trf.xlu0
      %vm409 = vcmask 31744
      %v411 = vsel %vm409, %v401, 0
      %v414 = vsel %vm409, %v402, 0
      %v417 = vsel %vm409, %v403, 0
      %v420 = vsel %vm409, %v404, 0
      %vm422 = vcmask 1041408
      %v424 = vsel %vm422, %v385, 0
      %426 = vmatprep.subr.bf16.mxu0 0
      %427 = vmatpush1.bf16.msra.mxu0 0
      %428 = vmatprep.subr.bf16.mxu0 0
      %429 = vmatpush1.bf16.msra.mxu0 0
      %430 = vmatprep.subr.bf16.mxu0 0
      %431 = vmatpush1.bf16.msra.mxu0 0
      %432 = vmatprep.subr.bf16.mxu0 0
      %433 = vmatpush1.bf16.msra.mxu0 0
      %434 = vmatprep.subr.bf16.mxu0 0
      %435 = vmatpush1.bf16.msra.mxu0 0
      %436 = vmatprep.subr.bf16.mxu0 0
      %437 = vmatpush1.bf16.msra.mxu0 0
      %438 = vmatprep.subr.bf16.mxu0 0
      %439 = vmatpush1.bf16.msra.mxu0 0
      %440 = vmatprep.subr.bf16.mxu0 0
      %441 = vmatpush1.bf16.msra.mxu0 %v424
      %442 = vmatprep.subr.bf16.mxu0 0
      %443 = vmatpush2.bf16.msra.mxu0 0
      %444 = vmatprep.subr.bf16.mxu0 0
      %445 = vmatpush2.bf16.msra.mxu0 0
      %446 = vmatprep.subr.bf16.mxu0 0
      %447 = vmatpush2.bf16.msra.mxu0 0
      %448 = vmatprep.subr.bf16.mxu0 0
      %449 = vmatpush2.bf16.msra.mxu0 0
      %450 = vmatprep.subr.bf16.mxu0 0
      %451 = vmatpush2.bf16.msra.mxu0 0
      %452 = vmatprep.subr.bf16.mxu0 0
      %453 = vmatpush2.bf16.msra.mxu0 0
      %454 = vmatprep.subr.bf16.mxu0 0
      %455 = vmatpush2.bf16.msra.mxu0 0
      %456 = vmatprep.subr.bf16.mxu0 0
      %457 = vmatpush2.bf16.msra.mxu0 0
      %458 = vmatprep.mubr.bf16.mxu0 0
      %459 = vmatmul.mubr.bf16.gmra.mxu0 %v411
      %v460 = vpop.f32.mrf.mxu0
      %v461 = vadd.f32 0.0, %v460
      %v462 = vpop.f32.mrf.mxu0
      %v463 = vpop.f32.mrf.mxu0
      %v464 = vadd.f32 0.0, %v463
      %v465 = vpop.f32.mrf.mxu0
      %466 = vmatprep.mubr.bf16.mxu0 0
      %467 = vmatmul.mubr.bf16.gmra.mxu0 %v414
      %v468 = vpop.f32.mrf.mxu0
      %v469 = vadd.f32 0.0, %v468
      %v470 = vpop.f32.mrf.mxu0
      %v471 = vpop.f32.mrf.mxu0
      %v472 = vadd.f32 0.0, %v471
      %v473 = vpop.f32.mrf.mxu0
      %474 = vmatprep.mubr.bf16.mxu0 0
      %475 = vmatmul.mubr.bf16.gmra.mxu0 %v417
      %v476 = vpop.f32.mrf.mxu0
      %v477 = vadd.f32 0.0, %v476
      %v478 = vpop.f32.mrf.mxu0
      %v479 = vpop.f32.mrf.mxu0
      %v480 = vadd.f32 0.0, %v479
      %v481 = vpop.f32.mrf.mxu0
      %482 = vmatprep.mubr.bf16.mxu0 0
      %483 = vmatmul.mubr.bf16.gmra.mxu0 %v420
      %v484 = vpop.f32.mrf.mxu0
      %v485 = vadd.f32 0.0, %v484
      %v486 = vpop.f32.mrf.mxu0
      %v487 = vpop.f32.mrf.mxu0
      %v488 = vadd.f32 0.0, %v487
      %v489 = vpop.f32.mrf.mxu0
      %490 = vdwg.mxu0
      %vm491 = vcmask 523264
      %v492 = vsel %vm491, %v461, -inf
      %493 = vmax.xlane.f32.xlu0 %v492
      %v494 = vpop.xlane.xlu0 %493
      %v495 = vsel %vm491, %v464, -inf
      %496 = vmax.xlane.f32.xlu0 %v495
      %v497 = vpop.xlane.xlu0 %496
      %v498 = vsel %vm491, %v469, -inf
      %499 = vmax.xlane.f32.xlu0 %v498
      %v500 = vpop.xlane.xlu0 %499
      %v501 = vsel %vm491, %v472, -inf
      %502 = vmax.xlane.f32.xlu0 %v501
      %v503 = vpop.xlane.xlu0 %502
      %v504 = vsel %vm491, %v477, -inf
      %505 = vmax.xlane.f32.xlu0 %v504
      %v506 = vpop.xlane.xlu0 %505
      %v507 = vsel %vm491, %v480, -inf
      %508 = vmax.xlane.f32.xlu0 %v507
      %v509 = vpop.xlane.xlu0 %508
      %v510 = vsel %vm491, %v485, -inf
      %511 = vmax.xlane.f32.xlu0 %v510
      %v512 = vpop.xlane.xlu0 %511
      %v513 = vsel %vm491, %v488, -inf
      %514 = vmax.xlane.f32.xlu0 %v513
      %v515 = vpop.xlane.xlu0 %514
      %v516 = vsub.f32 %v461, %v494
      %v517 = vsub.f32 %v464, %v497
      %v518 = vsub.f32 %v469, %v500
      %v519 = vsub.f32 %v472, %v503
      %v520 = vsub.f32 %v477, %v506
      %v521 = vsub.f32 %v480, %v509
      %v522 = vsub.f32 %v485, %v512
      %v523 = vsub.f32 %v488, %v515
      %v524 = vmul.f32 %v516, 1.442695
      %v525 = vpow.pop %v524
      %v526 = vmul.f32 %v517, 1.442695
      %v527 = vpow.pop %v526
      %v528 = vmul.f32 %v518, 1.442695
      %v529 = vpow.pop %v528
      %v530 = vmul.f32 %v519, 1.442695
      %v531 = vpow.pop %v530
      %v532 = vmul.f32 %v520, 1.442695
      %v533 = vpow.pop %v532
      %v534 = vmul.f32 %v521, 1.442695
      %v535 = vpow.pop %v534
      %v536 = vmul.f32 %v522, 1.442695
      %v537 = vpow.pop %v536
      %v538 = vmul.f32 %v523, 1.442695
      %v539 = vpow.pop %v538
      %v540 = vsel %vm491, %v525, 0.0
      %541 = vadd.xlane.f32.xlu0 %v540
      %v542 = vpop.xlane.xlu0 %541
      %v543 = vsel %vm491, %v527, 0.0
      %544 = vadd.xlane.f32.xlu0 %v543
      %v545 = vpop.xlane.xlu0 %544
      %v546 = vsel %vm491, %v529, 0.0
      %547 = vadd.xlane.f32.xlu0 %v546
      %v548 = vpop.xlane.xlu0 %547
      %v549 = vsel %vm491, %v531, 0.0
      %550 = vadd.xlane.f32.xlu0 %v549
      %v551 = vpop.xlane.xlu0 %550
      %v552 = vsel %vm491, %v533, 0.0
      %553 = vadd.xlane.f32.xlu0 %v552
      %v554 = vpop.xlane.xlu0 %553
      %v555 = vsel %vm491, %v535, 0.0
      %556 = vadd.xlane.f32.xlu0 %v555
      %v557 = vpop.xlane.xlu0 %556
      %v558 = vsel %vm491, %v537, 0.0
      %559 = vadd.xlane.f32.xlu0 %v558
      %v560 = vpop.xlane.xlu0 %559
      %v561 = vsel %vm491, %v539, 0.0
      %562 = vadd.xlane.f32.xlu0 %v561
      %v563 = vpop.xlane.xlu0 %562
      %v564 = vrcp.pop %v542
      %v565 = vrcp.pop %v545
      %v566 = vrcp.pop %v548
      %v567 = vrcp.pop %v551
      %v568 = vrcp.pop %v554
      %v569 = vrcp.pop %v557
      %v570 = vrcp.pop %v560
      %v571 = vrcp.pop %v563
      %v572 = vmul.f32 %v525, %v564
      %v573 = vmul.f32 %v527, %v565
      %v574 = vmul.f32 %v529, %v566
      %v575 = vmul.f32 %v531, %v567
      %v576 = vmul.f32 %v533, %v568
      %v577 = vmul.f32 %v535, %v569
      %v578 = vmul.f32 %v537, %v570
      %v579 = vmul.f32 %v539, %v571
      %v580 = vpack.c.bf16 %v573, %v572
      %v581 = vpack.c.bf16 %v575, %v574
      %v582 = vpack.c.bf16 %v577, %v576
      %v583 = vpack.c.bf16 %v579, %v578
      %v585 = vsel %vm491, %v387, 0
      %v588 = vsel %vm491, %v580, 0
      %v591 = vsel %vm491, %v581, 0
      %v594 = vsel %vm491, %v582, 0
      %v597 = vsel %vm491, %v583, 0
      %599 = vmatprep.subr.bf16.mxu0 0
      %600 = vmatpush1.bf16.xpose.msra.mxu0 0
      %601 = vmatprep.subr.bf16.mxu0 0
      %602 = vmatpush1.bf16.xpose.msra.mxu0 0
      %603 = vmatprep.subr.bf16.mxu0 0
      %604 = vmatpush1.bf16.xpose.msra.mxu0 0
      %605 = vmatprep.subr.bf16.mxu0 0
      %606 = vmatpush1.bf16.xpose.msra.mxu0 0
      %607 = vmatprep.subr.bf16.mxu0 0
      %608 = vmatpush1.bf16.xpose.msra.mxu0 %v597
      %609 = vmatprep.subr.bf16.mxu0 0
      %610 = vmatpush1.bf16.xpose.msra.mxu0 %v594
      %611 = vmatprep.subr.bf16.mxu0 0
      %612 = vmatpush1.bf16.xpose.msra.mxu0 %v591
      %613 = vmatprep.subr.bf16.mxu0 0
      %614 = vmatpush1.bf16.xpose.msra.mxu0 %v588
      %615 = vmatprep.subr.bf16.mxu0 0
      %616 = vmatpush2.bf16.xpose.msra.mxu0 0
      %617 = vmatprep.subr.bf16.mxu0 0
      %618 = vmatpush2.bf16.xpose.msra.mxu0 0
      %619 = vmatprep.subr.bf16.mxu0 0
      %620 = vmatpush2.bf16.xpose.msra.mxu0 0
      %621 = vmatprep.subr.bf16.mxu0 0
      %622 = vmatpush2.bf16.xpose.msra.mxu0 0
      %623 = vmatprep.subr.bf16.mxu0 0
      %624 = vmatpush2.bf16.xpose.msra.mxu0 0
      %625 = vmatprep.subr.bf16.mxu0 0
      %626 = vmatpush2.bf16.xpose.msra.mxu0 0
      %627 = vmatprep.subr.bf16.mxu0 0
      %628 = vmatpush2.bf16.xpose.msra.mxu0 0
      %629 = vmatprep.subr.bf16.mxu0 0
      %630 = vmatpush2.bf16.xpose.msra.mxu0 0
      %631 = vmatprep.mubr.bf16.mxu0 0
      %632 = vmatmul.mubr.bf16.gmra.mxu0 %v585
      %v633 = vpop.f32.mrf.mxu0
      %v634 = vadd.f32 0.0, %v633
      %v635 = vpop.f32.mrf.mxu0
      %v636 = vpop.f32.mrf.mxu0
      %v637 = vpop.f32.mrf.mxu0
      %638 = vdwg.mxu0
      %v639 = vpack.c.bf16 %v634, %v634
      %v644 = vunpack.c.l.b16 %v389
      %v645 = vunpack.c.l.b16 %v390
      %v646 = vunpack.c.l.b16 %v391
      %v647 = vunpack.c.l.b16 %v392
      %v648 = vpack.c.b16 %v645, %v644
      %v649 = vpack.c.b16 %v647, %v646
      %v651 = vsel %vm409, %v648, 0
      %v654 = vsel %vm409, %v649, 0
      %v657 = vsel %vm422, %v639, 0
      %659 = vmatprep.subr.bf16.mxu0 0
      %660 = vmatpush1.bf16.msra.mxu0 0
      %661 = vmatprep.subr.bf16.mxu0 0
      %662 = vmatpush1.bf16.msra.mxu0 0
      %663 = vmatprep.subr.bf16.mxu0 0
      %664 = vmatpush1.bf16.msra.mxu0 0
      %665 = vmatprep.subr.bf16.mxu0 0
      %666 = vmatpush1.bf16.msra.mxu0 0
      %667 = vmatprep.subr.bf16.mxu0 0
      %668 = vmatpush1.bf16.msra.mxu0 0
      %669 = vmatprep.subr.bf16.mxu0 0
      %670 = vmatpush1.bf16.msra.mxu0 0
      %671 = vmatprep.subr.bf16.mxu0 0
      %672 = vmatpush1.bf16.msra.mxu0 0
      %673 = vmatprep.subr.bf16.mxu0 0
      %674 = vmatpush1.bf16.msra.mxu0 %v657
      %675 = vmatprep.subr.bf16.mxu0 0
      %676 = vmatpush2.bf16.msra.mxu0 0
      %677 = vmatprep.subr.bf16.mxu0 0
      %678 = vmatpush2.bf16.msra.mxu0 0
      %679 = vmatprep.subr.bf16.mxu0 0
      %680 = vmatpush2.bf16.msra.mxu0 0
      %681 = vmatprep.subr.bf16.mxu0 0
      %682 = vmatpush2.bf16.msra.mxu0 0
      %683 = vmatprep.subr.bf16.mxu0 0
      %684 = vmatpush2.bf16.msra.mxu0 0
      %685 = vmatprep.subr.bf16.mxu0 0
      %686 = vmatpush2.bf16.msra.mxu0 0
      %687 = vmatprep.subr.bf16.mxu0 0
      %688 = vmatpush2.bf16.msra.mxu0 0
      %689 = vmatprep.subr.bf16.mxu0 0
      %690 = vmatpush2.bf16.msra.mxu0 0
      %691 = vmatprep.mubr.bf16.mxu0 0
      %692 = vmatmul.mubr.bf16.gmra.mxu0 %v651
      %v693 = vpop.f32.mrf.mxu0
      %v694 = vadd.f32 0.0, %v693
      %v695 = vpop.f32.mrf.mxu0
      %v696 = vpop.f32.mrf.mxu0
      %v697 = vadd.f32 0.0, %v696
      %v698 = vpop.f32.mrf.mxu0
      %699 = vmatprep.mubr.bf16.mxu0 0
      %700 = vmatmul.mubr.bf16.gmra.mxu0 %v654
      %v701 = vpop.f32.mrf.mxu0
      %v702 = vadd.f32 0.0, %v701
      %v703 = vpop.f32.mrf.mxu0
      %v704 = vpop.f32.mrf.mxu0
      %v705 = vadd.f32 0.0, %v704
      %v706 = vpop.f32.mrf.mxu0
      %707 = vdwg.mxu0
      %v708 = vadd.f32 %v369, %v694
      %v709 = vadd.f32 %v372, %v697
      %v710 = vadd.f32 %v377, %v702
      %v711 = vadd.f32 %v380, %v705
      %v713 = vrot.slane %v383, 2
      %715 = vxpose.xlu0.c.b16.start [1/8] %v713, 128
      %716 = vxpose.xlu0.c.b16.cont [2/8] 0, 128
      %717 = vxpose.xlu0.c.b16.cont [3/8] 0, 128
      %718 = vxpose.xlu0.c.b16.cont [4/8] 0, 128
      %719 = vxpose.xlu0.c.b16.cont [5/8] 0, 128
      %720 = vxpose.xlu0.c.b16.cont [6/8] 0, 128
      %721 = vxpose.xlu0.c.b16.cont [7/8] 0, 128
      %722 = vxpose.xlu0.c.b16.end [8/8] 0, 128
      %v723 = vpop.trf.xlu0
      %v724 = vpop.trf.xlu0
      %v725 = vpop.trf.xlu0
      %v726 = vpop.trf.xlu0
      %v727 = vpop.trf.xlu0
      %v728 = vpop.trf.xlu0
      %v729 = vpop.trf.xlu0
      %v730 = vpop.trf.xlu0
      %v732 = vrot.slane %v385, 2
      %v734 = vsel %vm409, %v723, 0
      %v737 = vsel %vm409, %v724, 0
      %v740 = vsel %vm409, %v725, 0
      %v743 = vsel %vm409, %v726, 0
      %v746 = vsel %vm422, %v732, 0
      %748 = vmatprep.subr.bf16.mxu0 0
      %749 = vmatpush1.bf16.msra.mxu0 0
      %750 = vmatprep.subr.bf16.mxu0 0
      %751 = vmatpush1.bf16.msra.mxu0 0
      %752 = vmatprep.subr.bf16.mxu0 0
      %753 = vmatpush1.bf16.msra.mxu0 0
      %754 = vmatprep.subr.bf16.mxu0 0
      %755 = vmatpush1.bf16.msra.mxu0 0
      %756 = vmatprep.subr.bf16.mxu0 0
      %757 = vmatpush1.bf16.msra.mxu0 0
      %758 = vmatprep.subr.bf16.mxu0 0
      %759 = vmatpush1.bf16.msra.mxu0 0
      %760 = vmatprep.subr.bf16.mxu0 0
      %761 = vmatpush1.bf16.msra.mxu0 0
      %762 = vmatprep.subr.bf16.mxu0 0
      %763 = vmatpush1.bf16.msra.mxu0 %v746
      %764 = vmatprep.subr.bf16.mxu0 0
      %765 = vmatpush2.bf16.msra.mxu0 0
      %766 = vmatprep.subr.bf16.mxu0 0
      %767 = vmatpush2.bf16.msra.mxu0 0
      %768 = vmatprep.subr.bf16.mxu0 0
      %769 = vmatpush2.bf16.msra.mxu0 0
      %770 = vmatprep.subr.bf16.mxu0 0
      %771 = vmatpush2.bf16.msra.mxu0 0
      %772 = vmatprep.subr.bf16.mxu0 0
      %773 = vmatpush2.bf16.msra.mxu0 0
      %774 = vmatprep.subr.bf16.mxu0 0
      %775 = vmatpush2.bf16.msra.mxu0 0
      %776 = vmatprep.subr.bf16.mxu0 0
      %777 = vmatpush2.bf16.msra.mxu0 0
      %778 = vmatprep.subr.bf16.mxu0 0
      %779 = vmatpush2.bf16.msra.mxu0 0
      %780 = vmatprep.mubr.bf16.mxu0 0
      %781 = vmatmul.mubr.bf16.gmra.mxu0 %v734
      %v782 = vpop.f32.mrf.mxu0
      %v783 = vadd.f32 0.0, %v782
      %v784 = vpop.f32.mrf.mxu0
      %v785 = vpop.f32.mrf.mxu0
      %v786 = vadd.f32 0.0, %v785
      %v787 = vpop.f32.mrf.mxu0
      %788 = vmatprep.mubr.bf16.mxu0 0
      %789 = vmatmul.mubr.bf16.gmra.mxu0 %v737
      %v790 = vpop.f32.mrf.mxu0
      %v791 = vadd.f32 0.0, %v790
      %v792 = vpop.f32.mrf.mxu0
      %v793 = vpop.f32.mrf.mxu0
      %v794 = vadd.f32 0.0, %v793
      %v795 = vpop.f32.mrf.mxu0
      %796 = vmatprep.mubr.bf16.mxu0 0
      %797 = vmatmul.mubr.bf16.gmra.mxu0 %v740
      %v798 = vpop.f32.mrf.mxu0
      %v799 = vadd.f32 0.0, %v798
      %v800 = vpop.f32.mrf.mxu0
      %v801 = vpop.f32.mrf.mxu0
      %v802 = vadd.f32 0.0, %v801
      %v803 = vpop.f32.mrf.mxu0
      %804 = vmatprep.mubr.bf16.mxu0 0
      %805 = vmatmul.mubr.bf16.gmra.mxu0 %v743
      %v806 = vpop.f32.mrf.mxu0
      %v807 = vadd.f32 0.0, %v806
      %v808 = vpop.f32.mrf.mxu0
      %v809 = vpop.f32.mrf.mxu0
      %v810 = vadd.f32 0.0, %v809
      %v811 = vpop.f32.mrf.mxu0
      %812 = vdwg.mxu0
      %v813 = vsel %vm491, %v783, -inf
      %814 = vmax.xlane.f32.xlu0 %v813
      %v815 = vpop.xlane.xlu0 %814
      %v816 = vsel %vm491, %v786, -inf
      %817 = vmax.xlane.f32.xlu0 %v816
      %v818 = vpop.xlane.xlu0 %817
      %v819 = vsel %vm491, %v791, -inf
      %820 = vmax.xlane.f32.xlu0 %v819
      %v821 = vpop.xlane.xlu0 %820
      %v822 = vsel %vm491, %v794, -inf
      %823 = vmax.xlane.f32.xlu0 %v822
      %v824 = vpop.xlane.xlu0 %823
      %v825 = vsel %vm491, %v799, -inf
      %826 = vmax.xlane.f32.xlu0 %v825
      %v827 = vpop.xlane.xlu0 %826
      %v828 = vsel %vm491, %v802, -inf
      %829 = vmax.xlane.f32.xlu0 %v828
      %v830 = vpop.xlane.xlu0 %829
      %v831 = vsel %vm491, %v807, -inf
      %832 = vmax.xlane.f32.xlu0 %v831
      %v833 = vpop.xlane.xlu0 %832
      %v834 = vsel %vm491, %v810, -inf
      %835 = vmax.xlane.f32.xlu0 %v834
      %v836 = vpop.xlane.xlu0 %835
      %v837 = vsub.f32 %v783, %v815
      %v838 = vsub.f32 %v786, %v818
      %v839 = vsub.f32 %v791, %v821
      %v840 = vsub.f32 %v794, %v824
      %v841 = vsub.f32 %v799, %v827
      %v842 = vsub.f32 %v802, %v830
      %v843 = vsub.f32 %v807, %v833
      %v844 = vsub.f32 %v810, %v836
      %v845 = vmul.f32 %v837, 1.442695
      %v846 = vpow.pop %v845
      %v847 = vmul.f32 %v838, 1.442695
      %v848 = vpow.pop %v847
      %v849 = vmul.f32 %v839, 1.442695
      %v850 = vpow.pop %v849
      %v851 = vmul.f32 %v840, 1.442695
      %v852 = vpow.pop %v851
      %v853 = vmul.f32 %v841, 1.442695
      %v854 = vpow.pop %v853
      %v855 = vmul.f32 %v842, 1.442695
      %v856 = vpow.pop %v855
      %v857 = vmul.f32 %v843, 1.442695
      %v858 = vpow.pop %v857
      %v859 = vmul.f32 %v844, 1.442695
      %v860 = vpow.pop %v859
      %v861 = vsel %vm491, %v846, 0.0
      %862 = vadd.xlane.f32.xlu0 %v861
      %v863 = vpop.xlane.xlu0 %862
      %v864 = vsel %vm491, %v848, 0.0
      %865 = vadd.xlane.f32.xlu0 %v864
      %v866 = vpop.xlane.xlu0 %865
      %v867 = vsel %vm491, %v850, 0.0
      %868 = vadd.xlane.f32.xlu0 %v867
      %v869 = vpop.xlane.xlu0 %868
      %v870 = vsel %vm491, %v852, 0.0
      %871 = vadd.xlane.f32.xlu0 %v870
      %v872 = vpop.xlane.xlu0 %871
      %v873 = vsel %vm491, %v854, 0.0
      %874 = vadd.xlane.f32.xlu0 %v873
      %v875 = vpop.xlane.xlu0 %874
      %v876 = vsel %vm491, %v856, 0.0
      %877 = vadd.xlane.f32.xlu0 %v876
      %v878 = vpop.xlane.xlu0 %877
      %v879 = vsel %vm491, %v858, 0.0
      %880 = vadd.xlane.f32.xlu0 %v879
      %v881 = vpop.xlane.xlu0 %880
      %v882 = vsel %vm491, %v860, 0.0
      %883 = vadd.xlane.f32.xlu0 %v882
      %v884 = vpop.xlane.xlu0 %883
      %v885 = vrcp.pop %v863
      %v886 = vrcp.pop %v866
      %v887 = vrcp.pop %v869
      %v888 = vrcp.pop %v872
      %v889 = vrcp.pop %v875
      %v890 = vrcp.pop %v878
      %v891 = vrcp.pop %v881
      %v892 = vrcp.pop %v884
      %v893 = vmul.f32 %v846, %v885
      %v894 = vmul.f32 %v848, %v886
      %v895 = vmul.f32 %v850, %v887
      %v896 = vmul.f32 %v852, %v888
      %v897 = vmul.f32 %v854, %v889
      %v898 = vmul.f32 %v856, %v890
      %v899 = vmul.f32 %v858, %v891
      %v900 = vmul.f32 %v860, %v892
      %v901 = vpack.c.bf16 %v894, %v893
      %v902 = vpack.c.bf16 %v896, %v895
      %v903 = vpack.c.bf16 %v898, %v897
      %v904 = vpack.c.bf16 %v900, %v899
      %v906 = vrot.slane %v387, 2
      %v908 = vsel %vm491, %v906, 0
      %v911 = vsel %vm491, %v901, 0
      %v914 = vsel %vm491, %v902, 0
      %v917 = vsel %vm491, %v903, 0
      %v920 = vsel %vm491, %v904, 0
      %922 = vmatprep.subr.bf16.mxu0 0
      %923 = vmatpush1.bf16.xpose.msra.mxu0 0
      %924 = vmatprep.subr.bf16.mxu0 0
      %925 = vmatpush1.bf16.xpose.msra.mxu0 0
      %926 = vmatprep.subr.bf16.mxu0 0
      %927 = vmatpush1.bf16.xpose.msra.mxu0 0
      %928 = vmatprep.subr.bf16.mxu0 0
      %929 = vmatpush1.bf16.xpose.msra.mxu0 0
      %930 = vmatprep.subr.bf16.mxu0 0
      %931 = vmatpush1.bf16.xpose.msra.mxu0 %v920
      %932 = vmatprep.subr.bf16.mxu0 0
      %933 = vmatpush1.bf16.xpose.msra.mxu0 %v917
      %934 = vmatprep.subr.bf16.mxu0 0
      %935 = vmatpush1.bf16.xpose.msra.mxu0 %v914
      %936 = vmatprep.subr.bf16.mxu0 0
      %937 = vmatpush1.bf16.xpose.msra.mxu0 %v911
      %938 = vmatprep.subr.bf16.mxu0 0
      %939 = vmatpush2.bf16.xpose.msra.mxu0 0
      %940 = vmatprep.subr.bf16.mxu0 0
      %941 = vmatpush2.bf16.xpose.msra.mxu0 0
      %942 = vmatprep.subr.bf16.mxu0 0
      %943 = vmatpush2.bf16.xpose.msra.mxu0 0
      %944 = vmatprep.subr.bf16.mxu0 0
      %945 = vmatpush2.bf16.xpose.msra.mxu0 0
      %946 = vmatprep.subr.bf16.mxu0 0
      %947 = vmatpush2.bf16.xpose.msra.mxu0 0
      %948 = vmatprep.subr.bf16.mxu0 0
      %949 = vmatpush2.bf16.xpose.msra.mxu0 0
      %950 = vmatprep.subr.bf16.mxu0 0
      %951 = vmatpush2.bf16.xpose.msra.mxu0 0
      %952 = vmatprep.subr.bf16.mxu0 0
      %953 = vmatpush2.bf16.xpose.msra.mxu0 0
      %954 = vmatprep.mubr.bf16.mxu0 0
      %955 = vmatmul.mubr.bf16.gmra.mxu0 %v908
      %v956 = vpop.f32.mrf.mxu0
      %v957 = vadd.f32 0.0, %v956
      %v958 = vpop.f32.mrf.mxu0
      %v959 = vpop.f32.mrf.mxu0
      %v960 = vpop.f32.mrf.mxu0
      %961 = vdwg.mxu0
      %v962 = vpack.c.bf16 %v957, %v957
      %963 = vrot.lane.b32.xlu0 %v648, 124
      %v964 = vpop.permute.xlu0 %963
      %965 = vrot.lane.b32.xlu0 %v649, 124
      %v966 = vpop.permute.xlu0 %965
      %v968 = vsel %vm409, %v964, 0
      %v971 = vsel %vm409, %v966, 0
      %v974 = vsel %vm422, %v962, 0
      %976 = vmatprep.subr.bf16.mxu0 0
      %977 = vmatpush1.bf16.msra.mxu0 0
      %978 = vmatprep.subr.bf16.mxu0 0
      %979 = vmatpush1.bf16.msra.mxu0 0
      %980 = vmatprep.subr.bf16.mxu0 0
      %981 = vmatpush1.bf16.msra.mxu0 0
      %982 = vmatprep.subr.bf16.mxu0 0
      %983 = vmatpush1.bf16.msra.mxu0 0
      %984 = vmatprep.subr.bf16.mxu0 0
      %985 = vmatpush1.bf16.msra.mxu0 0
      %986 = vmatprep.subr.bf16.mxu0 0
      %987 = vmatpush1.bf16.msra.mxu0 0
      %988 = vmatprep.subr.bf16.mxu0 0
      %989 = vmatpush1.bf16.msra.mxu0 0
      %990 = vmatprep.subr.bf16.mxu0 0
      %991 = vmatpush1.bf16.msra.mxu0 %v974
      %992 = vmatprep.subr.bf16.mxu0 0
      %993 = vmatpush2.bf16.msra.mxu0 0
      %994 = vmatprep.subr.bf16.mxu0 0
      %995 = vmatpush2.bf16.msra.mxu0 0
      %996 = vmatprep.subr.bf16.mxu0 0
      %997 = vmatpush2.bf16.msra.mxu0 0
      %998 = vmatprep.subr.bf16.mxu0 0
      %999 = vmatpush2.bf16.msra.mxu0 0
      %1000 = vmatprep.subr.bf16.mxu0 0
      %1001 = vmatpush2.bf16.msra.mxu0 0
      %1002 = vmatprep.subr.bf16.mxu0 0
      %1003 = vmatpush2.bf16.msra.mxu0 0
      %1004 = vmatprep.subr.bf16.mxu0 0
      %1005 = vmatpush2.bf16.msra.mxu0 0
      %1006 = vmatprep.subr.bf16.mxu0 0
      %1007 = vmatpush2.bf16.msra.mxu0 0
      %1008 = vmatprep.mubr.bf16.mxu0 0
      %1009 = vmatmul.mubr.bf16.gmra.mxu0 %v968
      %v1010 = vpop.f32.mrf.mxu0
      %v1011 = vadd.f32 0.0, %v1010
      %v1012 = vpop.f32.mrf.mxu0
      %v1013 = vpop.f32.mrf.mxu0
      %v1014 = vadd.f32 0.0, %v1013
      %v1015 = vpop.f32.mrf.mxu0
      %1016 = vmatprep.mubr.bf16.mxu0 0
      %1017 = vmatmul.mubr.bf16.gmra.mxu0 %v971
      %v1018 = vpop.f32.mrf.mxu0
      %v1019 = vadd.f32 0.0, %v1018
      %v1020 = vpop.f32.mrf.mxu0
      %v1021 = vpop.f32.mrf.mxu0
      %v1022 = vadd.f32 0.0, %v1021
      %v1023 = vpop.f32.mrf.mxu0
      %1024 = vdwg.mxu0
      %v1025 = vadd.f32 %v708, %v1011
      %v1026 = vadd.f32 %v709, %v1014
      %v1027 = vadd.f32 %v710, %v1019
      %v1028 = vadd.f32 %v711, %v1022
      %v1029 = vrot.slane %v383, 4
      %1031 = vxpose.xlu0.c.b16.start [1/8] %v1029, 128
      %1032 = vxpose.xlu0.c.b16.cont [2/8] 0, 128
      %1033 = vxpose.xlu0.c.b16.cont [3/8] 0, 128
      %1034 = vxpose.xlu0.c.b16.cont [4/8] 0, 128
      %1035 = vxpose.xlu0.c.b16.cont [5/8] 0, 128
      %1036 = vxpose.xlu0.c.b16.cont [6/8] 0, 128
      %1037 = vxpose.xlu0.c.b16.cont [7/8] 0, 128
      %1038 = vxpose.xlu0.c.b16.end [8/8] 0, 128
      %v1039 = vpop.trf.xlu0
      %v1040 = vpop.trf.xlu0
      %v1041 = vpop.trf.xlu0
      %v1042 = vpop.trf.xlu0
      %v1043 = vpop.trf.xlu0
      %v1044 = vpop.trf.xlu0
      %v1045 = vpop.trf.xlu0
      %v1046 = vpop.trf.xlu0
      %v1047 = vrot.slane %v385, 4
      %v1049 = vsel %vm409, %v1039, 0
      %v1052 = vsel %vm409, %v1040, 0
      %v1055 = vsel %vm409, %v1041, 0
      %v1058 = vsel %vm409, %v1042, 0
      %v1061 = vsel %vm422, %v1047, 0
      %1063 = vmatprep.subr.bf16.mxu0 0
      %1064 = vmatpush1.bf16.msra.mxu0 0
      %1065 = vmatprep.subr.bf16.mxu0 0
      %1066 = vmatpush1.bf16.msra.mxu0 0
      %1067 = vmatprep.subr.bf16.mxu0 0
      %1068 = vmatpush1.bf16.msra.mxu0 0
      %1069 = vmatprep.subr.bf16.mxu0 0
      %1070 = vmatpush1.bf16.msra.mxu0 0
      %1071 = vmatprep.subr.bf16.mxu0 0
      %1072 = vmatpush1.bf16.msra.mxu0 0
      %1073 = vmatprep.subr.bf16.mxu0 0
      %1074 = vmatpush1.bf16.msra.mxu0 0
      %1075 = vmatprep.subr.bf16.mxu0 0
      %1076 = vmatpush1.bf16.msra.mxu0 0
      %1077 = vmatprep.subr.bf16.mxu0 0
      %1078 = vmatpush1.bf16.msra.mxu0 %v1061
      %1079 = vmatprep.subr.bf16.mxu0 0
      %1080 = vmatpush2.bf16.msra.mxu0 0
      %1081 = vmatprep.subr.bf16.mxu0 0
      %1082 = vmatpush2.bf16.msra.mxu0 0
      %1083 = vmatprep.subr.bf16.mxu0 0
      %1084 = vmatpush2.bf16.msra.mxu0 0
      %1085 = vmatprep.subr.bf16.mxu0 0
      %1086 = vmatpush2.bf16.msra.mxu0 0
      %1087 = vmatprep.subr.bf16.mxu0 0
      %1088 = vmatpush2.bf16.msra.mxu0 0
      %1089 = vmatprep.subr.bf16.mxu0 0
      %1090 = vmatpush2.bf16.msra.mxu0 0
      %1091 = vmatprep.subr.bf16.mxu0 0
      %1092 = vmatpush2.bf16.msra.mxu0 0
      %1093 = vmatprep.subr.bf16.mxu0 0
      %1094 = vmatpush2.bf16.msra.mxu0 0
      %1095 = vmatprep.mubr.bf16.mxu0 0
      %1096 = vmatmul.mubr.bf16.gmra.mxu0 %v1049
      %v1097 = vpop.f32.mrf.mxu0
      %v1098 = vadd.f32 0.0, %v1097
      %v1099 = vpop.f32.mrf.mxu0
      %v1100 = vpop.f32.mrf.mxu0
      %v1101 = vadd.f32 0.0, %v1100
      %v1102 = vpop.f32.mrf.mxu0
      %1103 = vmatprep.mubr.bf16.mxu0 0
      %1104 = vmatmul.mubr.bf16.gmra.mxu0 %v1052
      %v1105 = vpop.f32.mrf.mxu0
      %v1106 = vadd.f32 0.0, %v1105
      %v1107 = vpop.f32.mrf.mxu0
      %v1108 = vpop.f32.mrf.mxu0
      %v1109 = vadd.f32 0.0, %v1108
      %v1110 = vpop.f32.mrf.mxu0
      %1111 = vmatprep.mubr.bf16.mxu0 0
      %1112 = vmatmul.mubr.bf16.gmra.mxu0 %v1055
      %v1113 = vpop.f32.mrf.mxu0
      %v1114 = vadd.f32 0.0, %v1113
      %v1115 = vpop.f32.mrf.mxu0
      %v1116 = vpop.f32.mrf.mxu0
      %v1117 = vadd.f32 0.0, %v1116
      %v1118 = vpop.f32.mrf.mxu0
      %1119 = vmatprep.mubr.bf16.mxu0 0
      %1120 = vmatmul.mubr.bf16.gmra.mxu0 %v1058
      %v1121 = vpop.f32.mrf.mxu0
      %v1122 = vadd.f32 0.0, %v1121
      %v1123 = vpop.f32.mrf.mxu0
      %v1124 = vpop.f32.mrf.mxu0
      %v1125 = vadd.f32 0.0, %v1124
      %v1126 = vpop.f32.mrf.mxu0
      %1127 = vdwg.mxu0
      %v1128 = vsel %vm491, %v1098, -inf
      %1129 = vmax.xlane.f32.xlu0 %v1128
      %v1130 = vpop.xlane.xlu0 %1129
      %v1131 = vsel %vm491, %v1101, -inf
      %1132 = vmax.xlane.f32.xlu0 %v1131
      %v1133 = vpop.xlane.xlu0 %1132
      %v1134 = vsel %vm491, %v1106, -inf
      %1135 = vmax.xlane.f32.xlu0 %v1134
      %v1136 = vpop.xlane.xlu0 %1135
      %v1137 = vsel %vm491, %v1109, -inf
      %1138 = vmax.xlane.f32.xlu0 %v1137
      %v1139 = vpop.xlane.xlu0 %1138
      %v1140 = vsel %vm491, %v1114, -inf
      %1141 = vmax.xlane.f32.xlu0 %v1140
      %v1142 = vpop.xlane.xlu0 %1141
      %v1143 = vsel %vm491, %v1117, -inf
      %1144 = vmax.xlane.f32.xlu0 %v1143
      %v1145 = vpop.xlane.xlu0 %1144
      %v1146 = vsel %vm491, %v1122, -inf
      %1147 = vmax.xlane.f32.xlu0 %v1146
      %v1148 = vpop.xlane.xlu0 %1147
      %v1149 = vsel %vm491, %v1125, -inf
      %1150 = vmax.xlane.f32.xlu0 %v1149
      %v1151 = vpop.xlane.xlu0 %1150
      %v1152 = vsub.f32 %v1098, %v1130
      %v1153 = vsub.f32 %v1101, %v1133
      %v1154 = vsub.f32 %v1106, %v1136
      %v1155 = vsub.f32 %v1109, %v1139
      %v1156 = vsub.f32 %v1114, %v1142
      %v1157 = vsub.f32 %v1117, %v1145
      %v1158 = vsub.f32 %v1122, %v1148
      %v1159 = vsub.f32 %v1125, %v1151
      %v1160 = vmul.f32 %v1152, 1.442695
      %v1161 = vpow.pop %v1160
      %v1162 = vmul.f32 %v1153, 1.442695
      %v1163 = vpow.pop %v1162
      %v1164 = vmul.f32 %v1154, 1.442695
      %v1165 = vpow.pop %v1164
      %v1166 = vmul.f32 %v1155, 1.442695
      %v1167 = vpow.pop %v1166
      %v1168 = vmul.f32 %v1156, 1.442695
      %v1169 = vpow.pop %v1168
      %v1170 = vmul.f32 %v1157, 1.442695
      %v1171 = vpow.pop %v1170
      %v1172 = vmul.f32 %v1158, 1.442695
      %v1173 = vpow.pop %v1172
      %v1174 = vmul.f32 %v1159, 1.442695
      %v1175 = vpow.pop %v1174
      %v1176 = vsel %vm491, %v1161, 0.0
      %1177 = vadd.xlane.f32.xlu0 %v1176
      %v1178 = vpop.xlane.xlu0 %1177
      %v1179 = vsel %vm491, %v1163, 0.0
      %1180 = vadd.xlane.f32.xlu0 %v1179
      %v1181 = vpop.xlane.xlu0 %1180
      %v1182 = vsel %vm491, %v1165, 0.0
      %1183 = vadd.xlane.f32.xlu0 %v1182
      %v1184 = vpop.xlane.xlu0 %1183
      %v1185 = vsel %vm491, %v1167, 0.0
      %1186 = vadd.xlane.f32.xlu0 %v1185
      %v1187 = vpop.xlane.xlu0 %1186
      %v1188 = vsel %vm491, %v1169, 0.0
      %1189 = vadd.xlane.f32.xlu0 %v1188
      %v1190 = vpop.xlane.xlu0 %1189
      %v1191 = vsel %vm491, %v1171, 0.0
      %1192 = vadd.xlane.f32.xlu0 %v1191
      %v1193 = vpop.xlane.xlu0 %1192
      %v1194 = vsel %vm491, %v1173, 0.0
      %1195 = vadd.xlane.f32.xlu0 %v1194
      %v1196 = vpop.xlane.xlu0 %1195
      %v1197 = vsel %vm491, %v1175, 0.0
      %1198 = vadd.xlane.f32.xlu0 %v1197
      %v1199 = vpop.xlane.xlu0 %1198
      %v1200 = vrcp.pop %v1178
      %v1201 = vrcp.pop %v1181
      %v1202 = vrcp.pop %v1184
      %v1203 = vrcp.pop %v1187
      %v1204 = vrcp.pop %v1190
      %v1205 = vrcp.pop %v1193
      %v1206 = vrcp.pop %v1196
      %v1207 = vrcp.pop %v1199
      %v1208 = vmul.f32 %v1161, %v1200
      %v1209 = vmul.f32 %v1163, %v1201
      %v1210 = vmul.f32 %v1165, %v1202
      %v1211 = vmul.f32 %v1167, %v1203
      %v1212 = vmul.f32 %v1169, %v1204
      %v1213 = vmul.f32 %v1171, %v1205
      %v1214 = vmul.f32 %v1173, %v1206
      %v1215 = vmul.f32 %v1175, %v1207
      %v1216 = vpack.c.bf16 %v1209, %v1208
      %v1217 = vpack.c.bf16 %v1211, %v1210
      %v1218 = vpack.c.bf16 %v1213, %v1212
      %v1219 = vpack.c.bf16 %v1215, %v1214
      %v1220 = vrot.slane %v387, 4
      %v1222 = vsel %vm491, %v1220, 0
      %v1225 = vsel %vm491, %v1216, 0
      %v1228 = vsel %vm491, %v1217, 0
      %v1231 = vsel %vm491, %v1218, 0
      %v1234 = vsel %vm491, %v1219, 0
      %1236 = vmatprep.subr.bf16.mxu0 0
      %1237 = vmatpush1.bf16.xpose.msra.mxu0 0
      %1238 = vmatprep.subr.bf16.mxu0 0
      %1239 = vmatpush1.bf16.xpose.msra.mxu0 0
      %1240 = vmatprep.subr.bf16.mxu0 0
      %1241 = vmatpush1.bf16.xpose.msra.mxu0 0
      %1242 = vmatprep.subr.bf16.mxu0 0
      %1243 = vmatpush1.bf16.xpose.msra.mxu0 0
      %1244 = vmatprep.subr.bf16.mxu0 0
      %1245 = vmatpush1.bf16.xpose.msra.mxu0 %v1234
      %1246 = vmatprep.subr.bf16.mxu0 0
      %1247 = vmatpush1.bf16.xpose.msra.mxu0 %v1231
      %1248 = vmatprep.subr.bf16.mxu0 0
      %1249 = vmatpush1.bf16.xpose.msra.mxu0 %v1228
      %1250 = vmatprep.subr.bf16.mxu0 0
      %1251 = vmatpush1.bf16.xpose.msra.mxu0 %v1225
      %1252 = vmatprep.subr.bf16.mxu0 0
      %1253 = vmatpush2.bf16.xpose.msra.mxu0 0
      %1254 = vmatprep.subr.bf16.mxu0 0
      %1255 = vmatpush2.bf16.xpose.msra.mxu0 0
      %1256 = vmatprep.subr.bf16.mxu0 0
      %1257 = vmatpush2.bf16.xpose.msra.mxu0 0
      %1258 = vmatprep.subr.bf16.mxu0 0
      %1259 = vmatpush2.bf16.xpose.msra.mxu0 0
      %1260 = vmatprep.subr.bf16.mxu0 0
      %1261 = vmatpush2.bf16.xpose.msra.mxu0 0
      %1262 = vmatprep.subr.bf16.mxu0 0
      %1263 = vmatpush2.bf16.xpose.msra.mxu0 0
      %1264 = vmatprep.subr.bf16.mxu0 0
      %1265 = vmatpush2.bf16.xpose.msra.mxu0 0
      %1266 = vmatprep.subr.bf16.mxu0 0
      %1267 = vmatpush2.bf16.xpose.msra.mxu0 0
      %1268 = vmatprep.mubr.bf16.mxu0 0
      %1269 = vmatmul.mubr.bf16.gmra.mxu0 %v1222
      %v1270 = vpop.f32.mrf.mxu0
      %v1271 = vadd.f32 0.0, %v1270
      %v1272 = vpop.f32.mrf.mxu0
      %v1273 = vpop.f32.mrf.mxu0
      %v1274 = vpop.f32.mrf.mxu0
      %1275 = vdwg.mxu0
      %v1276 = vpack.c.bf16 %v1271, %v1271
      %1277 = vrot.lane.b32.xlu0 %v648, 120
      %v1278 = vpop.permute.xlu0 %1277
      %1279 = vrot.lane.b32.xlu0 %v649, 120
      %v1280 = vpop.permute.xlu0 %1279
      %v1282 = vsel %vm409, %v1278, 0
      %v1285 = vsel %vm409, %v1280, 0
      %v1288 = vsel %vm422, %v1276, 0
      %1290 = vmatprep.subr.bf16.mxu0 0
      %1291 = vmatpush1.bf16.msra.mxu0 0
      %1292 = vmatprep.subr.bf16.mxu0 0
      %1293 = vmatpush1.bf16.msra.mxu0 0
      %1294 = vmatprep.subr.bf16.mxu0 0
      %1295 = vmatpush1.bf16.msra.mxu0 0
      %1296 = vmatprep.subr.bf16.mxu0 0
      %1297 = vmatpush1.bf16.msra.mxu0 0
      %1298 = vmatprep.subr.bf16.mxu0 0
      %1299 = vmatpush1.bf16.msra.mxu0 0
      %1300 = vmatprep.subr.bf16.mxu0 0
      %1301 = vmatpush1.bf16.msra.mxu0 0
      %1302 = vmatprep.subr.bf16.mxu0 0
      %1303 = vmatpush1.bf16.msra.mxu0 0
      %1304 = vmatprep.subr.bf16.mxu0 0
      %1305 = vmatpush1.bf16.msra.mxu0 %v1288
      %1306 = vmatprep.subr.bf16.mxu0 0
      %1307 = vmatpush2.bf16.msra.mxu0 0
      %1308 = vmatprep.subr.bf16.mxu0 0
      %1309 = vmatpush2.bf16.msra.mxu0 0
      %1310 = vmatprep.subr.bf16.mxu0 0
      %1311 = vmatpush2.bf16.msra.mxu0 0
      %1312 = vmatprep.subr.bf16.mxu0 0
      %1313 = vmatpush2.bf16.msra.mxu0 0
      %1314 = vmatprep.subr.bf16.mxu0 0
      %1315 = vmatpush2.bf16.msra.mxu0 0
      %1316 = vmatprep.subr.bf16.mxu0 0
      %1317 = vmatpush2.bf16.msra.mxu0 0
      %1318 = vmatprep.subr.bf16.mxu0 0
      %1319 = vmatpush2.bf16.msra.mxu0 0
      %1320 = vmatprep.subr.bf16.mxu0 0
      %1321 = vmatpush2.bf16.msra.mxu0 0
      %1322 = vmatprep.mubr.bf16.mxu0 0
      %1323 = vmatmul.mubr.bf16.gmra.mxu0 %v1282
      %v1324 = vpop.f32.mrf.mxu0
      %v1325 = vadd.f32 0.0, %v1324
      %v1326 = vpop.f32.mrf.mxu0
      %v1327 = vpop.f32.mrf.mxu0
      %v1328 = vadd.f32 0.0, %v1327
      %v1329 = vpop.f32.mrf.mxu0
      %1330 = vmatprep.mubr.bf16.mxu0 0
      %1331 = vmatmul.mubr.bf16.gmra.mxu0 %v1285
      %v1332 = vpop.f32.mrf.mxu0
      %v1333 = vadd.f32 0.0, %v1332
      %v1334 = vpop.f32.mrf.mxu0
      %v1335 = vpop.f32.mrf.mxu0
      %v1336 = vadd.f32 0.0, %v1335
      %v1337 = vpop.f32.mrf.mxu0
      %1338 = vdwg.mxu0
      %v1339 = vadd.f32 %v1025, %v1325
      %v1340 = vadd.f32 %v1026, %v1328
      %v1341 = vadd.f32 %v1027, %v1333
      %v1342 = vadd.f32 %v1028, %v1336
      %v1343 = vrot.slane %v383, 6
      %1345 = vxpose.xlu0.c.b16.start [1/8] %v1343, 128
      %1346 = vxpose.xlu0.c.b16.cont [2/8] 0, 128
      %1347 = vxpose.xlu0.c.b16.cont [3/8] 0, 128
      %1348 = vxpose.xlu0.c.b16.cont [4/8] 0, 128
      %1349 = vxpose.xlu0.c.b16.cont [5/8] 0, 128
      %1350 = vxpose.xlu0.c.b16.cont [6/8] 0, 128
      %1351 = vxpose.xlu0.c.b16.cont [7/8] 0, 128
      %1352 = vxpose.xlu0.c.b16.end [8/8] 0, 128
      %v1353 = vpop.trf.xlu0
      %v1354 = vpop.trf.xlu0
      %v1355 = vpop.trf.xlu0
      %v1356 = vpop.trf.xlu0
      %v1357 = vpop.trf.xlu0
      %v1358 = vpop.trf.xlu0
      %v1359 = vpop.trf.xlu0
      %v1360 = vpop.trf.xlu0
      %v1361 = vrot.slane %v385, 6
      %v1363 = vsel %vm409, %v1353, 0
      %v1366 = vsel %vm409, %v1354, 0
      %v1369 = vsel %vm409, %v1355, 0
      %v1372 = vsel %vm409, %v1356, 0
      %v1375 = vsel %vm422, %v1361, 0
      %1377 = vmatprep.subr.bf16.mxu0 0
      %1378 = vmatpush1.bf16.msra.mxu0 0
      %1379 = vmatprep.subr.bf16.mxu0 0
      %1380 = vmatpush1.bf16.msra.mxu0 0
      %1381 = vmatprep.subr.bf16.mxu0 0
      %1382 = vmatpush1.bf16.msra.mxu0 0
      %1383 = vmatprep.subr.bf16.mxu0 0
      %1384 = vmatpush1.bf16.msra.mxu0 0
      %1385 = vmatprep.subr.bf16.mxu0 0
      %1386 = vmatpush1.bf16.msra.mxu0 0
      %1387 = vmatprep.subr.bf16.mxu0 0
      %1388 = vmatpush1.bf16.msra.mxu0 0
      %1389 = vmatprep.subr.bf16.mxu0 0
      %1390 = vmatpush1.bf16.msra.mxu0 0
      %1391 = vmatprep.subr.bf16.mxu0 0
      %1392 = vmatpush1.bf16.msra.mxu0 %v1375
      %1393 = vmatprep.subr.bf16.mxu0 0
      %1394 = vmatpush2.bf16.msra.mxu0 0
      %1395 = vmatprep.subr.bf16.mxu0 0
      %1396 = vmatpush2.bf16.msra.mxu0 0
      %1397 = vmatprep.subr.bf16.mxu0 0
      %1398 = vmatpush2.bf16.msra.mxu0 0
      %1399 = vmatprep.subr.bf16.mxu0 0
      %1400 = vmatpush2.bf16.msra.mxu0 0
      %1401 = vmatprep.subr.bf16.mxu0 0
      %1402 = vmatpush2.bf16.msra.mxu0 0
      %1403 = vmatprep.subr.bf16.mxu0 0
      %1404 = vmatpush2.bf16.msra.mxu0 0
      %1405 = vmatprep.subr.bf16.mxu0 0
      %1406 = vmatpush2.bf16.msra.mxu0 0
      %1407 = vmatprep.subr.bf16.mxu0 0
      %1408 = vmatpush2.bf16.msra.mxu0 0
      %1409 = vmatprep.mubr.bf16.mxu0 0
      %1410 = vmatmul.mubr.bf16.gmra.mxu0 %v1363
      %v1411 = vpop.f32.mrf.mxu0
      %v1412 = vadd.f32 0.0, %v1411
      %v1413 = vpop.f32.mrf.mxu0
      %v1414 = vpop.f32.mrf.mxu0
      %v1415 = vadd.f32 0.0, %v1414
      %v1416 = vpop.f32.mrf.mxu0
      %1417 = vmatprep.mubr.bf16.mxu0 0
      %1418 = vmatmul.mubr.bf16.gmra.mxu0 %v1366
      %v1419 = vpop.f32.mrf.mxu0
      %v1420 = vadd.f32 0.0, %v1419
      %v1421 = vpop.f32.mrf.mxu0
      %v1422 = vpop.f32.mrf.mxu0
      %v1423 = vadd.f32 0.0, %v1422
      %v1424 = vpop.f32.mrf.mxu0
      %1425 = vmatprep.mubr.bf16.mxu0 0
      %1426 = vmatmul.mubr.bf16.gmra.mxu0 %v1369
      %v1427 = vpop.f32.mrf.mxu0
      %v1428 = vadd.f32 0.0, %v1427
      %v1429 = vpop.f32.mrf.mxu0
      %v1430 = vpop.f32.mrf.mxu0
      %v1431 = vadd.f32 0.0, %v1430
      %v1432 = vpop.f32.mrf.mxu0
      %1433 = vmatprep.mubr.bf16.mxu0 0
      %1434 = vmatmul.mubr.bf16.gmra.mxu0 %v1372
      %v1435 = vpop.f32.mrf.mxu0
      %v1436 = vadd.f32 0.0, %v1435
      %v1437 = vpop.f32.mrf.mxu0
      %v1438 = vpop.f32.mrf.mxu0
      %v1439 = vadd.f32 0.0, %v1438
      %v1440 = vpop.f32.mrf.mxu0
      %1441 = vdwg.mxu0
      %v1442 = vsel %vm491, %v1412, -inf
      %1443 = vmax.xlane.f32.xlu0 %v1442
      %v1444 = vpop.xlane.xlu0 %1443
      %v1445 = vsel %vm491, %v1415, -inf
      %1446 = vmax.xlane.f32.xlu0 %v1445
      %v1447 = vpop.xlane.xlu0 %1446
      %v1448 = vsel %vm491, %v1420, -inf
      %1449 = vmax.xlane.f32.xlu0 %v1448
      %v1450 = vpop.xlane.xlu0 %1449
      %v1451 = vsel %vm491, %v1423, -inf
      %1452 = vmax.xlane.f32.xlu0 %v1451
      %v1453 = vpop.xlane.xlu0 %1452
      %v1454 = vsel %vm491, %v1428, -inf
      %1455 = vmax.xlane.f32.xlu0 %v1454
      %v1456 = vpop.xlane.xlu0 %1455
      %v1457 = vsel %vm491, %v1431, -inf
      %1458 = vmax.xlane.f32.xlu0 %v1457
      %v1459 = vpop.xlane.xlu0 %1458
      %v1460 = vsel %vm491, %v1436, -inf
      %1461 = vmax.xlane.f32.xlu0 %v1460
      %v1462 = vpop.xlane.xlu0 %1461
      %v1463 = vsel %vm491, %v1439, -inf
      %1464 = vmax.xlane.f32.xlu0 %v1463
      %v1465 = vpop.xlane.xlu0 %1464
      %v1466 = vsub.f32 %v1412, %v1444
      %v1467 = vsub.f32 %v1415, %v1447
      %v1468 = vsub.f32 %v1420, %v1450
      %v1469 = vsub.f32 %v1423, %v1453
      %v1470 = vsub.f32 %v1428, %v1456
      %v1471 = vsub.f32 %v1431, %v1459
      %v1472 = vsub.f32 %v1436, %v1462
      %v1473 = vsub.f32 %v1439, %v1465
      %v1474 = vmul.f32 %v1466, 1.442695
      %v1475 = vpow.pop %v1474
      %v1476 = vmul.f32 %v1467, 1.442695
      %v1477 = vpow.pop %v1476
      %v1478 = vmul.f32 %v1468, 1.442695
      %v1479 = vpow.pop %v1478
      %v1480 = vmul.f32 %v1469, 1.442695
      %v1481 = vpow.pop %v1480
      %v1482 = vmul.f32 %v1470, 1.442695
      %v1483 = vpow.pop %v1482
      %v1484 = vmul.f32 %v1471, 1.442695
      %v1485 = vpow.pop %v1484
      %v1486 = vmul.f32 %v1472, 1.442695
      %v1487 = vpow.pop %v1486
      %v1488 = vmul.f32 %v1473, 1.442695
      %v1489 = vpow.pop %v1488
      %v1490 = vsel %vm491, %v1475, 0.0
      %1491 = vadd.xlane.f32.xlu0 %v1490
      %v1492 = vpop.xlane.xlu0 %1491
      %v1493 = vsel %vm491, %v1477, 0.0
      %1494 = vadd.xlane.f32.xlu0 %v1493
      %v1495 = vpop.xlane.xlu0 %1494
      %v1496 = vsel %vm491, %v1479, 0.0
      %1497 = vadd.xlane.f32.xlu0 %v1496
      %v1498 = vpop.xlane.xlu0 %1497
      %v1499 = vsel %vm491, %v1481, 0.0
      %1500 = vadd.xlane.f32.xlu0 %v1499
      %v1501 = vpop.xlane.xlu0 %1500
      %v1502 = vsel %vm491, %v1483, 0.0
      %1503 = vadd.xlane.f32.xlu0 %v1502
      %v1504 = vpop.xlane.xlu0 %1503
      %v1505 = vsel %vm491, %v1485, 0.0
      %1506 = vadd.xlane.f32.xlu0 %v1505
      %v1507 = vpop.xlane.xlu0 %1506
      %v1508 = vsel %vm491, %v1487, 0.0
      %1509 = vadd.xlane.f32.xlu0 %v1508
      %v1510 = vpop.xlane.xlu0 %1509
      %v1511 = vsel %vm491, %v1489, 0.0
      %1512 = vadd.xlane.f32.xlu0 %v1511
      %v1513 = vpop.xlane.xlu0 %1512
      %v1514 = vrcp.pop %v1492
      %v1515 = vrcp.pop %v1495
      %v1516 = vrcp.pop %v1498
      %v1517 = vrcp.pop %v1501
      %v1518 = vrcp.pop %v1504
      %v1519 = vrcp.pop %v1507
      %v1520 = vrcp.pop %v1510
      %v1521 = vrcp.pop %v1513
      %v1522 = vmul.f32 %v1475, %v1514
      %v1523 = vmul.f32 %v1477, %v1515
      %v1524 = vmul.f32 %v1479, %v1516
      %v1525 = vmul.f32 %v1481, %v1517
      %v1526 = vmul.f32 %v1483, %v1518
      %v1527 = vmul.f32 %v1485, %v1519
      %v1528 = vmul.f32 %v1487, %v1520
      %v1529 = vmul.f32 %v1489, %v1521
      %v1530 = vpack.c.bf16 %v1523, %v1522
      %v1531 = vpack.c.bf16 %v1525, %v1524
      %v1532 = vpack.c.bf16 %v1527, %v1526
      %v1533 = vpack.c.bf16 %v1529, %v1528
      %v1534 = vrot.slane %v387, 6
      %v1536 = vsel %vm491, %v1534, 0
      %v1539 = vsel %vm491, %v1530, 0
      %v1542 = vsel %vm491, %v1531, 0
      %v1545 = vsel %vm491, %v1532, 0
      %v1548 = vsel %vm491, %v1533, 0
      %1550 = vmatprep.subr.bf16.mxu0 0
      %1551 = vmatpush1.bf16.xpose.msra.mxu0 0
      %1552 = vmatprep.subr.bf16.mxu0 0
      %1553 = vmatpush1.bf16.xpose.msra.mxu0 0
      %1554 = vmatprep.subr.bf16.mxu0 0
      %1555 = vmatpush1.bf16.xpose.msra.mxu0 0
      %1556 = vmatprep.subr.bf16.mxu0 0
      %1557 = vmatpush1.bf16.xpose.msra.mxu0 0
      %1558 = vmatprep.subr.bf16.mxu0 0
      %1559 = vmatpush1.bf16.xpose.msra.mxu0 %v1548
      %1560 = vmatprep.subr.bf16.mxu0 0
      %1561 = vmatpush1.bf16.xpose.msra.mxu0 %v1545
      %1562 = vmatprep.subr.bf16.mxu0 0
      %1563 = vmatpush1.bf16.xpose.msra.mxu0 %v1542
      %1564 = vmatprep.subr.bf16.mxu0 0
      %1565 = vmatpush1.bf16.xpose.msra.mxu0 %v1539
      %1566 = vmatprep.subr.bf16.mxu0 0
      %1567 = vmatpush2.bf16.xpose.msra.mxu0 0
      %1568 = vmatprep.subr.bf16.mxu0 0
      %1569 = vmatpush2.bf16.xpose.msra.mxu0 0
      %1570 = vmatprep.subr.bf16.mxu0 0
      %1571 = vmatpush2.bf16.xpose.msra.mxu0 0
      %1572 = vmatprep.subr.bf16.mxu0 0
      %1573 = vmatpush2.bf16.xpose.msra.mxu0 0
      %1574 = vmatprep.subr.bf16.mxu0 0
      %1575 = vmatpush2.bf16.xpose.msra.mxu0 0
      %1576 = vmatprep.subr.bf16.mxu0 0
      %1577 = vmatpush2.bf16.xpose.msra.mxu0 0
      %1578 = vmatprep.subr.bf16.mxu0 0
      %1579 = vmatpush2.bf16.xpose.msra.mxu0 0
      %1580 = vmatprep.subr.bf16.mxu0 0
      %1581 = vmatpush2.bf16.xpose.msra.mxu0 0
      %1582 = vmatprep.mubr.bf16.mxu0 0
      %1583 = vmatmul.mubr.bf16.gmra.mxu0 %v1536
      %v1584 = vpop.f32.mrf.mxu0
      %v1585 = vadd.f32 0.0, %v1584
      %v1586 = vpop.f32.mrf.mxu0
      %v1587 = vpop.f32.mrf.mxu0
      %v1588 = vpop.f32.mrf.mxu0
      %1589 = vdwg.mxu0
      %v1590 = vpack.c.bf16 %v1585, %v1585
      %1591 = vrot.lane.b32.xlu0 %v648, 116
      %v1592 = vpop.permute.xlu0 %1591
      %1593 = vrot.lane.b32.xlu0 %v649, 116
      %v1594 = vpop.permute.xlu0 %1593
      %v1596 = vsel %vm409, %v1592, 0
      %v1599 = vsel %vm409, %v1594, 0
      %v1602 = vsel %vm422, %v1590, 0
      %1604 = vmatprep.subr.bf16.mxu0 0
      %1605 = vmatpush1.bf16.msra.mxu0 0
      %1606 = vmatprep.subr.bf16.mxu0 0
      %1607 = vmatpush1.bf16.msra.mxu0 0
      %1608 = vmatprep.subr.bf16.mxu0 0
      %1609 = vmatpush1.bf16.msra.mxu0 0
      %1610 = vmatprep.subr.bf16.mxu0 0
      %1611 = vmatpush1.bf16.msra.mxu0 0
      %1612 = vmatprep.subr.bf16.mxu0 0
      %1613 = vmatpush1.bf16.msra.mxu0 0
      %1614 = vmatprep.subr.bf16.mxu0 0
      %1615 = vmatpush1.bf16.msra.mxu0 0
      %1616 = vmatprep.subr.bf16.mxu0 0
      %1617 = vmatpush1.bf16.msra.mxu0 0
      %1618 = vmatprep.subr.bf16.mxu0 0
      %1619 = vmatpush1.bf16.msra.mxu0 %v1602
      %1620 = vmatprep.subr.bf16.mxu0 0
      %1621 = vmatpush2.bf16.msra.mxu0 0
      %1622 = vmatprep.subr.bf16.mxu0 0
      %1623 = vmatpush2.bf16.msra.mxu0 0
      %1624 = vmatprep.subr.bf16.mxu0 0
      %1625 = vmatpush2.bf16.msra.mxu0 0
      %1626 = vmatprep.subr.bf16.mxu0 0
      %1627 = vmatpush2.bf16.msra.mxu0 0
      %1628 = vmatprep.subr.bf16.mxu0 0
      %1629 = vmatpush2.bf16.msra.mxu0 0
      %1630 = vmatprep.subr.bf16.mxu0 0
      %1631 = vmatpush2.bf16.msra.mxu0 0
      %1632 = vmatprep.subr.bf16.mxu0 0
      %1633 = vmatpush2.bf16.msra.mxu0 0
      %1634 = vmatprep.subr.bf16.mxu0 0
      %1635 = vmatpush2.bf16.msra.mxu0 0
      %1636 = vmatprep.mubr.bf16.mxu0 0
      %1637 = vmatmul.mubr.bf16.gmra.mxu0 %v1596
      %v1638 = vpop.f32.mrf.mxu0
      %v1639 = vadd.f32 0.0, %v1638
      %v1640 = vpop.f32.mrf.mxu0
      %v1641 = vpop.f32.mrf.mxu0
      %v1642 = vadd.f32 0.0, %v1641
      %v1643 = vpop.f32.mrf.mxu0
      %1644 = vmatprep.mubr.bf16.mxu0 0
      %1645 = vmatmul.mubr.bf16.gmra.mxu0 %v1599
      %v1646 = vpop.f32.mrf.mxu0
      %v1647 = vadd.f32 0.0, %v1646
      %v1648 = vpop.f32.mrf.mxu0
      %v1649 = vpop.f32.mrf.mxu0
      %v1650 = vadd.f32 0.0, %v1649
      %v1651 = vpop.f32.mrf.mxu0
      %1652 = vdwg.mxu0
      %v1653 = vadd.f32 %v1339, %v1639
      %v1654 = vadd.f32 %v1340, %v1642
      %v1655 = vadd.f32 %v1341, %v1647
      %v1656 = vadd.f32 %v1342, %v1650
      %1657 = vxpose.xlu0.c.b16.start [1/8] %v384, 128
      %1658 = vxpose.xlu0.c.b16.cont [2/8] 0, 128
      %1659 = vxpose.xlu0.c.b16.cont [3/8] 0, 128
      %1660 = vxpose.xlu0.c.b16.cont [4/8] 0, 128
      %1661 = vxpose.xlu0.c.b16.cont [5/8] 0, 128
      %1662 = vxpose.xlu0.c.b16.cont [6/8] 0, 128
      %1663 = vxpose.xlu0.c.b16.cont [7/8] 0, 128
      %1664 = vxpose.xlu0.c.b16.end [8/8] 0, 128
      %v1665 = vpop.trf.xlu0
      %v1666 = vpop.trf.xlu0
      %v1667 = vpop.trf.xlu0
      %v1668 = vpop.trf.xlu0
      %v1669 = vpop.trf.xlu0
      %v1670 = vpop.trf.xlu0
      %v1671 = vpop.trf.xlu0
      %v1672 = vpop.trf.xlu0
      %v1674 = vsel %vm409, %v1665, 0
      %v1677 = vsel %vm409, %v1666, 0
      %v1680 = vsel %vm409, %v1667, 0
      %v1683 = vsel %vm409, %v1668, 0
      %v1686 = vsel %vm422, %v386, 0
      %1688 = vmatprep.subr.bf16.mxu0 0
      %1689 = vmatpush1.bf16.msra.mxu0 0
      %1690 = vmatprep.subr.bf16.mxu0 0
      %1691 = vmatpush1.bf16.msra.mxu0 0
      %1692 = vmatprep.subr.bf16.mxu0 0
      %1693 = vmatpush1.bf16.msra.mxu0 0
      %1694 = vmatprep.subr.bf16.mxu0 0
      %1695 = vmatpush1.bf16.msra.mxu0 0
      %1696 = vmatprep.subr.bf16.mxu0 0
      %1697 = vmatpush1.bf16.msra.mxu0 0
      %1698 = vmatprep.subr.bf16.mxu0 0
      %1699 = vmatpush1.bf16.msra.mxu0 0
      %1700 = vmatprep.subr.bf16.mxu0 0
      %1701 = vmatpush1.bf16.msra.mxu0 0
      %1702 = vmatprep.subr.bf16.mxu0 0
      %1703 = vmatpush1.bf16.msra.mxu0 %v1686
      %1704 = vmatprep.subr.bf16.mxu0 0
      %1705 = vmatpush2.bf16.msra.mxu0 0
      %1706 = vmatprep.subr.bf16.mxu0 0
      %1707 = vmatpush2.bf16.msra.mxu0 0
      %1708 = vmatprep.subr.bf16.mxu0 0
      %1709 = vmatpush2.bf16.msra.mxu0 0
      %1710 = vmatprep.subr.bf16.mxu0 0
      %1711 = vmatpush2.bf16.msra.mxu0 0
      %1712 = vmatprep.subr.bf16.mxu0 0
      %1713 = vmatpush2.bf16.msra.mxu0 0
      %1714 = vmatprep.subr.bf16.mxu0 0
      %1715 = vmatpush2.bf16.msra.mxu0 0
      %1716 = vmatprep.subr.bf16.mxu0 0
      %1717 = vmatpush2.bf16.msra.mxu0 0
      %1718 = vmatprep.subr.bf16.mxu0 0
      %1719 = vmatpush2.bf16.msra.mxu0 0
      %1720 = vmatprep.mubr.bf16.mxu0 0
      %1721 = vmatmul.mubr.bf16.gmra.mxu0 %v1674
      %v1722 = vpop.f32.mrf.mxu0
      %v1723 = vadd.f32 0.0, %v1722
      %v1724 = vpop.f32.mrf.mxu0
      %v1725 = vpop.f32.mrf.mxu0
      %v1726 = vadd.f32 0.0, %v1725
      %v1727 = vpop.f32.mrf.mxu0
      %1728 = vmatprep.mubr.bf16.mxu0 0
      %1729 = vmatmul.mubr.bf16.gmra.mxu0 %v1677
      %v1730 = vpop.f32.mrf.mxu0
      %v1731 = vadd.f32 0.0, %v1730
      %v1732 = vpop.f32.mrf.mxu0
      %v1733 = vpop.f32.mrf.mxu0
      %v1734 = vadd.f32 0.0, %v1733
      %v1735 = vpop.f32.mrf.mxu0
      %1736 = vmatprep.mubr.bf16.mxu0 0
      %1737 = vmatmul.mubr.bf16.gmra.mxu0 %v1680
      %v1738 = vpop.f32.mrf.mxu0
      %v1739 = vadd.f32 0.0, %v1738
      %v1740 = vpop.f32.mrf.mxu0
      %v1741 = vpop.f32.mrf.mxu0
      %v1742 = vadd.f32 0.0, %v1741
      %v1743 = vpop.f32.mrf.mxu0
      %1744 = vmatprep.mubr.bf16.mxu0 0
      %1745 = vmatmul.mubr.bf16.gmra.mxu0 %v1683
      %v1746 = vpop.f32.mrf.mxu0
      %v1747 = vadd.f32 0.0, %v1746
      %v1748 = vpop.f32.mrf.mxu0
      %v1749 = vpop.f32.mrf.mxu0
      %v1750 = vadd.f32 0.0, %v1749
      %v1751 = vpop.f32.mrf.mxu0
      %1752 = vdwg.mxu0
      %v1753 = vsel %vm491, %v1723, -inf
      %1754 = vmax.xlane.f32.xlu0 %v1753
      %v1755 = vpop.xlane.xlu0 %1754
      %v1756 = vsel %vm491, %v1726, -inf
      %1757 = vmax.xlane.f32.xlu0 %v1756
      %v1758 = vpop.xlane.xlu0 %1757
      %v1759 = vsel %vm491, %v1731, -inf
      %1760 = vmax.xlane.f32.xlu0 %v1759
      %v1761 = vpop.xlane.xlu0 %1760
      %v1762 = vsel %vm491, %v1734, -inf
      %1763 = vmax.xlane.f32.xlu0 %v1762
      %v1764 = vpop.xlane.xlu0 %1763
      %v1765 = vsel %vm491, %v1739, -inf
      %1766 = vmax.xlane.f32.xlu0 %v1765
      %v1767 = vpop.xlane.xlu0 %1766
      %v1768 = vsel %vm491, %v1742, -inf
      %1769 = vmax.xlane.f32.xlu0 %v1768
      %v1770 = vpop.xlane.xlu0 %1769
      %v1771 = vsel %vm491, %v1747, -inf
      %1772 = vmax.xlane.f32.xlu0 %v1771
      %v1773 = vpop.xlane.xlu0 %1772
      %v1774 = vsel %vm491, %v1750, -inf
      %1775 = vmax.xlane.f32.xlu0 %v1774
      %v1776 = vpop.xlane.xlu0 %1775
      %v1777 = vsub.f32 %v1723, %v1755
      %v1778 = vsub.f32 %v1726, %v1758
      %v1779 = vsub.f32 %v1731, %v1761
      %v1780 = vsub.f32 %v1734, %v1764
      %v1781 = vsub.f32 %v1739, %v1767
      %v1782 = vsub.f32 %v1742, %v1770
      %v1783 = vsub.f32 %v1747, %v1773
      %v1784 = vsub.f32 %v1750, %v1776
      %v1785 = vmul.f32 %v1777, 1.442695
      %v1786 = vpow.pop %v1785
      %v1787 = vmul.f32 %v1778, 1.442695
      %v1788 = vpow.pop %v1787
      %v1789 = vmul.f32 %v1779, 1.442695
      %v1790 = vpow.pop %v1789
      %v1791 = vmul.f32 %v1780, 1.442695
      %v1792 = vpow.pop %v1791
      %v1793 = vmul.f32 %v1781, 1.442695
      %v1794 = vpow.pop %v1793
      %v1795 = vmul.f32 %v1782, 1.442695
      %v1796 = vpow.pop %v1795
      %v1797 = vmul.f32 %v1783, 1.442695
      %v1798 = vpow.pop %v1797
      %v1799 = vmul.f32 %v1784, 1.442695
      %v1800 = vpow.pop %v1799
      %v1801 = vsel %vm491, %v1786, 0.0
      %1802 = vadd.xlane.f32.xlu0 %v1801
      %v1803 = vpop.xlane.xlu0 %1802
      %v1804 = vsel %vm491, %v1788, 0.0
      %1805 = vadd.xlane.f32.xlu0 %v1804
      %v1806 = vpop.xlane.xlu0 %1805
      %v1807 = vsel %vm491, %v1790, 0.0
      %1808 = vadd.xlane.f32.xlu0 %v1807
      %v1809 = vpop.xlane.xlu0 %1808
      %v1810 = vsel %vm491, %v1792, 0.0
      %1811 = vadd.xlane.f32.xlu0 %v1810
      %v1812 = vpop.xlane.xlu0 %1811
      %v1813 = vsel %vm491, %v1794, 0.0
      %1814 = vadd.xlane.f32.xlu0 %v1813
      %v1815 = vpop.xlane.xlu0 %1814
      %v1816 = vsel %vm491, %v1796, 0.0
      %1817 = vadd.xlane.f32.xlu0 %v1816
      %v1818 = vpop.xlane.xlu0 %1817
      %v1819 = vsel %vm491, %v1798, 0.0
      %1820 = vadd.xlane.f32.xlu0 %v1819
      %v1821 = vpop.xlane.xlu0 %1820
      %v1822 = vsel %vm491, %v1800, 0.0
      %1823 = vadd.xlane.f32.xlu0 %v1822
      %v1824 = vpop.xlane.xlu0 %1823
      %v1825 = vrcp.pop %v1803
      %v1826 = vrcp.pop %v1806
      %v1827 = vrcp.pop %v1809
      %v1828 = vrcp.pop %v1812
      %v1829 = vrcp.pop %v1815
      %v1830 = vrcp.pop %v1818
      %v1831 = vrcp.pop %v1821
      %v1832 = vrcp.pop %v1824
      %v1833 = vmul.f32 %v1786, %v1825
      %v1834 = vmul.f32 %v1788, %v1826
      %v1835 = vmul.f32 %v1790, %v1827
      %v1836 = vmul.f32 %v1792, %v1828
      %v1837 = vmul.f32 %v1794, %v1829
      %v1838 = vmul.f32 %v1796, %v1830
      %v1839 = vmul.f32 %v1798, %v1831
      %v1840 = vmul.f32 %v1800, %v1832
      %v1841 = vpack.c.bf16 %v1834, %v1833
      %v1842 = vpack.c.bf16 %v1836, %v1835
      %v1843 = vpack.c.bf16 %v1838, %v1837
      %v1844 = vpack.c.bf16 %v1840, %v1839
      %v1846 = vsel %vm491, %v388, 0
      %v1849 = vsel %vm491, %v1841, 0
      %v1852 = vsel %vm491, %v1842, 0
      %v1855 = vsel %vm491, %v1843, 0
      %v1858 = vsel %vm491, %v1844, 0
      %1860 = vmatprep.subr.bf16.mxu0 0
      %1861 = vmatpush1.bf16.xpose.msra.mxu0 0
      %1862 = vmatprep.subr.bf16.mxu0 0
      %1863 = vmatpush1.bf16.xpose.msra.mxu0 0
      %1864 = vmatprep.subr.bf16.mxu0 0
      %1865 = vmatpush1.bf16.xpose.msra.mxu0 0
      %1866 = vmatprep.subr.bf16.mxu0 0
      %1867 = vmatpush1.bf16.xpose.msra.mxu0 0
      %1868 = vmatprep.subr.bf16.mxu0 0
      %1869 = vmatpush1.bf16.xpose.msra.mxu0 %v1858
      %1870 = vmatprep.subr.bf16.mxu0 0
      %1871 = vmatpush1.bf16.xpose.msra.mxu0 %v1855
      %1872 = vmatprep.subr.bf16.mxu0 0
      %1873 = vmatpush1.bf16.xpose.msra.mxu0 %v1852
      %1874 = vmatprep.subr.bf16.mxu0 0
      %1875 = vmatpush1.bf16.xpose.msra.mxu0 %v1849
      %1876 = vmatprep.subr.bf16.mxu0 0
      %1877 = vmatpush2.bf16.xpose.msra.mxu0 0
      %1878 = vmatprep.subr.bf16.mxu0 0
      %1879 = vmatpush2.bf16.xpose.msra.mxu0 0
      %1880 = vmatprep.subr.bf16.mxu0 0
      %1881 = vmatpush2.bf16.xpose.msra.mxu0 0
      %1882 = vmatprep.subr.bf16.mxu0 0
      %1883 = vmatpush2.bf16.xpose.msra.mxu0 0
      %1884 = vmatprep.subr.bf16.mxu0 0
      %1885 = vmatpush2.bf16.xpose.msra.mxu0 0
      %1886 = vmatprep.subr.bf16.mxu0 0
      %1887 = vmatpush2.bf16.xpose.msra.mxu0 0
      %1888 = vmatprep.subr.bf16.mxu0 0
      %1889 = vmatpush2.bf16.xpose.msra.mxu0 0
      %1890 = vmatprep.subr.bf16.mxu0 0
      %1891 = vmatpush2.bf16.xpose.msra.mxu0 0
      %1892 = vmatprep.mubr.bf16.mxu0 0
      %1893 = vmatmul.mubr.bf16.gmra.mxu0 %v1846
      %v1894 = vpop.f32.mrf.mxu0
      %v1895 = vadd.f32 0.0, %v1894
      %v1896 = vpop.f32.mrf.mxu0
      %v1897 = vpop.f32.mrf.mxu0
      %v1898 = vpop.f32.mrf.mxu0
      %1899 = vdwg.mxu0
      %v1900 = vpack.c.bf16 %v1895, %v1895
      %1901 = vrot.lane.b32.xlu0 %v648, 112
      %v1902 = vpop.permute.xlu0 %1901
      %1903 = vrot.lane.b32.xlu0 %v649, 112
      %v1904 = vpop.permute.xlu0 %1903
      %v1906 = vsel %vm409, %v1902, 0
      %v1909 = vsel %vm409, %v1904, 0
      %v1912 = vsel %vm422, %v1900, 0
      %1914 = vmatprep.subr.bf16.mxu0 0
      %1915 = vmatpush1.bf16.msra.mxu0 0
      %1916 = vmatprep.subr.bf16.mxu0 0
      %1917 = vmatpush1.bf16.msra.mxu0 0
      %1918 = vmatprep.subr.bf16.mxu0 0
      %1919 = vmatpush1.bf16.msra.mxu0 0
      %1920 = vmatprep.subr.bf16.mxu0 0
      %1921 = vmatpush1.bf16.msra.mxu0 0
      %1922 = vmatprep.subr.bf16.mxu0 0
      %1923 = vmatpush1.bf16.msra.mxu0 0
      %1924 = vmatprep.subr.bf16.mxu0 0
      %1925 = vmatpush1.bf16.msra.mxu0 0
      %1926 = vmatprep.subr.bf16.mxu0 0
      %1927 = vmatpush1.bf16.msra.mxu0 0
      %1928 = vmatprep.subr.bf16.mxu0 0
      %1929 = vmatpush1.bf16.msra.mxu0 %v1912
      %1930 = vmatprep.subr.bf16.mxu0 0
      %1931 = vmatpush2.bf16.msra.mxu0 0
      %1932 = vmatprep.subr.bf16.mxu0 0
      %1933 = vmatpush2.bf16.msra.mxu0 0
      %1934 = vmatprep.subr.bf16.mxu0 0
      %1935 = vmatpush2.bf16.msra.mxu0 0
      %1936 = vmatprep.subr.bf16.mxu0 0
      %1937 = vmatpush2.bf16.msra.mxu0 0
      %1938 = vmatprep.subr.bf16.mxu0 0
      %1939 = vmatpush2.bf16.msra.mxu0 0
      %1940 = vmatprep.subr.bf16.mxu0 0
      %1941 = vmatpush2.bf16.msra.mxu0 0
      %1942 = vmatprep.subr.bf16.mxu0 0
      %1943 = vmatpush2.bf16.msra.mxu0 0
      %1944 = vmatprep.subr.bf16.mxu0 0
      %1945 = vmatpush2.bf16.msra.mxu0 0
      %1946 = vmatprep.mubr.bf16.mxu0 0
      %1947 = vmatmul.mubr.bf16.gmra.mxu0 %v1906
      %v1948 = vpop.f32.mrf.mxu0
      %v1949 = vadd.f32 0.0, %v1948
      %v1950 = vpop.f32.mrf.mxu0
      %v1951 = vpop.f32.mrf.mxu0
      %v1952 = vadd.f32 0.0, %v1951
      %v1953 = vpop.f32.mrf.mxu0
      %1954 = vmatprep.mubr.bf16.mxu0 0
      %1955 = vmatmul.mubr.bf16.gmra.mxu0 %v1909
      %v1956 = vpop.f32.mrf.mxu0
      %v1957 = vadd.f32 0.0, %v1956
      %v1958 = vpop.f32.mrf.mxu0
      %v1959 = vpop.f32.mrf.mxu0
      %v1960 = vadd.f32 0.0, %v1959
      %v1961 = vpop.f32.mrf.mxu0
      %1962 = vdwg.mxu0
      %v1963 = vadd.f32 %v1653, %v1949
      %v1964 = vadd.f32 %v1654, %v1952
      %v1965 = vadd.f32 %v1655, %v1957
      %v1966 = vadd.f32 %v1656, %v1960
      %v1968 = vrot.slane %v384, 2
      %1970 = vxpose.xlu0.c.b16.start [1/8] %v1968, 128
      %1971 = vxpose.xlu0.c.b16.cont [2/8] 0, 128
      %1972 = vxpose.xlu0.c.b16.cont [3/8] 0, 128
      %1973 = vxpose.xlu0.c.b16.cont [4/8] 0, 128
      %1974 = vxpose.xlu0.c.b16.cont [5/8] 0, 128
      %1975 = vxpose.xlu0.c.b16.cont [6/8] 0, 128
      %1976 = vxpose.xlu0.c.b16.cont [7/8] 0, 128
      %1977 = vxpose.xlu0.c.b16.end [8/8] 0, 128
      %v1978 = vpop.trf.xlu0
      %v1979 = vpop.trf.xlu0
      %v1980 = vpop.trf.xlu0
      %v1981 = vpop.trf.xlu0
      %v1982 = vpop.trf.xlu0
      %v1983 = vpop.trf.xlu0
      %v1984 = vpop.trf.xlu0
      %v1985 = vpop.trf.xlu0
      %v1987 = vrot.slane %v386, 2
      %v1989 = vsel %vm409, %v1978, 0
      %v1992 = vsel %vm409, %v1979, 0
      %v1995 = vsel %vm409, %v1980, 0
      %v1998 = vsel %vm409, %v1981, 0
      %v2001 = vsel %vm422, %v1987, 0
      %2003 = vmatprep.subr.bf16.mxu0 0
      %2004 = vmatpush1.bf16.msra.mxu0 0
      %2005 = vmatprep.subr.bf16.mxu0 0
      %2006 = vmatpush1.bf16.msra.mxu0 0
      %2007 = vmatprep.subr.bf16.mxu0 0
      %2008 = vmatpush1.bf16.msra.mxu0 0
      %2009 = vmatprep.subr.bf16.mxu0 0
      %2010 = vmatpush1.bf16.msra.mxu0 0
      %2011 = vmatprep.subr.bf16.mxu0 0
      %2012 = vmatpush1.bf16.msra.mxu0 0
      %2013 = vmatprep.subr.bf16.mxu0 0
      %2014 = vmatpush1.bf16.msra.mxu0 0
      %2015 = vmatprep.subr.bf16.mxu0 0
      %2016 = vmatpush1.bf16.msra.mxu0 0
      %2017 = vmatprep.subr.bf16.mxu0 0
      %2018 = vmatpush1.bf16.msra.mxu0 %v2001
      %2019 = vmatprep.subr.bf16.mxu0 0
      %2020 = vmatpush2.bf16.msra.mxu0 0
      %2021 = vmatprep.subr.bf16.mxu0 0
      %2022 = vmatpush2.bf16.msra.mxu0 0
      %2023 = vmatprep.subr.bf16.mxu0 0
      %2024 = vmatpush2.bf16.msra.mxu0 0
      %2025 = vmatprep.subr.bf16.mxu0 0
      %2026 = vmatpush2.bf16.msra.mxu0 0
      %2027 = vmatprep.subr.bf16.mxu0 0
      %2028 = vmatpush2.bf16.msra.mxu0 0
      %2029 = vmatprep.subr.bf16.mxu0 0
      %2030 = vmatpush2.bf16.msra.mxu0 0
      %2031 = vmatprep.subr.bf16.mxu0 0
      %2032 = vmatpush2.bf16.msra.mxu0 0
      %2033 = vmatprep.subr.bf16.mxu0 0
      %2034 = vmatpush2.bf16.msra.mxu0 0
      %2035 = vmatprep.mubr.bf16.mxu0 0
      %2036 = vmatmul.mubr.bf16.gmra.mxu0 %v1989
      %v2037 = vpop.f32.mrf.mxu0
      %v2038 = vadd.f32 0.0, %v2037
      %v2039 = vpop.f32.mrf.mxu0
      %v2040 = vpop.f32.mrf.mxu0
      %v2041 = vadd.f32 0.0, %v2040
      %v2042 = vpop.f32.mrf.mxu0
      %2043 = vmatprep.mubr.bf16.mxu0 0
      %2044 = vmatmul.mubr.bf16.gmra.mxu0 %v1992
      %v2045 = vpop.f32.mrf.mxu0
      %v2046 = vadd.f32 0.0, %v2045
      %v2047 = vpop.f32.mrf.mxu0
      %v2048 = vpop.f32.mrf.mxu0
      %v2049 = vadd.f32 0.0, %v2048
      %v2050 = vpop.f32.mrf.mxu0
      %2051 = vmatprep.mubr.bf16.mxu0 0
      %2052 = vmatmul.mubr.bf16.gmra.mxu0 %v1995
      %v2053 = vpop.f32.mrf.mxu0
      %v2054 = vadd.f32 0.0, %v2053
      %v2055 = vpop.f32.mrf.mxu0
      %v2056 = vpop.f32.mrf.mxu0
      %v2057 = vadd.f32 0.0, %v2056
      %v2058 = vpop.f32.mrf.mxu0
      %2059 = vmatprep.mubr.bf16.mxu0 0
      %2060 = vmatmul.mubr.bf16.gmra.mxu0 %v1998
      %v2061 = vpop.f32.mrf.mxu0
      %v2062 = vadd.f32 0.0, %v2061
      %v2063 = vpop.f32.mrf.mxu0
      %v2064 = vpop.f32.mrf.mxu0
      %v2065 = vadd.f32 0.0, %v2064
      %v2066 = vpop.f32.mrf.mxu0
      %2067 = vdwg.mxu0
      %v2068 = vsel %vm491, %v2038, -inf
      %2069 = vmax.xlane.f32.xlu0 %v2068
      %v2070 = vpop.xlane.xlu0 %2069
      %v2071 = vsel %vm491, %v2041, -inf
      %2072 = vmax.xlane.f32.xlu0 %v2071
      %v2073 = vpop.xlane.xlu0 %2072
      %v2074 = vsel %vm491, %v2046, -inf
      %2075 = vmax.xlane.f32.xlu0 %v2074
      %v2076 = vpop.xlane.xlu0 %2075
      %v2077 = vsel %vm491, %v2049, -inf
      %2078 = vmax.xlane.f32.xlu0 %v2077
      %v2079 = vpop.xlane.xlu0 %2078
      %v2080 = vsel %vm491, %v2054, -inf
      %2081 = vmax.xlane.f32.xlu0 %v2080
      %v2082 = vpop.xlane.xlu0 %2081
      %v2083 = vsel %vm491, %v2057, -inf
      %2084 = vmax.xlane.f32.xlu0 %v2083
      %v2085 = vpop.xlane.xlu0 %2084
      %v2086 = vsel %vm491, %v2062, -inf
      %2087 = vmax.xlane.f32.xlu0 %v2086
      %v2088 = vpop.xlane.xlu0 %2087
      %v2089 = vsel %vm491, %v2065, -inf
      %2090 = vmax.xlane.f32.xlu0 %v2089
      %v2091 = vpop.xlane.xlu0 %2090
      %v2092 = vsub.f32 %v2038, %v2070
      %v2093 = vsub.f32 %v2041, %v2073
      %v2094 = vsub.f32 %v2046, %v2076
      %v2095 = vsub.f32 %v2049, %v2079
      %v2096 = vsub.f32 %v2054, %v2082
      %v2097 = vsub.f32 %v2057, %v2085
      %v2098 = vsub.f32 %v2062, %v2088
      %v2099 = vsub.f32 %v2065, %v2091
      %v2100 = vmul.f32 %v2092, 1.442695
      %v2101 = vpow.pop %v2100
      %v2102 = vmul.f32 %v2093, 1.442695
      %v2103 = vpow.pop %v2102
      %v2104 = vmul.f32 %v2094, 1.442695
      %v2105 = vpow.pop %v2104
      %v2106 = vmul.f32 %v2095, 1.442695
      %v2107 = vpow.pop %v2106
      %v2108 = vmul.f32 %v2096, 1.442695
      %v2109 = vpow.pop %v2108
      %v2110 = vmul.f32 %v2097, 1.442695
      %v2111 = vpow.pop %v2110
      %v2112 = vmul.f32 %v2098, 1.442695
      %v2113 = vpow.pop %v2112
      %v2114 = vmul.f32 %v2099, 1.442695
      %v2115 = vpow.pop %v2114
      %v2116 = vsel %vm491, %v2101, 0.0
      %2117 = vadd.xlane.f32.xlu0 %v2116
      %v2118 = vpop.xlane.xlu0 %2117
      %v2119 = vsel %vm491, %v2103, 0.0
      %2120 = vadd.xlane.f32.xlu0 %v2119
      %v2121 = vpop.xlane.xlu0 %2120
      %v2122 = vsel %vm491, %v2105, 0.0
      %2123 = vadd.xlane.f32.xlu0 %v2122
      %v2124 = vpop.xlane.xlu0 %2123
      %v2125 = vsel %vm491, %v2107, 0.0
      %2126 = vadd.xlane.f32.xlu0 %v2125
      %v2127 = vpop.xlane.xlu0 %2126
      %v2128 = vsel %vm491, %v2109, 0.0
      %2129 = vadd.xlane.f32.xlu0 %v2128
      %v2130 = vpop.xlane.xlu0 %2129
      %v2131 = vsel %vm491, %v2111, 0.0
      %2132 = vadd.xlane.f32.xlu0 %v2131
      %v2133 = vpop.xlane.xlu0 %2132
      %v2134 = vsel %vm491, %v2113, 0.0
      %2135 = vadd.xlane.f32.xlu0 %v2134
      %v2136 = vpop.xlane.xlu0 %2135
      %v2137 = vsel %vm491, %v2115, 0.0
      %2138 = vadd.xlane.f32.xlu0 %v2137
      %v2139 = vpop.xlane.xlu0 %2138
      %v2140 = vrcp.pop %v2118
      %v2141 = vrcp.pop %v2121
      %v2142 = vrcp.pop %v2124
      %v2143 = vrcp.pop %v2127
      %v2144 = vrcp.pop %v2130
      %v2145 = vrcp.pop %v2133
      %v2146 = vrcp.pop %v2136
      %v2147 = vrcp.pop %v2139
      %v2148 = vmul.f32 %v2101, %v2140
      %v2149 = vmul.f32 %v2103, %v2141
      %v2150 = vmul.f32 %v2105, %v2142
      %v2151 = vmul.f32 %v2107, %v2143
      %v2152 = vmul.f32 %v2109, %v2144
      %v2153 = vmul.f32 %v2111, %v2145
      %v2154 = vmul.f32 %v2113, %v2146
      %v2155 = vmul.f32 %v2115, %v2147
      %v2156 = vpack.c.bf16 %v2149, %v2148
      %v2157 = vpack.c.bf16 %v2151, %v2150
      %v2158 = vpack.c.bf16 %v2153, %v2152
      %v2159 = vpack.c.bf16 %v2155, %v2154
      %v2161 = vrot.slane %v388, 2
      %v2163 = vsel %vm491, %v2161, 0
      %v2166 = vsel %vm491, %v2156, 0
      %v2169 = vsel %vm491, %v2157, 0
      %v2172 = vsel %vm491, %v2158, 0
      %v2175 = vsel %vm491, %v2159, 0
      %2177 = vmatprep.subr.bf16.mxu0 0
      %2178 = vmatpush1.bf16.xpose.msra.mxu0 0
      %2179 = vmatprep.subr.bf16.mxu0 0
      %2180 = vmatpush1.bf16.xpose.msra.mxu0 0
      %2181 = vmatprep.subr.bf16.mxu0 0
      %2182 = vmatpush1.bf16.xpose.msra.mxu0 0
      %2183 = vmatprep.subr.bf16.mxu0 0
      %2184 = vmatpush1.bf16.xpose.msra.mxu0 0
      %2185 = vmatprep.subr.bf16.mxu0 0
      %2186 = vmatpush1.bf16.xpose.msra.mxu0 %v2175
      %2187 = vmatprep.subr.bf16.mxu0 0
      %2188 = vmatpush1.bf16.xpose.msra.mxu0 %v2172
      %2189 = vmatprep.subr.bf16.mxu0 0
      %2190 = vmatpush1.bf16.xpose.msra.mxu0 %v2169
      %2191 = vmatprep.subr.bf16.mxu0 0
      %2192 = vmatpush1.bf16.xpose.msra.mxu0 %v2166
      %2193 = vmatprep.subr.bf16.mxu0 0
      %2194 = vmatpush2.bf16.xpose.msra.mxu0 0
      %2195 = vmatprep.subr.bf16.mxu0 0
      %2196 = vmatpush2.bf16.xpose.msra.mxu0 0
      %2197 = vmatprep.subr.bf16.mxu0 0
      %2198 = vmatpush2.bf16.xpose.msra.mxu0 0
      %2199 = vmatprep.subr.bf16.mxu0 0
      %2200 = vmatpush2.bf16.xpose.msra.mxu0 0
      %2201 = vmatprep.subr.bf16.mxu0 0
      %2202 = vmatpush2.bf16.xpose.msra.mxu0 0
      %2203 = vmatprep.subr.bf16.mxu0 0
      %2204 = vmatpush2.bf16.xpose.msra.mxu0 0
      %2205 = vmatprep.subr.bf16.mxu0 0
      %2206 = vmatpush2.bf16.xpose.msra.mxu0 0
      %2207 = vmatprep.subr.bf16.mxu0 0
      %2208 = vmatpush2.bf16.xpose.msra.mxu0 0
      %2209 = vmatprep.mubr.bf16.mxu0 0
      %2210 = vmatmul.mubr.bf16.gmra.mxu0 %v2163
      %v2211 = vpop.f32.mrf.mxu0
      %v2212 = vadd.f32 0.0, %v2211
      %v2213 = vpop.f32.mrf.mxu0
      %v2214 = vpop.f32.mrf.mxu0
      %v2215 = vpop.f32.mrf.mxu0
      %2216 = vdwg.mxu0
      %v2217 = vpack.c.bf16 %v2212, %v2212
      %2218 = vrot.lane.b32.xlu0 %v648, 108
      %v2219 = vpop.permute.xlu0 %2218
      %2220 = vrot.lane.b32.xlu0 %v649, 108
      %v2221 = vpop.permute.xlu0 %2220
      %v2223 = vsel %vm409, %v2219, 0
      %v2226 = vsel %vm409, %v2221, 0
      %v2229 = vsel %vm422, %v2217, 0
      %2231 = vmatprep.subr.bf16.mxu0 0
      %2232 = vmatpush1.bf16.msra.mxu0 0
      %2233 = vmatprep.subr.bf16.mxu0 0
      %2234 = vmatpush1.bf16.msra.mxu0 0
      %2235 = vmatprep.subr.bf16.mxu0 0
      %2236 = vmatpush1.bf16.msra.mxu0 0
      %2237 = vmatprep.subr.bf16.mxu0 0
      %2238 = vmatpush1.bf16.msra.mxu0 0
      %2239 = vmatprep.subr.bf16.mxu0 0
      %2240 = vmatpush1.bf16.msra.mxu0 0
      %2241 = vmatprep.subr.bf16.mxu0 0
      %2242 = vmatpush1.bf16.msra.mxu0 0
      %2243 = vmatprep.subr.bf16.mxu0 0
      %2244 = vmatpush1.bf16.msra.mxu0 0
      %2245 = vmatprep.subr.bf16.mxu0 0
      %2246 = vmatpush1.bf16.msra.mxu0 %v2229
      %2247 = vmatprep.subr.bf16.mxu0 0
      %2248 = vmatpush2.bf16.msra.mxu0 0
      %2249 = vmatprep.subr.bf16.mxu0 0
      %2250 = vmatpush2.bf16.msra.mxu0 0
      %2251 = vmatprep.subr.bf16.mxu0 0
      %2252 = vmatpush2.bf16.msra.mxu0 0
      %2253 = vmatprep.subr.bf16.mxu0 0
      %2254 = vmatpush2.bf16.msra.mxu0 0
      %2255 = vmatprep.subr.bf16.mxu0 0
      %2256 = vmatpush2.bf16.msra.mxu0 0
      %2257 = vmatprep.subr.bf16.mxu0 0
      %2258 = vmatpush2.bf16.msra.mxu0 0
      %2259 = vmatprep.subr.bf16.mxu0 0
      %2260 = vmatpush2.bf16.msra.mxu0 0
      %2261 = vmatprep.subr.bf16.mxu0 0
      %2262 = vmatpush2.bf16.msra.mxu0 0
      %2263 = vmatprep.mubr.bf16.mxu0 0
      %2264 = vmatmul.mubr.bf16.gmra.mxu0 %v2223
      %v2265 = vpop.f32.mrf.mxu0
      %v2266 = vadd.f32 0.0, %v2265
      %v2267 = vpop.f32.mrf.mxu0
      %v2268 = vpop.f32.mrf.mxu0
      %v2269 = vadd.f32 0.0, %v2268
      %v2270 = vpop.f32.mrf.mxu0
      %2271 = vmatprep.mubr.bf16.mxu0 0
      %2272 = vmatmul.mubr.bf16.gmra.mxu0 %v2226
      %v2273 = vpop.f32.mrf.mxu0
      %v2274 = vadd.f32 0.0, %v2273
      %v2275 = vpop.f32.mrf.mxu0
      %v2276 = vpop.f32.mrf.mxu0
      %v2277 = vadd.f32 0.0, %v2276
      %v2278 = vpop.f32.mrf.mxu0
      %2279 = vdwg.mxu0
      %v2280 = vadd.f32 %v1963, %v2266
      %v2281 = vadd.f32 %v1964, %v2269
      %v2282 = vadd.f32 %v1965, %v2274
      %v2283 = vadd.f32 %v1966, %v2277
      %v2284 = vrot.slane %v384, 4
      %2286 = vxpose.xlu0.c.b16.start [1/8] %v2284, 128
      %2287 = vxpose.xlu0.c.b16.cont [2/8] 0, 128
      %2288 = vxpose.xlu0.c.b16.cont [3/8] 0, 128
      %2289 = vxpose.xlu0.c.b16.cont [4/8] 0, 128
      %2290 = vxpose.xlu0.c.b16.cont [5/8] 0, 128
      %2291 = vxpose.xlu0.c.b16.cont [6/8] 0, 128
      %2292 = vxpose.xlu0.c.b16.cont [7/8] 0, 128
      %2293 = vxpose.xlu0.c.b16.end [8/8] 0, 128
      %v2294 = vpop.trf.xlu0
      %v2295 = vpop.trf.xlu0
      %v2296 = vpop.trf.xlu0
      %v2297 = vpop.trf.xlu0
      %v2298 = vpop.trf.xlu0
      %v2299 = vpop.trf.xlu0
      %v2300 = vpop.trf.xlu0
      %v2301 = vpop.trf.xlu0
      %v2302 = vrot.slane %v386, 4
      %v2304 = vsel %vm409, %v2294, 0
      %v2307 = vsel %vm409, %v2295, 0
      %v2310 = vsel %vm409, %v2296, 0
      %v2313 = vsel %vm409, %v2297, 0
      %v2316 = vsel %vm422, %v2302, 0
      %2318 = vmatprep.subr.bf16.mxu0 0
      %2319 = vmatpush1.bf16.msra.mxu0 0
      %2320 = vmatprep.subr.bf16.mxu0 0
      %2321 = vmatpush1.bf16.msra.mxu0 0
      %2322 = vmatprep.subr.bf16.mxu0 0
      %2323 = vmatpush1.bf16.msra.mxu0 0
      %2324 = vmatprep.subr.bf16.mxu0 0
      %2325 = vmatpush1.bf16.msra.mxu0 0
      %2326 = vmatprep.subr.bf16.mxu0 0
      %2327 = vmatpush1.bf16.msra.mxu0 0
      %2328 = vmatprep.subr.bf16.mxu0 0
      %2329 = vmatpush1.bf16.msra.mxu0 0
      %2330 = vmatprep.subr.bf16.mxu0 0
      %2331 = vmatpush1.bf16.msra.mxu0 0
      %2332 = vmatprep.subr.bf16.mxu0 0
      %2333 = vmatpush1.bf16.msra.mxu0 %v2316
      %2334 = vmatprep.subr.bf16.mxu0 0
      %2335 = vmatpush2.bf16.msra.mxu0 0
      %2336 = vmatprep.subr.bf16.mxu0 0
      %2337 = vmatpush2.bf16.msra.mxu0 0
      %2338 = vmatprep.subr.bf16.mxu0 0
      %2339 = vmatpush2.bf16.msra.mxu0 0
      %2340 = vmatprep.subr.bf16.mxu0 0
      %2341 = vmatpush2.bf16.msra.mxu0 0
      %2342 = vmatprep.subr.bf16.mxu0 0
      %2343 = vmatpush2.bf16.msra.mxu0 0
      %2344 = vmatprep.subr.bf16.mxu0 0
      %2345 = vmatpush2.bf16.msra.mxu0 0
      %2346 = vmatprep.subr.bf16.mxu0 0
      %2347 = vmatpush2.bf16.msra.mxu0 0
      %2348 = vmatprep.subr.bf16.mxu0 0
      %2349 = vmatpush2.bf16.msra.mxu0 0
      %2350 = vmatprep.mubr.bf16.mxu0 0
      %2351 = vmatmul.mubr.bf16.gmra.mxu0 %v2304
      %v2352 = vpop.f32.mrf.mxu0
      %v2353 = vadd.f32 0.0, %v2352
      %v2354 = vpop.f32.mrf.mxu0
      %v2355 = vpop.f32.mrf.mxu0
      %v2356 = vadd.f32 0.0, %v2355
      %v2357 = vpop.f32.mrf.mxu0
      %2358 = vmatprep.mubr.bf16.mxu0 0
      %2359 = vmatmul.mubr.bf16.gmra.mxu0 %v2307
      %v2360 = vpop.f32.mrf.mxu0
      %v2361 = vadd.f32 0.0, %v2360
      %v2362 = vpop.f32.mrf.mxu0
      %v2363 = vpop.f32.mrf.mxu0
      %v2364 = vadd.f32 0.0, %v2363
      %v2365 = vpop.f32.mrf.mxu0
      %2366 = vmatprep.mubr.bf16.mxu0 0
      %2367 = vmatmul.mubr.bf16.gmra.mxu0 %v2310
      %v2368 = vpop.f32.mrf.mxu0
      %v2369 = vadd.f32 0.0, %v2368
      %v2370 = vpop.f32.mrf.mxu0
      %v2371 = vpop.f32.mrf.mxu0
      %v2372 = vadd.f32 0.0, %v2371
      %v2373 = vpop.f32.mrf.mxu0
      %2374 = vmatprep.mubr.bf16.mxu0 0
      %2375 = vmatmul.mubr.bf16.gmra.mxu0 %v2313
      %v2376 = vpop.f32.mrf.mxu0
      %v2377 = vadd.f32 0.0, %v2376
      %v2378 = vpop.f32.mrf.mxu0
      %v2379 = vpop.f32.mrf.mxu0
      %v2380 = vadd.f32 0.0, %v2379
      %v2381 = vpop.f32.mrf.mxu0
      %2382 = vdwg.mxu0
      %v2383 = vsel %vm491, %v2353, -inf
      %2384 = vmax.xlane.f32.xlu0 %v2383
      %v2385 = vpop.xlane.xlu0 %2384
      %v2386 = vsel %vm491, %v2356, -inf
      %2387 = vmax.xlane.f32.xlu0 %v2386
      %v2388 = vpop.xlane.xlu0 %2387
      %v2389 = vsel %vm491, %v2361, -inf
      %2390 = vmax.xlane.f32.xlu0 %v2389
      %v2391 = vpop.xlane.xlu0 %2390
      %v2392 = vsel %vm491, %v2364, -inf
      %2393 = vmax.xlane.f32.xlu0 %v2392
      %v2394 = vpop.xlane.xlu0 %2393
      %v2395 = vsel %vm491, %v2369, -inf
      %2396 = vmax.xlane.f32.xlu0 %v2395
      %v2397 = vpop.xlane.xlu0 %2396
      %v2398 = vsel %vm491, %v2372, -inf
      %2399 = vmax.xlane.f32.xlu0 %v2398
      %v2400 = vpop.xlane.xlu0 %2399
      %v2401 = vsel %vm491, %v2377, -inf
      %2402 = vmax.xlane.f32.xlu0 %v2401
      %v2403 = vpop.xlane.xlu0 %2402
      %v2404 = vsel %vm491, %v2380, -inf
      %2405 = vmax.xlane.f32.xlu0 %v2404
      %v2406 = vpop.xlane.xlu0 %2405
      %v2407 = vsub.f32 %v2353, %v2385
      %v2408 = vsub.f32 %v2356, %v2388
      %v2409 = vsub.f32 %v2361, %v2391
      %v2410 = vsub.f32 %v2364, %v2394
      %v2411 = vsub.f32 %v2369, %v2397
      %v2412 = vsub.f32 %v2372, %v2400
      %v2413 = vsub.f32 %v2377, %v2403
      %v2414 = vsub.f32 %v2380, %v2406
      %v2415 = vmul.f32 %v2407, 1.442695
      %v2416 = vpow.pop %v2415
      %v2417 = vmul.f32 %v2408, 1.442695
      %v2418 = vpow.pop %v2417
      %v2419 = vmul.f32 %v2409, 1.442695
      %v2420 = vpow.pop %v2419
      %v2421 = vmul.f32 %v2410, 1.442695
      %v2422 = vpow.pop %v2421
      %v2423 = vmul.f32 %v2411, 1.442695
      %v2424 = vpow.pop %v2423
      %v2425 = vmul.f32 %v2412, 1.442695
      %v2426 = vpow.pop %v2425
      %v2427 = vmul.f32 %v2413, 1.442695
      %v2428 = vpow.pop %v2427
      %v2429 = vmul.f32 %v2414, 1.442695
      %v2430 = vpow.pop %v2429
      %v2431 = vsel %vm491, %v2416, 0.0
      %2432 = vadd.xlane.f32.xlu0 %v2431
      %v2433 = vpop.xlane.xlu0 %2432
      %v2434 = vsel %vm491, %v2418, 0.0
      %2435 = vadd.xlane.f32.xlu0 %v2434
      %v2436 = vpop.xlane.xlu0 %2435
      %v2437 = vsel %vm491, %v2420, 0.0
      %2438 = vadd.xlane.f32.xlu0 %v2437
      %v2439 = vpop.xlane.xlu0 %2438
      %v2440 = vsel %vm491, %v2422, 0.0
      %2441 = vadd.xlane.f32.xlu0 %v2440
      %v2442 = vpop.xlane.xlu0 %2441
      %v2443 = vsel %vm491, %v2424, 0.0
      %2444 = vadd.xlane.f32.xlu0 %v2443
      %v2445 = vpop.xlane.xlu0 %2444
      %v2446 = vsel %vm491, %v2426, 0.0
      %2447 = vadd.xlane.f32.xlu0 %v2446
      %v2448 = vpop.xlane.xlu0 %2447
      %v2449 = vsel %vm491, %v2428, 0.0
      %2450 = vadd.xlane.f32.xlu0 %v2449
      %v2451 = vpop.xlane.xlu0 %2450
      %v2452 = vsel %vm491, %v2430, 0.0
      %2453 = vadd.xlane.f32.xlu0 %v2452
      %v2454 = vpop.xlane.xlu0 %2453
      %v2455 = vrcp.pop %v2433
      %v2456 = vrcp.pop %v2436
      %v2457 = vrcp.pop %v2439
      %v2458 = vrcp.pop %v2442
      %v2459 = vrcp.pop %v2445
      %v2460 = vrcp.pop %v2448
      %v2461 = vrcp.pop %v2451
      %v2462 = vrcp.pop %v2454
      %v2463 = vmul.f32 %v2416, %v2455
      %v2464 = vmul.f32 %v2418, %v2456
      %v2465 = vmul.f32 %v2420, %v2457
      %v2466 = vmul.f32 %v2422, %v2458
      %v2467 = vmul.f32 %v2424, %v2459
      %v2468 = vmul.f32 %v2426, %v2460
      %v2469 = vmul.f32 %v2428, %v2461
      %v2470 = vmul.f32 %v2430, %v2462
      %v2471 = vpack.c.bf16 %v2464, %v2463
      %v2472 = vpack.c.bf16 %v2466, %v2465
      %v2473 = vpack.c.bf16 %v2468, %v2467
      %v2474 = vpack.c.bf16 %v2470, %v2469
      %v2475 = vrot.slane %v388, 4
      %v2477 = vsel %vm491, %v2475, 0
      %v2480 = vsel %vm491, %v2471, 0
      %v2483 = vsel %vm491, %v2472, 0
      %v2486 = vsel %vm491, %v2473, 0
      %v2489 = vsel %vm491, %v2474, 0
      %2491 = vmatprep.subr.bf16.mxu0 0
      %2492 = vmatpush1.bf16.xpose.msra.mxu0 0
      %2493 = vmatprep.subr.bf16.mxu0 0
      %2494 = vmatpush1.bf16.xpose.msra.mxu0 0
      %2495 = vmatprep.subr.bf16.mxu0 0
      %2496 = vmatpush1.bf16.xpose.msra.mxu0 0
      %2497 = vmatprep.subr.bf16.mxu0 0
      %2498 = vmatpush1.bf16.xpose.msra.mxu0 0
      %2499 = vmatprep.subr.bf16.mxu0 0
      %2500 = vmatpush1.bf16.xpose.msra.mxu0 %v2489
      %2501 = vmatprep.subr.bf16.mxu0 0
      %2502 = vmatpush1.bf16.xpose.msra.mxu0 %v2486
      %2503 = vmatprep.subr.bf16.mxu0 0
      %2504 = vmatpush1.bf16.xpose.msra.mxu0 %v2483
      %2505 = vmatprep.subr.bf16.mxu0 0
      %2506 = vmatpush1.bf16.xpose.msra.mxu0 %v2480
      %2507 = vmatprep.subr.bf16.mxu0 0
      %2508 = vmatpush2.bf16.xpose.msra.mxu0 0
      %2509 = vmatprep.subr.bf16.mxu0 0
      %2510 = vmatpush2.bf16.xpose.msra.mxu0 0
      %2511 = vmatprep.subr.bf16.mxu0 0
      %2512 = vmatpush2.bf16.xpose.msra.mxu0 0
      %2513 = vmatprep.subr.bf16.mxu0 0
      %2514 = vmatpush2.bf16.xpose.msra.mxu0 0
      %2515 = vmatprep.subr.bf16.mxu0 0
      %2516 = vmatpush2.bf16.xpose.msra.mxu0 0
      %2517 = vmatprep.subr.bf16.mxu0 0
      %2518 = vmatpush2.bf16.xpose.msra.mxu0 0
      %2519 = vmatprep.subr.bf16.mxu0 0
      %2520 = vmatpush2.bf16.xpose.msra.mxu0 0
      %2521 = vmatprep.subr.bf16.mxu0 0
      %2522 = vmatpush2.bf16.xpose.msra.mxu0 0
      %2523 = vmatprep.mubr.bf16.mxu0 0
      %2524 = vmatmul.mubr.bf16.gmra.mxu0 %v2477
      %v2525 = vpop.f32.mrf.mxu0
      %v2526 = vadd.f32 0.0, %v2525
      %v2527 = vpop.f32.mrf.mxu0
      %v2528 = vpop.f32.mrf.mxu0
      %v2529 = vpop.f32.mrf.mxu0
      %2530 = vdwg.mxu0
      %v2531 = vpack.c.bf16 %v2526, %v2526
      %2532 = vrot.lane.b32.xlu0 %v648, 104
      %v2533 = vpop.permute.xlu0 %2532
      %2534 = vrot.lane.b32.xlu0 %v649, 104
      %v2535 = vpop.permute.xlu0 %2534
      %v2537 = vsel %vm409, %v2533, 0
      %v2540 = vsel %vm409, %v2535, 0
      %v2543 = vsel %vm422, %v2531, 0
      %2545 = vmatprep.subr.bf16.mxu0 0
      %2546 = vmatpush1.bf16.msra.mxu0 0
      %2547 = vmatprep.subr.bf16.mxu0 0
      %2548 = vmatpush1.bf16.msra.mxu0 0
      %2549 = vmatprep.subr.bf16.mxu0 0
      %2550 = vmatpush1.bf16.msra.mxu0 0
      %2551 = vmatprep.subr.bf16.mxu0 0
      %2552 = vmatpush1.bf16.msra.mxu0 0
      %2553 = vmatprep.subr.bf16.mxu0 0
      %2554 = vmatpush1.bf16.msra.mxu0 0
      %2555 = vmatprep.subr.bf16.mxu0 0
      %2556 = vmatpush1.bf16.msra.mxu0 0
      %2557 = vmatprep.subr.bf16.mxu0 0
      %2558 = vmatpush1.bf16.msra.mxu0 0
      %2559 = vmatprep.subr.bf16.mxu0 0
      %2560 = vmatpush1.bf16.msra.mxu0 %v2543
      %2561 = vmatprep.subr.bf16.mxu0 0
      %2562 = vmatpush2.bf16.msra.mxu0 0
      %2563 = vmatprep.subr.bf16.mxu0 0
      %2564 = vmatpush2.bf16.msra.mxu0 0
      %2565 = vmatprep.subr.bf16.mxu0 0
      %2566 = vmatpush2.bf16.msra.mxu0 0
      %2567 = vmatprep.subr.bf16.mxu0 0
      %2568 = vmatpush2.bf16.msra.mxu0 0
      %2569 = vmatprep.subr.bf16.mxu0 0
      %2570 = vmatpush2.bf16.msra.mxu0 0
      %2571 = vmatprep.subr.bf16.mxu0 0
      %2572 = vmatpush2.bf16.msra.mxu0 0
      %2573 = vmatprep.subr.bf16.mxu0 0
      %2574 = vmatpush2.bf16.msra.mxu0 0
      %2575 = vmatprep.subr.bf16.mxu0 0
      %2576 = vmatpush2.bf16.msra.mxu0 0
      %2577 = vmatprep.mubr.bf16.mxu0 0
      %2578 = vmatmul.mubr.bf16.gmra.mxu0 %v2537
      %v2579 = vpop.f32.mrf.mxu0
      %v2580 = vadd.f32 0.0, %v2579
      %v2581 = vpop.f32.mrf.mxu0
      %v2582 = vpop.f32.mrf.mxu0
      %v2583 = vadd.f32 0.0, %v2582
      %v2584 = vpop.f32.mrf.mxu0
      %2585 = vmatprep.mubr.bf16.mxu0 0
      %2586 = vmatmul.mubr.bf16.gmra.mxu0 %v2540
      %v2587 = vpop.f32.mrf.mxu0
      %v2588 = vadd.f32 0.0, %v2587
      %v2589 = vpop.f32.mrf.mxu0
      %v2590 = vpop.f32.mrf.mxu0
      %v2591 = vadd.f32 0.0, %v2590
      %v2592 = vpop.f32.mrf.mxu0
      %2593 = vdwg.mxu0
      %v2594 = vadd.f32 %v2280, %v2580
      %v2595 = vadd.f32 %v2281, %v2583
      %v2596 = vadd.f32 %v2282, %v2588
      %v2597 = vadd.f32 %v2283, %v2591
      %v2598 = vrot.slane %v384, 6
      %2600 = vxpose.xlu0.c.b16.start [1/8] %v2598, 128
      %2601 = vxpose.xlu0.c.b16.cont [2/8] 0, 128
      %2602 = vxpose.xlu0.c.b16.cont [3/8] 0, 128
      %2603 = vxpose.xlu0.c.b16.cont [4/8] 0, 128
      %2604 = vxpose.xlu0.c.b16.cont [5/8] 0, 128
      %2605 = vxpose.xlu0.c.b16.cont [6/8] 0, 128
      %2606 = vxpose.xlu0.c.b16.cont [7/8] 0, 128
      %2607 = vxpose.xlu0.c.b16.end [8/8] 0, 128
      %v2608 = vpop.trf.xlu0
      %v2609 = vpop.trf.xlu0
      %v2610 = vpop.trf.xlu0
      %v2611 = vpop.trf.xlu0
      %v2612 = vpop.trf.xlu0
      %v2613 = vpop.trf.xlu0
      %v2614 = vpop.trf.xlu0
      %v2615 = vpop.trf.xlu0
      %v2616 = vrot.slane %v386, 6
      %v2618 = vsel %vm409, %v2608, 0
      %v2621 = vsel %vm409, %v2609, 0
      %v2624 = vsel %vm409, %v2610, 0
      %v2627 = vsel %vm409, %v2611, 0
      %v2630 = vsel %vm422, %v2616, 0
      %2632 = vmatprep.subr.bf16.mxu0 0
      %2633 = vmatpush1.bf16.msra.mxu0 0
      %2634 = vmatprep.subr.bf16.mxu0 0
      %2635 = vmatpush1.bf16.msra.mxu0 0
      %2636 = vmatprep.subr.bf16.mxu0 0
      %2637 = vmatpush1.bf16.msra.mxu0 0
      %2638 = vmatprep.subr.bf16.mxu0 0
      %2639 = vmatpush1.bf16.msra.mxu0 0
      %2640 = vmatprep.subr.bf16.mxu0 0
      %2641 = vmatpush1.bf16.msra.mxu0 0
      %2642 = vmatprep.subr.bf16.mxu0 0
      %2643 = vmatpush1.bf16.msra.mxu0 0
      %2644 = vmatprep.subr.bf16.mxu0 0
      %2645 = vmatpush1.bf16.msra.mxu0 0
      %2646 = vmatprep.subr.bf16.mxu0 0
      %2647 = vmatpush1.bf16.msra.mxu0 %v2630
      %2648 = vmatprep.subr.bf16.mxu0 0
      %2649 = vmatpush2.bf16.msra.mxu0 0
      %2650 = vmatprep.subr.bf16.mxu0 0
      %2651 = vmatpush2.bf16.msra.mxu0 0
      %2652 = vmatprep.subr.bf16.mxu0 0
      %2653 = vmatpush2.bf16.msra.mxu0 0
      %2654 = vmatprep.subr.bf16.mxu0 0
      %2655 = vmatpush2.bf16.msra.mxu0 0
      %2656 = vmatprep.subr.bf16.mxu0 0
      %2657 = vmatpush2.bf16.msra.mxu0 0
      %2658 = vmatprep.subr.bf16.mxu0 0
      %2659 = vmatpush2.bf16.msra.mxu0 0
      %2660 = vmatprep.subr.bf16.mxu0 0
      %2661 = vmatpush2.bf16.msra.mxu0 0
      %2662 = vmatprep.subr.bf16.mxu0 0
      %2663 = vmatpush2.bf16.msra.mxu0 0
      %2664 = vmatprep.mubr.bf16.mxu0 0
      %2665 = vmatmul.mubr.bf16.gmra.mxu0 %v2618
      %v2666 = vpop.f32.mrf.mxu0
      %v2667 = vadd.f32 0.0, %v2666
      %v2668 = vpop.f32.mrf.mxu0
      %v2669 = vpop.f32.mrf.mxu0
      %v2670 = vadd.f32 0.0, %v2669
      %v2671 = vpop.f32.mrf.mxu0
      %2672 = vmatprep.mubr.bf16.mxu0 0
      %2673 = vmatmul.mubr.bf16.gmra.mxu0 %v2621
      %v2674 = vpop.f32.mrf.mxu0
      %v2675 = vadd.f32 0.0, %v2674
      %v2676 = vpop.f32.mrf.mxu0
      %v2677 = vpop.f32.mrf.mxu0
      %v2678 = vadd.f32 0.0, %v2677
      %v2679 = vpop.f32.mrf.mxu0
      %2680 = vmatprep.mubr.bf16.mxu0 0
      %2681 = vmatmul.mubr.bf16.gmra.mxu0 %v2624
      %v2682 = vpop.f32.mrf.mxu0
      %v2683 = vadd.f32 0.0, %v2682
      %v2684 = vpop.f32.mrf.mxu0
      %v2685 = vpop.f32.mrf.mxu0
      %v2686 = vadd.f32 0.0, %v2685
      %v2687 = vpop.f32.mrf.mxu0
      %2688 = vmatprep.mubr.bf16.mxu0 0
      %2689 = vmatmul.mubr.bf16.gmra.mxu0 %v2627
      %v2690 = vpop.f32.mrf.mxu0
      %v2691 = vadd.f32 0.0, %v2690
      %v2692 = vpop.f32.mrf.mxu0
      %v2693 = vpop.f32.mrf.mxu0
      %v2694 = vadd.f32 0.0, %v2693
      %v2695 = vpop.f32.mrf.mxu0
      %2696 = vdwg.mxu0
      %v2697 = vsel %vm491, %v2667, -inf
      %2698 = vmax.xlane.f32.xlu0 %v2697
      %v2699 = vpop.xlane.xlu0 %2698
      %v2700 = vsel %vm491, %v2670, -inf
      %2701 = vmax.xlane.f32.xlu0 %v2700
      %v2702 = vpop.xlane.xlu0 %2701
      %v2703 = vsel %vm491, %v2675, -inf
      %2704 = vmax.xlane.f32.xlu0 %v2703
      %v2705 = vpop.xlane.xlu0 %2704
      %v2706 = vsel %vm491, %v2678, -inf
      %2707 = vmax.xlane.f32.xlu0 %v2706
      %v2708 = vpop.xlane.xlu0 %2707
      %v2709 = vsel %vm491, %v2683, -inf
      %2710 = vmax.xlane.f32.xlu0 %v2709
      %v2711 = vpop.xlane.xlu0 %2710
      %v2712 = vsel %vm491, %v2686, -inf
      %2713 = vmax.xlane.f32.xlu0 %v2712
      %v2714 = vpop.xlane.xlu0 %2713
      %v2715 = vsel %vm491, %v2691, -inf
      %2716 = vmax.xlane.f32.xlu0 %v2715
      %v2717 = vpop.xlane.xlu0 %2716
      %v2718 = vsel %vm491, %v2694, -inf
      %2719 = vmax.xlane.f32.xlu0 %v2718
      %v2720 = vpop.xlane.xlu0 %2719
      %v2721 = vsub.f32 %v2667, %v2699
      %v2722 = vsub.f32 %v2670, %v2702
      %v2723 = vsub.f32 %v2675, %v2705
      %v2724 = vsub.f32 %v2678, %v2708
      %v2725 = vsub.f32 %v2683, %v2711
      %v2726 = vsub.f32 %v2686, %v2714
      %v2727 = vsub.f32 %v2691, %v2717
      %v2728 = vsub.f32 %v2694, %v2720
      %v2729 = vmul.f32 %v2721, 1.442695
      %v2730 = vpow.pop %v2729
      %v2731 = vmul.f32 %v2722, 1.442695
      %v2732 = vpow.pop %v2731
      %v2733 = vmul.f32 %v2723, 1.442695
      %v2734 = vpow.pop %v2733
      %v2735 = vmul.f32 %v2724, 1.442695
      %v2736 = vpow.pop %v2735
      %v2737 = vmul.f32 %v2725, 1.442695
      %v2738 = vpow.pop %v2737
      %v2739 = vmul.f32 %v2726, 1.442695
      %v2740 = vpow.pop %v2739
      %v2741 = vmul.f32 %v2727, 1.442695
      %v2742 = vpow.pop %v2741
      %v2743 = vmul.f32 %v2728, 1.442695
      %v2744 = vpow.pop %v2743
      %v2745 = vsel %vm491, %v2730, 0.0
      %2746 = vadd.xlane.f32.xlu0 %v2745
      %v2747 = vpop.xlane.xlu0 %2746
      %v2748 = vsel %vm491, %v2732, 0.0
      %2749 = vadd.xlane.f32.xlu0 %v2748
      %v2750 = vpop.xlane.xlu0 %2749
      %v2751 = vsel %vm491, %v2734, 0.0
      %2752 = vadd.xlane.f32.xlu0 %v2751
      %v2753 = vpop.xlane.xlu0 %2752
      %v2754 = vsel %vm491, %v2736, 0.0
      %2755 = vadd.xlane.f32.xlu0 %v2754
      %v2756 = vpop.xlane.xlu0 %2755
      %v2757 = vsel %vm491, %v2738, 0.0
      %2758 = vadd.xlane.f32.xlu0 %v2757
      %v2759 = vpop.xlane.xlu0 %2758
      %v2760 = vsel %vm491, %v2740, 0.0
      %2761 = vadd.xlane.f32.xlu0 %v2760
      %v2762 = vpop.xlane.xlu0 %2761
      %v2763 = vsel %vm491, %v2742, 0.0
      %2764 = vadd.xlane.f32.xlu0 %v2763
      %v2765 = vpop.xlane.xlu0 %2764
      %v2766 = vsel %vm491, %v2744, 0.0
      %2767 = vadd.xlane.f32.xlu0 %v2766
      %v2768 = vpop.xlane.xlu0 %2767
      %v2769 = vrcp.pop %v2747
      %v2770 = vrcp.pop %v2750
      %v2771 = vrcp.pop %v2753
      %v2772 = vrcp.pop %v2756
      %v2773 = vrcp.pop %v2759
      %v2774 = vrcp.pop %v2762
      %v2775 = vrcp.pop %v2765
      %v2776 = vrcp.pop %v2768
      %v2777 = vmul.f32 %v2730, %v2769
      %v2778 = vmul.f32 %v2732, %v2770
      %v2779 = vmul.f32 %v2734, %v2771
      %v2780 = vmul.f32 %v2736, %v2772
      %v2781 = vmul.f32 %v2738, %v2773
      %v2782 = vmul.f32 %v2740, %v2774
      %v2783 = vmul.f32 %v2742, %v2775
      %v2784 = vmul.f32 %v2744, %v2776
      %v2785 = vpack.c.bf16 %v2778, %v2777
      %v2786 = vpack.c.bf16 %v2780, %v2779
      %v2787 = vpack.c.bf16 %v2782, %v2781
      %v2788 = vpack.c.bf16 %v2784, %v2783
      %v2789 = vrot.slane %v388, 6
      %v2791 = vsel %vm491, %v2789, 0
      %v2794 = vsel %vm491, %v2785, 0
      %v2797 = vsel %vm491, %v2786, 0
      %v2800 = vsel %vm491, %v2787, 0
      %v2803 = vsel %vm491, %v2788, 0
      %2805 = vmatprep.subr.bf16.mxu0 0
      %2806 = vmatpush1.bf16.xpose.msra.mxu0 0
      %2807 = vmatprep.subr.bf16.mxu0 0
      %2808 = vmatpush1.bf16.xpose.msra.mxu0 0
      %2809 = vmatprep.subr.bf16.mxu0 0
      %2810 = vmatpush1.bf16.xpose.msra.mxu0 0
      %2811 = vmatprep.subr.bf16.mxu0 0
      %2812 = vmatpush1.bf16.xpose.msra.mxu0 0
      %2813 = vmatprep.subr.bf16.mxu0 0
      %2814 = vmatpush1.bf16.xpose.msra.mxu0 %v2803
      %2815 = vmatprep.subr.bf16.mxu0 0
      %2816 = vmatpush1.bf16.xpose.msra.mxu0 %v2800
      %2817 = vmatprep.subr.bf16.mxu0 0
      %2818 = vmatpush1.bf16.xpose.msra.mxu0 %v2797
      %2819 = vmatprep.subr.bf16.mxu0 0
      %2820 = vmatpush1.bf16.xpose.msra.mxu0 %v2794
      %2821 = vmatprep.subr.bf16.mxu0 0
      %2822 = vmatpush2.bf16.xpose.msra.mxu0 0
      %2823 = vmatprep.subr.bf16.mxu0 0
      %2824 = vmatpush2.bf16.xpose.msra.mxu0 0
      %2825 = vmatprep.subr.bf16.mxu0 0
      %2826 = vmatpush2.bf16.xpose.msra.mxu0 0
      %2827 = vmatprep.subr.bf16.mxu0 0
      %2828 = vmatpush2.bf16.xpose.msra.mxu0 0
      %2829 = vmatprep.subr.bf16.mxu0 0
      %2830 = vmatpush2.bf16.xpose.msra.mxu0 0
      %2831 = vmatprep.subr.bf16.mxu0 0
      %2832 = vmatpush2.bf16.xpose.msra.mxu0 0
      %2833 = vmatprep.subr.bf16.mxu0 0
      %2834 = vmatpush2.bf16.xpose.msra.mxu0 0
      %2835 = vmatprep.subr.bf16.mxu0 0
      %2836 = vmatpush2.bf16.xpose.msra.mxu0 0
      %2837 = vmatprep.mubr.bf16.mxu0 0
      %2838 = vmatmul.mubr.bf16.gmra.mxu0 %v2791
      %v2839 = vpop.f32.mrf.mxu0
      %v2840 = vadd.f32 0.0, %v2839
      %v2841 = vpop.f32.mrf.mxu0
      %v2842 = vpop.f32.mrf.mxu0
      %v2843 = vpop.f32.mrf.mxu0
      %2844 = vdwg.mxu0
      %v2845 = vpack.c.bf16 %v2840, %v2840
      %2846 = vrot.lane.b32.xlu0 %v648, 100
      %v2847 = vpop.permute.xlu0 %2846
      %2848 = vrot.lane.b32.xlu0 %v649, 100
      %v2849 = vpop.permute.xlu0 %2848
      %v2851 = vsel %vm409, %v2847, 0
      %v2854 = vsel %vm409, %v2849, 0
      %v2857 = vsel %vm422, %v2845, 0
      %2859 = vmatprep.subr.bf16.mxu0 0
      %2860 = vmatpush1.bf16.msra.mxu0 0
      %2861 = vmatprep.subr.bf16.mxu0 0
      %2862 = vmatpush1.bf16.msra.mxu0 0
      %2863 = vmatprep.subr.bf16.mxu0 0
      %2864 = vmatpush1.bf16.msra.mxu0 0
      %2865 = vmatprep.subr.bf16.mxu0 0
      %2866 = vmatpush1.bf16.msra.mxu0 0
      %2867 = vmatprep.subr.bf16.mxu0 0
      %2868 = vmatpush1.bf16.msra.mxu0 0
      %2869 = vmatprep.subr.bf16.mxu0 0
      %2870 = vmatpush1.bf16.msra.mxu0 0
      %2871 = vmatprep.subr.bf16.mxu0 0
      %2872 = vmatpush1.bf16.msra.mxu0 0
      %2873 = vmatprep.subr.bf16.mxu0 0
      %2874 = vmatpush1.bf16.msra.mxu0 %v2857
      %2875 = vmatprep.subr.bf16.mxu0 0
      %2876 = vmatpush2.bf16.msra.mxu0 0
      %2877 = vmatprep.subr.bf16.mxu0 0
      %2878 = vmatpush2.bf16.msra.mxu0 0
      %2879 = vmatprep.subr.bf16.mxu0 0
      %2880 = vmatpush2.bf16.msra.mxu0 0
      %2881 = vmatprep.subr.bf16.mxu0 0
      %2882 = vmatpush2.bf16.msra.mxu0 0
      %2883 = vmatprep.subr.bf16.mxu0 0
      %2884 = vmatpush2.bf16.msra.mxu0 0
      %2885 = vmatprep.subr.bf16.mxu0 0
      %2886 = vmatpush2.bf16.msra.mxu0 0
      %2887 = vmatprep.subr.bf16.mxu0 0
      %2888 = vmatpush2.bf16.msra.mxu0 0
      %2889 = vmatprep.subr.bf16.mxu0 0
      %2890 = vmatpush2.bf16.msra.mxu0 0
      %2891 = vmatprep.mubr.bf16.mxu0 0
      %2892 = vmatmul.mubr.bf16.gmra.mxu0 %v2851
      %v2893 = vpop.f32.mrf.mxu0
      %v2894 = vadd.f32 0.0, %v2893
      %v2895 = vpop.f32.mrf.mxu0
      %v2896 = vpop.f32.mrf.mxu0
      %v2897 = vadd.f32 0.0, %v2896
      %v2898 = vpop.f32.mrf.mxu0
      %2899 = vmatprep.mubr.bf16.mxu0 0
      %2900 = vmatmul.mubr.bf16.gmra.mxu0 %v2854
      %v2901 = vpop.f32.mrf.mxu0
      %v2902 = vadd.f32 0.0, %v2901
      %v2903 = vpop.f32.mrf.mxu0
      %v2904 = vpop.f32.mrf.mxu0
      %v2905 = vadd.f32 0.0, %v2904
      %v2906 = vpop.f32.mrf.mxu0
      %2907 = vdwg.mxu0
      %v2908 = vadd.f32 %v2594, %v2894
      %v2909 = vadd.f32 %v2595, %v2897
      %v2910 = vadd.f32 %v2596, %v2902
      %v2911 = vadd.f32 %v2597, %v2905
      %v2912 = vld [vmem:[%s3] sm:$0xff]
      %v2913 = vld [vmem:[%s3 + $0x8] sm:$0xff]
      %v2914 = vld [vmem:[%s3 + $0x10] sm:$0xff]
      %v2915 = vld [vmem:[%s3 + $0x18] sm:$0xff]
      %2917 = vset.pattern.permute.xlu0 0
      %2918 = vperm.xlu0 %2917, %v2912
      %v2919 = vpop.permute.xlu0 %2918
      %2922 = vset.pattern.permute.xlu0 0
      %2923 = vperm.xlu0 %2922, %v2913
      %v2924 = vpop.permute.xlu0 %2923
      %2927 = vset.pattern.permute.xlu0 0
      %2928 = vperm.xlu0 %2927, %v2914
      %v2929 = vpop.permute.xlu0 %2928
      %2932 = vset.pattern.permute.xlu0 0
      %2933 = vperm.xlu0 %2932, %v2915
      %v2934 = vpop.permute.xlu0 %2933
      %v2936 = vadd.f32 %v2908, %v2919
      %v2937 = vadd.f32 %v2909, %v2924
      %v2938 = vadd.f32 %v2910, %v2929
      %v2939 = vadd.f32 %v2911, %v2934
      %2940 = vst.msk [vmem:[%s197] sm:$0xff] %vm491, %v2936
      %2941 = vst.msk [vmem:[%s197 + $0x8] sm:$0xff] %vm491, %v2937
      %2942 = vst.msk [vmem:[%s197 + $0x10] sm:$0xff] %vm491, %v2938
      %2943 = vst.msk [vmem:[%s197 + $0x18] sm:$0xff] %vm491, %v2939
      %p2944 = scmp.lt.s32.totalorder %s15, 1
      %s2945 = scalar_select %p2944, %s15, 1
      %s2946 = smul.addr %s2945, 4
      %s2947 = smul.addr %s2946, 8
      %s2948 = scalar_lea.vmem %s4, %s2947
      // Predicated region
      $region37: #{_lambda_.1} parent=35 // pred_check
        %p2949 = pneg %p122
      $region38: #{_lambda_.1} parent=35 // pred_check_branch
        %2951 = sbr.rel (%p2949) target = $region40
      $region39: #{_lambda_.1} parent=35 // pred_region
        _
      $region40: #{_lambda_.1} parent=35 // pred_fallthru
        _
    $region36: #{_lambda_.1} parent=5 // pred_fallthru
      _
    %p2952 = scmp.le.s32.totalorder 2, %s10
    // Predicated region
    $region41: #{_lambda_.1} parent=5 // pred_check
      %p2953 = pneg %p2952
    $region42: #{_lambda_.1} parent=5 // pred_check_branch
      %2955 = sbr.rel (%p2953) target = $region44
    $region43: #{_lambda_.1} parent=5 // pred_region
      %s2956 = ssub.s32 %s10, 2
      // Predicated region
      $region45: #{_lambda_.1} parent=43 // pred_check
        %p2957 = pneg %p128
      $region46: #{_lambda_.1} parent=43 // pred_check_branch
        %2959 = sbr.rel (%p2957) target = $region48
      $region47: #{_lambda_.1} parent=43 // pred_region
        %p2960 = scmp.lt.s32.totalorder %s16, 1
        %s2961 = scalar_select %p2960, %s16, 1
        %s2962 = smul.addr %s2961, 4
        %s2963 = smul.addr %s2962, 8
        %s2964 = scalar_lea.vmem %s4, %s2963
      $region48: #{_lambda_.1} parent=43 // pred_fallthru
        _
    $region44: #{_lambda_.1} parent=5 // pred_fallthru
      _
  $region6: #{_lambda_.1} parent=0 // loop_footer
    %s14 = sadd.s32 1, %s10
  $region7: #{_lambda_.1} parent=0 // loop_footer_branch
    %9 = sbr.rel target = $region3
  $region8: #{_lambda_.1} parent=0 // loop_exit
    _

</llo_original>
